<compile_context>
chip_gen: v7x
topology: tpu7x:2x2x1
jax: 0.10.0
libtpu: 0.0.40
codegen_flags: <defaults>
</compile_context>

<pallas_src>
import functools

import numpy as np
import jax
import jax.numpy as jnp
from jax.experimental import pallas as pl
from jax.experimental.pallas import tpu as pltpu

F32 = jnp.float32


# ---------------------------------------------------------------------------
# Pallas kernels
# ---------------------------------------------------------------------------
def _invo1_kernel(xp_ref, wred_ref, ssc_ref, ssh_ref, wspan_ref, mask_ref,
                  winit_ref, bsc_ref, bsh_ref, al_ref, o_ref, zfp_ref,
                  *, cin, cout, ho, wo):
    """Fused stride-2 IBR: involution(stride=2,K=3,pad=1) + BN(1e-3) + PReLU.

    xp: [1, 4*cin, S] -- the 4 stride-2 parity planes of x, spatial flattened
        (row (i*2+j)*cin + c holds x[c, 2a+i, 2b+j] at lane a*wo+b).
    """
    S = ho * wo
    pad = wo + 1                      # max |flat offset| of the stride-2 taps
    xp = xp_ref[0]                                                  # (4*cin, S)

    # AvgPool2d(kernel=2, stride=2) == mean of the 4 parity planes.
    pooled = 0.25 * (xp[0 * cin:1 * cin] + xp[1 * cin:2 * cin]
                     + xp[2 * cin:3 * cin] + xp[3 * cin:4 * cin])   # (cin, S)

    # reduce (1x1) -> BN(eps=1e-5) -> ReLU -> span (1x1)
    t = jnp.dot(wred_ref[...], pooled, preferred_element_type=F32)  # (cout, S)
    t = jnp.maximum(t * ssc_ref[...] + ssh_ref[...], 0.0)
    ker = jnp.dot(wspan_ref[...], t, preferred_element_type=F32)    # (9, S)
    ker = ker * mask_ref[...]         # fold column-validity masks into ker

    # initial 1x1 mapping, applied per parity plane via a block-diagonal weight
    z = jnp.dot(winit_ref[...], xp, preferred_element_type=F32)     # (4*cout, S)

    # zero-padded flat-spatial copy of z for the tap gather
    zfp_ref[...] = jnp.zeros_like(zfp_ref)
    zfp_ref[:, pad:pad + S] = z
    zf = zfp_ref[...]                                               # (4*cout, S+2*pad)

    acc = jnp.zeros((cout, S), F32)
    for ky in range(3):
        for kx in range(3):
            kk = ky * 3 + kx
            # source pixel row = 2*oh + ky - 1  -> parity (0 if ky==1 else 1),
            # shifted by -1 output row iff ky == 0 (same for columns).
            p_src = (0 if ky == 1 else 1) * 2 + (0 if kx == 1 else 1)
            off = (-wo if ky == 0 else 0) + (-1 if kx == 0 else 0)
            patch = zf[p_src * cout:(p_src + 1) * cout,
                       pad + off:pad + off + S]
            acc = acc + ker[kk:kk + 1, :] * patch

    # fused IBR BatchNorm2d(eps=1e-3) + PReLU
    y = acc * bsc_ref[...] + bsh_ref[...]
    y = jnp.where(y > 0, y, al_ref[...] * y)
    o_ref[0] = y.astype(o_ref.dtype)


def _branches_kernel(o1_ref, wred_ref, ssc_ref, ssh_ref, wspan_ref, mask_ref,
                     winit_ref, isc_ref, ish_ref, ial_ref,
                     bsc_ref, bsh_ref, bal_ref, out_ref, zfp_ref,
                     *, dils, couts, cp, ho, wo, pad):
    """All five dilated IBR branches + concat + block BN(1e-3) + PReLU, fused.

    o1: [1, cin, S].  Weights for the 5 branches are stacked (padded to cp rows
    per branch) / block-diagonal so the kernel-generation path is 3 matmuls.
    """
    S = ho * wo
    o1 = o1_ref[0]                                                  # (cin, S)

    # kernel-generation path, all branches at once
    t = jnp.dot(wred_ref[...], o1, preferred_element_type=F32)      # (5*cp, S)
    t = jnp.maximum(t * ssc_ref[...] + ssh_ref[...], 0.0)           # BN(1e-5)+ReLU
    ker = jnp.dot(wspan_ref[...], t, preferred_element_type=F32)    # (5*9, S)
    ker = ker * mask_ref[...]

    # initial mapping for all branches (identity embedded where Cin == Cout)
    z = jnp.dot(winit_ref[...], o1, preferred_element_type=F32)     # (5*cp, S)

    zfp_ref[...] = jnp.zeros_like(zfp_ref)

    c0 = 0
    for br, (d, c) in enumerate(zip(dils, couts)):
        zfp_ref[:, pad:pad + S] = z[cp * br:cp * br + cp, :]
        zf = zfp_ref[...]                                           # (cp, S+2*pad)
        acc = jnp.zeros((cp, S), F32)
        for ky in range(3):
            dy = (ky - 1) * d
            if abs(dy) >= ho:        # tap entirely outside the image -> 0
                continue
            for kx in range(3):
                dx = (kx - 1) * d
                if abs(dx) >= wo:
                    continue
                kk = 9 * br + ky * 3 + kx
                off = dy * wo + dx
                patch = zf[:, pad + off:pad + off + S]
                acc = acc + ker[kk:kk + 1, :] * patch
        y = acc[0:c, :]
        # per-branch IBR BatchNorm2d(eps=1e-3) + PReLU
        y = y * isc_ref[c0:c0 + c, :] + ish_ref[c0:c0 + c, :]
        y = jnp.where(y > 0, y, ial_ref[c0:c0 + c, :] * y)
        # block BatchNorm2d(eps=1e-3) + PReLU (post-concat, per channel)
        y = y * bsc_ref[c0:c0 + c, :] + bsh_ref[c0:c0 + c, :]
        y = jnp.where(y > 0, y, bal_ref[c0:c0 + c, :] * y)
        out_ref[0, c0:c0 + c, :] = y.astype(out_ref.dtype)          # "concat"
        c0 += c


# ---------------------------------------------------------------------------
# Host-side packing helpers (static, tiny)
# ---------------------------------------------------------------------------
def _fuse_bn(gamma, beta, mean, var, eps):
    scale = gamma / jnp.sqrt(var + eps)
    shift = beta - mean * scale
    return scale, shift


def _stride2_col_masks(ho, wo):
    """Column-validity masks for the 9 stride-2 taps (kx==0 needs ow>=1)."""
    S = ho * wo
    ow = np.arange(S) % wo
    m = np.ones((9, S), np.float32)
    for ky in range(3):
        m[ky * 3 + 0] = (ow >= 1)
    return m


def _dilated_col_masks(ho, wo, d):
    """Column-validity masks for the 9 stride-1 taps at dilation d."""
    S = ho * wo
    ow = np.arange(S) % wo
    m = np.zeros((9, S), np.float32)
    for ky in range(3):
        dy = (ky - 1) * d
        for kx in range(3):
            dx = (kx - 1) * d
            if abs(dy) < ho and abs(dx) < wo:
                m[ky * 3 + kx] = ((ow + dx >= 0) & (ow + dx < wo))
    return m


def pack_invo1_params(p, ho, wo):
    cin, cout = p["w_reduce"].shape
    w_init = (p["w_init"].T if p["w_init"] is not None
              else jnp.eye(cout, cin, dtype=F32))                  # (cout, cin)
    ssc, ssh = _fuse_bn(*p["sigma_bn"], eps=1e-5)
    bsc, bsh = _fuse_bn(*p["ibr_bn"], eps=1e-3)
    return {
        "w_red": p["w_reduce"].T,                                  # (cout, cin)
        "ssc": ssc.reshape(cout, 1), "ssh": ssh.reshape(cout, 1),
        "w_span": p["w_span"].T,                                   # (9, cout)
        "mask": jnp.asarray(_stride2_col_masks(ho, wo)),           # (9, S)
        "w_init_blk": jnp.kron(jnp.eye(4, dtype=F32), w_init),     # (4cout, 4cin)
        "bsc": bsc.reshape(cout, 1), "bsh": bsh.reshape(cout, 1),
        "al": p["alpha"].reshape(cout, 1),
    }


def pack_branch_params(params, ho, wo):
    names = ("dilated1", "dilated2", "dilated4", "dilated8", "dilated16")
    dils = (1, 2, 4, 8, 16)
    couts = tuple(int(params[n]["w_reduce"].shape[1]) for n in names)
    cin = int(params[names[0]]["w_reduce"].shape[0])
    cp = max(couts)
    nb = len(names)

    wred = jnp.zeros((cp * nb, cin), F32)
    winit = jnp.zeros((cp * nb, cin), F32)
    wspan = jnp.zeros((9 * nb, cp * nb), F32)
    ssc = jnp.zeros((cp * nb, 1), F32)
    ssh = jnp.zeros((cp * nb, 1), F32)
    isc_l, ish_l, ial_l, mask_l = [], [], [], []

    for br, (name, d, c) in enumerate(zip(names, dils, couts)):
        p = params[name]
        wred = wred.at[cp * br:cp * br + c, :].set(p["w_reduce"].T)
        s_sc, s_sh = _fuse_bn(*p["sigma_bn"], eps=1e-5)
        ssc = ssc.at[cp * br:cp * br + c, 0].set(s_sc)
        ssh = ssh.at[cp * br:cp * br + c, 0].set(s_sh)
        wspan = wspan.at[9 * br:9 * br + 9, cp * br:cp * br + c].set(p["w_span"].T)
        wi = (p["w_init"].T if p["w_init"] is not None
              else jnp.eye(c, cin, dtype=F32))
        winit = winit.at[cp * br:cp * br + c, :].set(wi)
        b_sc, b_sh = _fuse_bn(*p["ibr_bn"], eps=1e-3)
        isc_l.append(b_sc); ish_l.append(b_sh); ial_l.append(p["alpha"])
        mask_l.append(_dilated_col_masks(ho, wo, d))

    # flat-spatial scratch padding: max |dy*wo + dx| over taps actually used
    pad = 0
    for d in dils:
        for ky in range(3):
            for kx in range(3):
                dy, dx = (ky - 1) * d, (kx - 1) * d
                if abs(dy) < ho and abs(dx) < wo:
                    pad = max(pad, abs(dy * wo + dx))

    return {
        "dils": dils, "couts": couts, "cp": cp, "pad": pad,
        "w_red": wred, "ssc": ssc, "ssh": ssh, "w_span": wspan,
        "mask": jnp.asarray(np.concatenate(mask_l, axis=0)),        # (45, S)
        "w_init": winit,
        "isc": jnp.concatenate(isc_l).reshape(-1, 1),
        "ish": jnp.concatenate(ish_l).reshape(-1, 1),
        "ial": jnp.concatenate(ial_l).reshape(-1, 1),
    }


# ---------------------------------------------------------------------------
# pallas_call wrappers
# ---------------------------------------------------------------------------
def invo1_forward(x_nchw, pk):
    B, cin, H, W = x_nchw.shape
    assert H % 2 == 0 and W % 2 == 0
    ho, wo = H // 2, W // 2
    S = ho * wo
    cout = pk["w_red"].shape[0]
    pad = wo + 1
    # parity split: xp[b, (i*2+j)*cin + c, a*wo + w] = x[b, c, 2a+i, 2w+j]
    xp = x_nchw.reshape(B, cin, ho, 2, wo, 2).transpose(0, 3, 5, 1, 2, 4)
    xp = xp.reshape(B, 4 * cin, S)

    kern = functools.partial(_invo1_kernel, cin=cin, cout=cout, ho=ho, wo=wo)
    return pl.pallas_call(
        kern,
        out_shape=jax.ShapeDtypeStruct((B, cout, S), F32),
        grid=(B,),
        in_specs=[
            pl.BlockSpec((1, 4 * cin, S), lambda b: (b, 0, 0)),
            pl.BlockSpec((cout, cin), lambda b: (0, 0)),
            pl.BlockSpec((cout, 1), lambda b: (0, 0)),
            pl.BlockSpec((cout, 1), lambda b: (0, 0)),
            pl.BlockSpec((9, cout), lambda b: (0, 0)),
            pl.BlockSpec((9, S), lambda b: (0, 0)),
            pl.BlockSpec((4 * cout, 4 * cin), lambda b: (0, 0)),
            pl.BlockSpec((cout, 1), lambda b: (0, 0)),
            pl.BlockSpec((cout, 1), lambda b: (0, 0)),
            pl.BlockSpec((cout, 1), lambda b: (0, 0)),
        ],
        out_specs=pl.BlockSpec((1, cout, S), lambda b: (b, 0, 0)),
        scratch_shapes=[pltpu.VMEM((4 * cout, S + 2 * pad), F32)],
        compiler_params=pltpu.CompilerParams(dimension_semantics=("parallel",)),
    )(xp, pk["w_red"], pk["ssc"], pk["ssh"], pk["w_span"], pk["mask"],
      pk["w_init_blk"], pk["bsc"], pk["bsh"], pk["al"])


def branches_forward(o1, pk, *, ho, wo):
    B, cin, S = o1.shape
    dils, couts, cp, pad = pk["dils"], pk["couts"], pk["cp"], pk["pad"]
    nb = len(dils)
    n_total = int(sum(couts))

    kern = functools.partial(_branches_kernel, dils=dils, couts=couts,
                             cp=cp, ho=ho, wo=wo, pad=pad)
    return pl.pallas_call(
        kern,
        out_shape=jax.ShapeDtypeStruct((B, n_total, S), F32),
        grid=(B,),
        in_specs=[
            pl.BlockSpec((1, cin, S), lambda b: (b, 0, 0)),
            pl.BlockSpec((cp * nb, cin), lambda b: (0, 0)),
            pl.BlockSpec((cp * nb, 1), lambda b: (0, 0)),
            pl.BlockSpec((cp * nb, 1), lambda b: (0, 0)),
            pl.BlockSpec((9 * nb, cp * nb), lambda b: (0, 0)),
            pl.BlockSpec((9 * nb, S), lambda b: (0, 0)),
            pl.BlockSpec((cp * nb, cin), lambda b: (0, 0)),
            pl.BlockSpec((n_total, 1), lambda b: (0, 0)),
            pl.BlockSpec((n_total, 1), lambda b: (0, 0)),
            pl.BlockSpec((n_total, 1), lambda b: (0, 0)),
            pl.BlockSpec((n_total, 1), lambda b: (0, 0)),
            pl.BlockSpec((n_total, 1), lambda b: (0, 0)),
            pl.BlockSpec((n_total, 1), lambda b: (0, 0)),
        ],
        out_specs=pl.BlockSpec((1, n_total, S), lambda b: (b, 0, 0)),
        scratch_shapes=[pltpu.VMEM((cp, S + 2 * pad), F32)],
        compiler_params=pltpu.CompilerParams(dimension_semantics=("parallel",)),
    )(o1, pk["w_red"], pk["ssc"], pk["ssh"], pk["w_span"], pk["mask"],
      pk["w_init"], pk["isc"], pk["ish"], pk["ial"],
      pk["bsc"], pk["bsh"], pk["bal"])


# ---------------------------------------------------------------------------
# Parameters (deterministic synthetic init, same structure as v1)
# ---------------------------------------------------------------------------
def _bn_params(key, c):
    k1, k2, k3, k4 = jax.random.split(key, 4)
    gamma = jax.random.uniform(k1, (c,), F32, 0.5, 1.5)
    beta = 0.1 * jax.random.normal(k2, (c,), F32)
    mean = 0.1 * jax.random.normal(k3, (c,), F32)
    var = jax.random.uniform(k4, (c,), F32, 0.5, 1.5)
    return gamma, beta, mean, var


def init_ibr_params(key, cin, cout, K):
    ks = jax.random.split(key, 6)
    p = {}
    if cin != cout:
        p["w_init"] = jax.random.normal(ks[0], (cin, cout), F32) / jnp.sqrt(float(cin))
    else:
        p["w_init"] = None  # Involution2d uses Identity when Cin == Cout
    p["w_reduce"] = jax.random.normal(ks[1], (cin, cout), F32) / jnp.sqrt(float(cin))
    p["w_span"] = jax.random.normal(ks[2], (cout, K * K), F32) / jnp.sqrt(float(cout))
    p["sigma_bn"] = _bn_params(ks[3], cout)   # inside involution, eps=1e-5
    p["ibr_bn"] = _bn_params(ks[4], cout)     # IBR batchnorm, eps=1e-3
    p["alpha"] = jnp.full((cout,), 0.25, F32)  # PReLU default init
    return p


def init_dinp_params(key, nIn, nOut):
    n = nOut // 5
    n1 = nOut - 4 * n
    ks = jax.random.split(key, 7)
    return {
        "invo1": init_ibr_params(ks[0], nIn, n, 3),
        "dilated1": init_ibr_params(ks[1], n, n1, 3),
        "dilated2": init_ibr_params(ks[2], n, n, 3),
        "dilated4": init_ibr_params(ks[3], n, n, 3),
        "dilated8": init_ibr_params(ks[4], n, n, 3),
        "dilated16": init_ibr_params(ks[5], n, n, 3),
        "block_bn": _bn_params(ks[6], nOut),
        "block_alpha": jnp.full((nOut,), 0.25, F32),
    }


# ---------------------------------------------------------------------------
# Forward
# ---------------------------------------------------------------------------
def dinp_block_forward(x_nchw, params):
    B, cin, H, W = x_nchw.shape
    ho, wo = H // 2, W // 2

    pk1 = pack_invo1_params(params["invo1"], ho, wo)
    pkb = pack_branch_params(params, ho, wo)
    blk_sc, blk_sh = _fuse_bn(*params["block_bn"], eps=1e-3)
    pkb = dict(pkb, bsc=blk_sc.reshape(-1, 1), bsh=blk_sh.reshape(-1, 1),
               bal=params["block_alpha"].reshape(-1, 1))

    o1 = invo1_forward(x_nchw, pk1)                 # (B, n, ho*wo), flat spatial
    out = branches_forward(o1, pkb, ho=ho, wo=wo)   # (B, nOut, ho*wo)
    return out.reshape(B, out.shape[1], ho, wo)     # NCHW (free reshape)


# ---------------------------------------------------------------------------
if __name__ == "__main__":
    key = jax.random.PRNGKey(0)
    k_x, k_p = jax.random.split(key)

    B, nIn, H, W = 2, 4, 16, 16
    nOut = 12  # n = 2, n1 = 4

    x = jax.random.normal(k_x, (B, nIn, H, W), F32)  # NCHW, like the PyTorch module
    params = init_dinp_params(k_p, nIn, nOut)

    fwd = jax.jit(dinp_block_forward)
    out = jax.block_until_ready(fwd(x, params))

    assert out.shape == (B, nOut, H // 2, W // 2), out.shape
    assert bool(jnp.all(jnp.isfinite(out)))
    print("KERNEL_OK")
</pallas_src>

<mosaic_0001>
module attributes {stable_mosaic.version = 11 : i64} {
  func.func @_invo1_kernel(%arg0: i32, %arg1: memref<1x16x64xf32, #tpu.memory_space<vmem>>, %arg2: memref<2x4xf32, #tpu.memory_space<vmem>>, %arg3: memref<2x1xf32, #tpu.memory_space<vmem>>, %arg4: memref<2x1xf32, #tpu.memory_space<vmem>>, %arg5: memref<9x2xf32, #tpu.memory_space<vmem>>, %arg6: memref<9x64xf32, #tpu.memory_space<vmem>>, %arg7: memref<8x16xf32, #tpu.memory_space<vmem>>, %arg8: memref<2x1xf32, #tpu.memory_space<vmem>>, %arg9: memref<2x1xf32, #tpu.memory_space<vmem>>, %arg10: memref<2x1xf32, #tpu.memory_space<vmem>>, %arg11: memref<1x2x64xf32, #tpu.memory_space<vmem>>, %arg12: memref<8x82xf32, #tpu.memory_space<vmem>>) attributes {dimension_semantics = [#tpu.dimension_semantics<parallel>], iteration_bounds = array<i64: 2>, scalar_prefetch = 0 : i64, scratch_operands = 1 : i64, tpu.core_type = #tpu.core_type<tc>, window_params = [{transform_indices = @transform_0, window_bounds = array<i64: 1, 16, 64>}, {pipeline_mode = #tpu.pipeline_mode<synchronous>, transform_indices = @transform_1, window_bounds = array<i64: 2, 4>}, {pipeline_mode = #tpu.pipeline_mode<synchronous>, transform_indices = @transform_2, window_bounds = array<i64: 2, 1>}, {pipeline_mode = #tpu.pipeline_mode<synchronous>, transform_indices = @transform_3, window_bounds = array<i64: 2, 1>}, {pipeline_mode = #tpu.pipeline_mode<synchronous>, transform_indices = @transform_4, window_bounds = array<i64: 9, 2>}, {pipeline_mode = #tpu.pipeline_mode<synchronous>, transform_indices = @transform_5, window_bounds = array<i64: 9, 64>}, {pipeline_mode = #tpu.pipeline_mode<synchronous>, transform_indices = @transform_6, window_bounds = array<i64: 8, 16>}, {pipeline_mode = #tpu.pipeline_mode<synchronous>, transform_indices = @transform_7, window_bounds = array<i64: 2, 1>}, {pipeline_mode = #tpu.pipeline_mode<synchronous>, transform_indices = @transform_8, window_bounds = array<i64: 2, 1>}, {pipeline_mode = #tpu.pipeline_mode<synchronous>, transform_indices = @transform_9, window_bounds = array<i64: 2, 1>}, {transform_indices = @transform_10, window_bounds = array<i64: 1, 2, 64>}]} {
    %c0 = arith.constant 0 : index
    %c0_0 = arith.constant 0 : index
    %c0_1 = arith.constant 0 : index
    %0 = vector.load %arg1[%c0, %c0_0, %c0_1] : memref<1x16x64xf32, #tpu.memory_space<vmem>>, vector<1x16x64xf32>
    %1 = vector.shape_cast %0 : vector<1x16x64xf32> to vector<16x64xf32>
    %2 = vector.extract_strided_slice %1 {offsets = [0, 0], sizes = [4, 64], strides = [1, 1]} : vector<16x64xf32> to vector<4x64xf32>
    %3 = vector.extract_strided_slice %1 {offsets = [4, 0], sizes = [4, 64], strides = [1, 1]} : vector<16x64xf32> to vector<4x64xf32>
    %4 = arith.addf %2, %3 : vector<4x64xf32>
    %5 = vector.extract_strided_slice %1 {offsets = [8, 0], sizes = [4, 64], strides = [1, 1]} : vector<16x64xf32> to vector<4x64xf32>
    %6 = arith.addf %4, %5 : vector<4x64xf32>
    %7 = vector.extract_strided_slice %1 {offsets = [12, 0], sizes = [4, 64], strides = [1, 1]} : vector<16x64xf32> to vector<4x64xf32>
    %8 = arith.addf %6, %7 : vector<4x64xf32>
    %cst = arith.constant 2.500000e-01 : f32
    %9 = vector.broadcast %cst : f32 to vector<4x64xf32>
    %10 = arith.mulf %9, %8 : vector<4x64xf32>
    %c0_2 = arith.constant 0 : index
    %c0_3 = arith.constant 0 : index
    %11 = vector.load %arg2[%c0_2, %c0_3] : memref<2x4xf32, #tpu.memory_space<vmem>>, vector<2x4xf32>
    %cst_4 = arith.constant dense<0.000000e+00> : vector<2x64xf32>
    %12 = tpu.matmul %11, %10, %cst_4 {dimension_numbers = #tpu.dot_dimension_numbers<[1], [0], [0], [1], [0, 0, 1, 1], [], []>} : vector<2x4xf32>, vector<4x64xf32>, vector<2x64xf32> -> vector<2x64xf32>
    %c0_5 = arith.constant 0 : index
    %c0_6 = arith.constant 0 : index
    %13 = vector.load %arg3[%c0_5, %c0_6] : memref<2x1xf32, #tpu.memory_space<vmem>>, vector<2x1xf32>
    %14 = vector.broadcast %13 : vector<2x1xf32> to vector<2x64xf32>
    %15 = arith.mulf %12, %14 : vector<2x64xf32>
    %c0_7 = arith.constant 0 : index
    %c0_8 = arith.constant 0 : index
    %16 = vector.load %arg4[%c0_7, %c0_8] : memref<2x1xf32, #tpu.memory_space<vmem>>, vector<2x1xf32>
    %17 = vector.broadcast %16 : vector<2x1xf32> to vector<2x64xf32>
    %18 = arith.addf %15, %17 : vector<2x64xf32>
    %cst_9 = arith.constant 0.000000e+00 : f32
    %19 = vector.broadcast %cst_9 : f32 to vector<2x64xf32>
    %20 = arith.maximumf %18, %19 : vector<2x64xf32>
    %c0_10 = arith.constant 0 : index
    %c0_11 = arith.constant 0 : index
    %21 = vector.load %arg5[%c0_10, %c0_11] : memref<9x2xf32, #tpu.memory_space<vmem>>, vector<9x2xf32>
    %cst_12 = arith.constant dense<0.000000e+00> : vector<9x64xf32>
    %22 = tpu.matmul %21, %20, %cst_12 {dimension_numbers = #tpu.dot_dimension_numbers<[1], [0], [0], [1], [0, 0, 1, 1], [], []>} : vector<9x2xf32>, vector<2x64xf32>, vector<9x64xf32> -> vector<9x64xf32>
    %c0_13 = arith.constant 0 : index
    %c0_14 = arith.constant 0 : index
    %23 = vector.load %arg6[%c0_13, %c0_14] : memref<9x64xf32, #tpu.memory_space<vmem>>, vector<9x64xf32>
    %24 = arith.mulf %22, %23 : vector<9x64xf32>
    %c0_15 = arith.constant 0 : index
    %c0_16 = arith.constant 0 : index
    %25 = vector.load %arg7[%c0_15, %c0_16] : memref<8x16xf32, #tpu.memory_space<vmem>>, vector<8x16xf32>
    %cst_17 = arith.constant dense<0.000000e+00> : vector<8x64xf32>
    %26 = tpu.matmul %25, %1, %cst_17 {dimension_numbers = #tpu.dot_dimension_numbers<[1], [0], [0], [1], [0, 0, 1, 1], [], []>} : vector<8x16xf32>, vector<16x64xf32>, vector<8x64xf32> -> vector<8x64xf32>
    %cst_18 = arith.constant 0.000000e+00 : f32
    %27 = vector.broadcast %cst_18 : f32 to vector<8x82xf32>
    %c0_19 = arith.constant 0 : index
    %c0_20 = arith.constant 0 : index
    %28 = vector.load %arg12[%c0_19, %c0_20] : memref<8x82xf32, #tpu.memory_space<vmem>>, vector<8x82xf32>
    tpu.vector_store %arg12[%c0_19, %c0_20], %27 {strides = array<i32>} : memref<8x82xf32, #tpu.memory_space<vmem>>, vector<8x82xf32>,
    %c0_21 = arith.constant 0 : index
    %c9 = arith.constant 9 : index
    %29 = vector.load %arg12[%c0_21, %c9] : memref<8x82xf32, #tpu.memory_space<vmem>>, vector<8x64xf32>
    tpu.vector_store %arg12[%c0_21, %c9], %26 {strides = array<i32>} : memref<8x82xf32, #tpu.memory_space<vmem>>, vector<8x64xf32>,
    %c0_22 = arith.constant 0 : index
    %c0_23 = arith.constant 0 : index
    %30 = vector.load %arg12[%c0_22, %c0_23] : memref<8x82xf32, #tpu.memory_space<vmem>>, vector<8x82xf32>
    %cst_24 = arith.constant 0.000000e+00 : f32
    %31 = vector.broadcast %cst_24 : f32 to vector<2x64xf32>
    %32 = vector.extract_strided_slice %30 {offsets = [6, 0], sizes = [2, 64], strides = [1, 1]} : vector<8x82xf32> to vector<2x64xf32>
    %33 = vector.extract_strided_slice %24 {offsets = [0, 0], sizes = [1, 64], strides = [1, 1]} : vector<9x64xf32> to vector<1x64xf32>
    %34 = vector.broadcast %33 : vector<1x64xf32> to vector<2x64xf32>
    %35 = arith.mulf %34, %32 : vector<2x64xf32>
    %36 = arith.addf %31, %35 : vector<2x64xf32>
    %37 = vector.extract_strided_slice %30 {offsets = [4, 1], sizes = [2, 64], strides = [1, 1]} : vector<8x82xf32> to vector<2x64xf32>
    %38 = vector.extract_strided_slice %24 {offsets = [1, 0], sizes = [1, 64], strides = [1, 1]} : vector<9x64xf32> to vector<1x64xf32>
    %39 = vector.broadcast %38 : vector<1x64xf32> to vector<2x64xf32>
    %40 = arith.mulf %39, %37 : vector<2x64xf32>
    %41 = arith.addf %36, %40 : vector<2x64xf32>
    %42 = vector.extract_strided_slice %30 {offsets = [6, 1], sizes = [2, 64], strides = [1, 1]} : vector<8x82xf32> to vector<2x64xf32>
    %43 = vector.extract_strided_slice %24 {offsets = [2, 0], sizes = [1, 64], strides = [1, 1]} : vector<9x64xf32> to vector<1x64xf32>
    %44 = vector.broadcast %43 : vector<1x64xf32> to vector<2x64xf32>
    %45 = arith.mulf %44, %42 : vector<2x64xf32>
    %46 = arith.addf %41, %45 : vector<2x64xf32>
    %47 = vector.extract_strided_slice %30 {offsets = [2, 8], sizes = [2, 64], strides = [1, 1]} : vector<8x82xf32> to vector<2x64xf32>
    %48 = vector.extract_strided_slice %24 {offsets = [3, 0], sizes = [1, 64], strides = [1, 1]} : vector<9x64xf32> to vector<1x64xf32>
    %49 = vector.broadcast %48 : vector<1x64xf32> to vector<2x64xf32>
    %50 = arith.mulf %49, %47 : vector<2x64xf32>
    %51 = arith.addf %46, %50 : vector<2x64xf32>
    %52 = vector.extract_strided_slice %30 {offsets = [0, 9], sizes = [2, 64], strides = [1, 1]} : vector<8x82xf32> to vector<2x64xf32>
    %53 = vector.extract_strided_slice %24 {offsets = [4, 0], sizes = [1, 64], strides = [1, 1]} : vector<9x64xf32> to vector<1x64xf32>
    %54 = vector.broadcast %53 : vector<1x64xf32> to vector<2x64xf32>
    %55 = arith.mulf %54, %52 : vector<2x64xf32>
    %56 = arith.addf %51, %55 : vector<2x64xf32>
    %57 = vector.extract_strided_slice %30 {offsets = [2, 9], sizes = [2, 64], strides = [1, 1]} : vector<8x82xf32> to vector<2x64xf32>
    %58 = vector.extract_strided_slice %24 {offsets = [5, 0], sizes = [1, 64], strides = [1, 1]} : vector<9x64xf32> to vector<1x64xf32>
    %59 = vector.broadcast %58 : vector<1x64xf32> to vector<2x64xf32>
    %60 = arith.mulf %59, %57 : vector<2x64xf32>
    %61 = arith.addf %56, %60 : vector<2x64xf32>
    %62 = vector.extract_strided_slice %30 {offsets = [6, 8], sizes = [2, 64], strides = [1, 1]} : vector<8x82xf32> to vector<2x64xf32>
    %63 = vector.extract_strided_slice %24 {offsets = [6, 0], sizes = [1, 64], strides = [1, 1]} : vector<9x64xf32> to vector<1x64xf32>
    %64 = vector.broadcast %63 : vector<1x64xf32> to vector<2x64xf32>
    %65 = arith.mulf %64, %62 : vector<2x64xf32>
    %66 = arith.addf %61, %65 : vector<2x64xf32>
    %67 = vector.extract_strided_slice %30 {offsets = [4, 9], sizes = [2, 64], strides = [1, 1]} : vector<8x82xf32> to vector<2x64xf32>
    %68 = vector.extract_strided_slice %24 {offsets = [7, 0], sizes = [1, 64], strides = [1, 1]} : vector<9x64xf32> to vector<1x64xf32>
    %69 = vector.broadcast %68 : vector<1x64xf32> to vector<2x64xf32>
    %70 = arith.mulf %69, %67 : vector<2x64xf32>
    %71 = arith.addf %66, %70 : vector<2x64xf32>
    %72 = vector.extract_strided_slice %30 {offsets = [6, 9], sizes = [2, 64], strides = [1, 1]} : vector<8x82xf32> to vector<2x64xf32>
    %73 = vector.extract_strided_slice %24 {offsets = [8, 0], sizes = [1, 64], strides = [1, 1]} : vector<9x64xf32> to vector<1x64xf32>
    %74 = vector.broadcast %73 : vector<1x64xf32> to vector<2x64xf32>
    %75 = arith.mulf %74, %72 : vector<2x64xf32>
    %76 = arith.addf %71, %75 : vector<2x64xf32>
    %c0_25 = arith.constant 0 : index
    %c0_26 = arith.constant 0 : index
    %77 = vector.load %arg8[%c0_25, %c0_26] : memref<2x1xf32, #tpu.memory_space<vmem>>, vector<2x1xf32>
    %78 = vector.broadcast %77 : vector<2x1xf32> to vector<2x64xf32>
    %79 = arith.mulf %76, %78 : vector<2x64xf32>
    %c0_27 = arith.constant 0 : index
    %c0_28 = arith.constant 0 : index
    %80 = vector.load %arg9[%c0_27, %c0_28] : memref<2x1xf32, #tpu.memory_space<vmem>>, vector<2x1xf32>
    %81 = vector.broadcast %80 : vector<2x1xf32> to vector<2x64xf32>
    %82 = arith.addf %79, %81 : vector<2x64xf32>
    %cst_29 = arith.constant 0.000000e+00 : f32
    %83 = vector.broadcast %cst_29 : f32 to vector<2x64xf32>
    %84 = arith.cmpf ogt, %82, %83 : vector<2x64xf32>
    %c0_30 = arith.constant 0 : index
    %c0_31 = arith.constant 0 : index
    %85 = vector.load %arg10[%c0_30, %c0_31] : memref<2x1xf32, #tpu.memory_space<vmem>>, vector<2x1xf32>
    %86 = vector.broadcast %85 : vector<2x1xf32> to vector<2x64xf32>
    %87 = arith.mulf %86, %82 : vector<2x64xf32>
    %88 = arith.select %84, %82, %87 : vector<2x64xi1>, vector<2x64xf32>
    %c0_32 = arith.constant 0 : index
    %c0_33 = arith.constant 0 : index
    %c0_34 = arith.constant 0 : index
    %89 = vector.load %arg11[%c0_32, %c0_33, %c0_34] : memref<1x2x64xf32, #tpu.memory_space<vmem>>, vector<1x2x64xf32>
    %90 = vector.shape_cast %89 : vector<1x2x64xf32> to vector<2x64xf32>
    %91 = vector.shape_cast %88 : vector<2x64xf32> to vector<1x2x64xf32>
    tpu.vector_store %arg11[%c0_32, %c0_33, %c0_34], %91 {strides = array<i32>} : memref<1x2x64xf32, #tpu.memory_space<vmem>>, vector<1x2x64xf32>,
    return
  }
  func.func @transform_0(%arg0: i32) -> (i32, i32, i32) {
    %c0_i32 = arith.constant 0 : i32
    %c0_i32_0 = arith.constant 0 : i32
    %c0_i32_1 = arith.constant 0 : i32
    return %arg0, %c0_i32, %c0_i32_0 : i32, i32, i32
  }
  func.func @transform_1(%arg0: i32) -> (i32, i32) {
    %c0_i32 = arith.constant 0 : i32
    %c0_i32_0 = arith.constant 0 : i32
    %c0_i32_1 = arith.constant 0 : i32
    return %c0_i32, %c0_i32_0 : i32, i32
  }
  func.func @transform_2(%arg0: i32) -> (i32, i32) {
    %c0_i32 = arith.constant 0 : i32
    %c0_i32_0 = arith.constant 0 : i32
    %c0_i32_1 = arith.constant 0 : i32
    return %c0_i32, %c0_i32_0 : i32, i32
  }
  func.func @transform_3(%arg0: i32) -> (i32, i32) {
    %c0_i32 = arith.constant 0 : i32
    %c0_i32_0 = arith.constant 0 : i32
    %c0_i32_1 = arith.constant 0 : i32
    return %c0_i32, %c0_i32_0 : i32, i32
  }
  func.func @transform_4(%arg0: i32) -> (i32, i32) {
    %c0_i32 = arith.constant 0 : i32
    %c0_i32_0 = arith.constant 0 : i32
    %c0_i32_1 = arith.constant 0 : i32
    return %c0_i32, %c0_i32_0 : i32, i32
  }
  func.func @transform_5(%arg0: i32) -> (i32, i32) {
    %c0_i32 = arith.constant 0 : i32
    %c0_i32_0 = arith.constant 0 : i32
    %c0_i32_1 = arith.constant 0 : i32
    return %c0_i32, %c0_i32_0 : i32, i32
  }
  func.func @transform_6(%arg0: i32) -> (i32, i32) {
    %c0_i32 = arith.constant 0 : i32
    %c0_i32_0 = arith.constant 0 : i32
    %c0_i32_1 = arith.constant 0 : i32
    return %c0_i32, %c0_i32_0 : i32, i32
  }
  func.func @transform_7(%arg0: i32) -> (i32, i32) {
    %c0_i32 = arith.constant 0 : i32
    %c0_i32_0 = arith.constant 0 : i32
    %c0_i32_1 = arith.constant 0 : i32
    return %c0_i32, %c0_i32_0 : i32, i32
  }
  func.func @transform_8(%arg0: i32) -> (i32, i32) {
    %c0_i32 = arith.constant 0 : i32
    %c0_i32_0 = arith.constant 0 : i32
    %c0_i32_1 = arith.constant 0 : i32
    return %c0_i32, %c0_i32_0 : i32, i32
  }
  func.func @transform_9(%arg0: i32) -> (i32, i32) {
    %c0_i32 = arith.constant 0 : i32
    %c0_i32_0 = arith.constant 0 : i32
    %c0_i32_1 = arith.constant 0 : i32
    return %c0_i32, %c0_i32_0 : i32, i32
  }
  func.func @transform_10(%arg0: i32) -> (i32, i32, i32) {
    %c0_i32 = arith.constant 0 : i32
    %c0_i32_0 = arith.constant 0 : i32
    %c0_i32_1 = arith.constant 0 : i32
    return %arg0, %c0_i32, %c0_i32_0 : i32, i32, i32
  }
}

module attributes {stable_mosaic.version = 11 : i64} {
  func.func @_branches_kernel(%arg0: i32, %arg1: memref<1x2x64xf32, #tpu.memory_space<vmem>>, %arg2: memref<20x2xf32, #tpu.memory_space<vmem>>, %arg3: memref<20x1xf32, #tpu.memory_space<vmem>>, %arg4: memref<20x1xf32, #tpu.memory_space<vmem>>, %arg5: memref<45x20xf32, #tpu.memory_space<vmem>>, %arg6: memref<45x64xf32, #tpu.memory_space<vmem>>, %arg7: memref<20x2xf32, #tpu.memory_space<vmem>>, %arg8: memref<12x1xf32, #tpu.memory_space<vmem>>, %arg9: memref<12x1xf32, #tpu.memory_space<vmem>>, %arg10: memref<12x1xf32, #tpu.memory_space<vmem>>, %arg11: memref<12x1xf32, #tpu.memory_space<vmem>>, %arg12: memref<12x1xf32, #tpu.memory_space<vmem>>, %arg13: memref<12x1xf32, #tpu.memory_space<vmem>>, %arg14: memref<1x12x64xf32, #tpu.memory_space<vmem>>, %arg15: memref<4x136xf32, #tpu.memory_space<vmem>>) attributes {dimension_semantics = [#tpu.dimension_semantics<parallel>], iteration_bounds = array<i64: 2>, scalar_prefetch = 0 : i64, scratch_operands = 1 : i64, tpu.core_type = #tpu.core_type<tc>, window_params = [{transform_indices = @transform_0, window_bounds = array<i64: 1, 2, 64>}, {pipeline_mode = #tpu.pipeline_mode<synchronous>, transform_indices = @transform_1, window_bounds = array<i64: 20, 2>}, {pipeline_mode = #tpu.pipeline_mode<synchronous>, transform_indices = @transform_2, window_bounds = array<i64: 20, 1>}, {pipeline_mode = #tpu.pipeline_mode<synchronous>, transform_indices = @transform_3, window_bounds = array<i64: 20, 1>}, {pipeline_mode = #tpu.pipeline_mode<synchronous>, transform_indices = @transform_4, window_bounds = array<i64: 45, 20>}, {pipeline_mode = #tpu.pipeline_mode<synchronous>, transform_indices = @transform_5, window_bounds = array<i64: 45, 64>}, {pipeline_mode = #tpu.pipeline_mode<synchronous>, transform_indices = @transform_6, window_bounds = array<i64: 20, 2>}, {pipeline_mode = #tpu.pipeline_mode<synchronous>, transform_indices = @transform_7, window_bounds = array<i64: 12, 1>}, {pipeline_mode = #tpu.pipeline_mode<synchronous>, transform_indices = @transform_8, window_bounds = array<i64: 12, 1>}, {pipeline_mode = #tpu.pipeline_mode<synchronous>, transform_indices = @transform_9, window_bounds = array<i64: 12, 1>}, {pipeline_mode = #tpu.pipeline_mode<synchronous>, transform_indices = @transform_10, window_bounds = array<i64: 12, 1>}, {pipeline_mode = #tpu.pipeline_mode<synchronous>, transform_indices = @transform_11, window_bounds = array<i64: 12, 1>}, {pipeline_mode = #tpu.pipeline_mode<synchronous>, transform_indices = @transform_12, window_bounds = array<i64: 12, 1>}, {transform_indices = @transform_13, window_bounds = array<i64: 1, 12, 64>}]} {
    %c0 = arith.constant 0 : index
    %c0_0 = arith.constant 0 : index
    %c0_1 = arith.constant 0 : index
    %0 = vector.load %arg1[%c0, %c0_0, %c0_1] : memref<1x2x64xf32, #tpu.memory_space<vmem>>, vector<1x2x64xf32>
    %1 = vector.shape_cast %0 : vector<1x2x64xf32> to vector<2x64xf32>
    %c0_2 = arith.constant 0 : index
    %c0_3 = arith.constant 0 : index
    %2 = vector.load %arg2[%c0_2, %c0_3] : memref<20x2xf32, #tpu.memory_space<vmem>>, vector<20x2xf32>
    %cst = arith.constant dense<0.000000e+00> : vector<20x64xf32>
    %3 = tpu.matmul %2, %1, %cst {dimension_numbers = #tpu.dot_dimension_numbers<[1], [0], [0], [1], [0, 0, 1, 1], [], []>} : vector<20x2xf32>, vector<2x64xf32>, vector<20x64xf32> -> vector<20x64xf32>
    %c0_4 = arith.constant 0 : index
    %c0_5 = arith.constant 0 : index
    %4 = vector.load %arg3[%c0_4, %c0_5] : memref<20x1xf32, #tpu.memory_space<vmem>>, vector<20x1xf32>
    %5 = vector.broadcast %4 : vector<20x1xf32> to vector<20x64xf32>
    %6 = arith.mulf %3, %5 : vector<20x64xf32>
    %c0_6 = arith.constant 0 : index
    %c0_7 = arith.constant 0 : index
    %7 = vector.load %arg4[%c0_6, %c0_7] : memref<20x1xf32, #tpu.memory_space<vmem>>, vector<20x1xf32>
    %8 = vector.broadcast %7 : vector<20x1xf32> to vector<20x64xf32>
    %9 = arith.addf %6, %8 : vector<20x64xf32>
    %cst_8 = arith.constant 0.000000e+00 : f32
    %10 = vector.broadcast %cst_8 : f32 to vector<20x64xf32>
    %11 = arith.maximumf %9, %10 : vector<20x64xf32>
    %c0_9 = arith.constant 0 : index
    %c0_10 = arith.constant 0 : index
    %12 = vector.load %arg5[%c0_9, %c0_10] : memref<45x20xf32, #tpu.memory_space<vmem>>, vector<45x20xf32>
    %cst_11 = arith.constant dense<0.000000e+00> : vector<45x64xf32>
    %13 = tpu.matmul %12, %11, %cst_11 {dimension_numbers = #tpu.dot_dimension_numbers<[1], [0], [0], [1], [0, 0, 1, 1], [], []>} : vector<45x20xf32>, vector<20x64xf32>, vector<45x64xf32> -> vector<45x64xf32>
    %c0_12 = arith.constant 0 : index
    %c0_13 = arith.constant 0 : index
    %14 = vector.load %arg6[%c0_12, %c0_13] : memref<45x64xf32, #tpu.memory_space<vmem>>, vector<45x64xf32>
    %15 = arith.mulf %13, %14 : vector<45x64xf32>
    %c0_14 = arith.constant 0 : index
    %c0_15 = arith.constant 0 : index
    %16 = vector.load %arg7[%c0_14, %c0_15] : memref<20x2xf32, #tpu.memory_space<vmem>>, vector<20x2xf32>
    %cst_16 = arith.constant dense<0.000000e+00> : vector<20x64xf32>
    %17 = tpu.matmul %16, %1, %cst_16 {dimension_numbers = #tpu.dot_dimension_numbers<[1], [0], [0], [1], [0, 0, 1, 1], [], []>} : vector<20x2xf32>, vector<2x64xf32>, vector<20x64xf32> -> vector<20x64xf32>
    %cst_17 = arith.constant 0.000000e+00 : f32
    %18 = vector.broadcast %cst_17 : f32 to vector<4x136xf32>
    %c0_18 = arith.constant 0 : index
    %c0_19 = arith.constant 0 : index
    %19 = vector.load %arg15[%c0_18, %c0_19] : memref<4x136xf32, #tpu.memory_space<vmem>>, vector<4x136xf32>
    tpu.vector_store %arg15[%c0_18, %c0_19], %18 {strides = array<i32>} : memref<4x136xf32, #tpu.memory_space<vmem>>, vector<4x136xf32>,
    %20 = vector.extract_strided_slice %17 {offsets = [0, 0], sizes = [4, 64], strides = [1, 1]} : vector<20x64xf32> to vector<4x64xf32>
    %c0_20 = arith.constant 0 : index
    %c36 = arith.constant 36 : index
    %21 = vector.load %arg15[%c0_20, %c36] : memref<4x136xf32, #tpu.memory_space<vmem>>, vector<4x64xf32>
    tpu.vector_store %arg15[%c0_20, %c36], %20 {strides = array<i32>} : memref<4x136xf32, #tpu.memory_space<vmem>>, vector<4x64xf32>,
    %c0_21 = arith.constant 0 : index
    %c0_22 = arith.constant 0 : index
    %22 = vector.load %arg15[%c0_21, %c0_22] : memref<4x136xf32, #tpu.memory_space<vmem>>, vector<4x136xf32>
    %cst_23 = arith.constant 0.000000e+00 : f32
    %23 = vector.broadcast %cst_23 : f32 to vector<4x64xf32>
    %24 = vector.extract_strided_slice %22 {offsets = [0, 27], sizes = [4, 64], strides = [1, 1]} : vector<4x136xf32> to vector<4x64xf32>
    %25 = vector.extract_strided_slice %15 {offsets = [0, 0], sizes = [1, 64], strides = [1, 1]} : vector<45x64xf32> to vector<1x64xf32>
    %26 = vector.broadcast %25 : vector<1x64xf32> to vector<4x64xf32>
    %27 = arith.mulf %26, %24 : vector<4x64xf32>
    %28 = arith.addf %23, %27 : vector<4x64xf32>
    %29 = vector.extract_strided_slice %22 {offsets = [0, 28], sizes = [4, 64], strides = [1, 1]} : vector<4x136xf32> to vector<4x64xf32>
    %30 = vector.extract_strided_slice %15 {offsets = [1, 0], sizes = [1, 64], strides = [1, 1]} : vector<45x64xf32> to vector<1x64xf32>
    %31 = vector.broadcast %30 : vector<1x64xf32> to vector<4x64xf32>
    %32 = arith.mulf %31, %29 : vector<4x64xf32>
    %33 = arith.addf %28, %32 : vector<4x64xf32>
    %34 = vector.extract_strided_slice %22 {offsets = [0, 29], sizes = [4, 64], strides = [1, 1]} : vector<4x136xf32> to vector<4x64xf32>
    %35 = vector.extract_strided_slice %15 {offsets = [2, 0], sizes = [1, 64], strides = [1, 1]} : vector<45x64xf32> to vector<1x64xf32>
    %36 = vector.broadcast %35 : vector<1x64xf32> to vector<4x64xf32>
    %37 = arith.mulf %36, %34 : vector<4x64xf32>
    %38 = arith.addf %33, %37 : vector<4x64xf32>
    %39 = vector.extract_strided_slice %22 {offsets = [0, 35], sizes = [4, 64], strides = [1, 1]} : vector<4x136xf32> to vector<4x64xf32>
    %40 = vector.extract_strided_slice %15 {offsets = [3, 0], sizes = [1, 64], strides = [1, 1]} : vector<45x64xf32> to vector<1x64xf32>
    %41 = vector.broadcast %40 : vector<1x64xf32> to vector<4x64xf32>
    %42 = arith.mulf %41, %39 : vector<4x64xf32>
    %43 = arith.addf %38, %42 : vector<4x64xf32>
    %44 = vector.extract_strided_slice %22 {offsets = [0, 36], sizes = [4, 64], strides = [1, 1]} : vector<4x136xf32> to vector<4x64xf32>
    %45 = vector.extract_strided_slice %15 {offsets = [4, 0], sizes = [1, 64], strides = [1, 1]} : vector<45x64xf32> to vector<1x64xf32>
    %46 = vector.broadcast %45 : vector<1x64xf32> to vector<4x64xf32>
    %47 = arith.mulf %46, %44 : vector<4x64xf32>
    %48 = arith.addf %43, %47 : vector<4x64xf32>
    %49 = vector.extract_strided_slice %22 {offsets = [0, 37], sizes = [4, 64], strides = [1, 1]} : vector<4x136xf32> to vector<4x64xf32>
    %50 = vector.extract_strided_slice %15 {offsets = [5, 0], sizes = [1, 64], strides = [1, 1]} : vector<45x64xf32> to vector<1x64xf32>
    %51 = vector.broadcast %50 : vector<1x64xf32> to vector<4x64xf32>
    %52 = arith.mulf %51, %49 : vector<4x64xf32>
    %53 = arith.addf %48, %52 : vector<4x64xf32>
    %54 = vector.extract_strided_slice %22 {offsets = [0, 43], sizes = [4, 64], strides = [1, 1]} : vector<4x136xf32> to vector<4x64xf32>
    %55 = vector.extract_strided_slice %15 {offsets = [6, 0], sizes = [1, 64], strides = [1, 1]} : vector<45x64xf32> to vector<1x64xf32>
    %56 = vector.broadcast %55 : vector<1x64xf32> to vector<4x64xf32>
    %57 = arith.mulf %56, %54 : vector<4x64xf32>
    %58 = arith.addf %53, %57 : vector<4x64xf32>
    %59 = vector.extract_strided_slice %22 {offsets = [0, 44], sizes = [4, 64], strides = [1, 1]} : vector<4x136xf32> to vector<4x64xf32>
    %60 = vector.extract_strided_slice %15 {offsets = [7, 0], sizes = [1, 64], strides = [1, 1]} : vector<45x64xf32> to vector<1x64xf32>
    %61 = vector.broadcast %60 : vector<1x64xf32> to vector<4x64xf32>
    %62 = arith.mulf %61, %59 : vector<4x64xf32>
    %63 = arith.addf %58, %62 : vector<4x64xf32>
    %64 = vector.extract_strided_slice %22 {offsets = [0, 45], sizes = [4, 64], strides = [1, 1]} : vector<4x136xf32> to vector<4x64xf32>
    %65 = vector.extract_strided_slice %15 {offsets = [8, 0], sizes = [1, 64], strides = [1, 1]} : vector<45x64xf32> to vector<1x64xf32>
    %66 = vector.broadcast %65 : vector<1x64xf32> to vector<4x64xf32>
    %67 = arith.mulf %66, %64 : vector<4x64xf32>
    %68 = arith.addf %63, %67 : vector<4x64xf32>
    %c0_24 = arith.constant 0 : index
    %c0_25 = arith.constant 0 : index
    %69 = vector.load %arg8[%c0_24, %c0_25] : memref<12x1xf32, #tpu.memory_space<vmem>>, vector<4x1xf32>
    %70 = vector.broadcast %69 : vector<4x1xf32> to vector<4x64xf32>
    %71 = arith.mulf %68, %70 : vector<4x64xf32>
    %c0_26 = arith.constant 0 : index
    %c0_27 = arith.constant 0 : index
    %72 = vector.load %arg9[%c0_26, %c0_27] : memref<12x1xf32, #tpu.memory_space<vmem>>, vector<4x1xf32>
    %73 = vector.broadcast %72 : vector<4x1xf32> to vector<4x64xf32>
    %74 = arith.addf %71, %73 : vector<4x64xf32>
    %cst_28 = arith.constant 0.000000e+00 : f32
    %75 = vector.broadcast %cst_28 : f32 to vector<4x64xf32>
    %76 = arith.cmpf ogt, %74, %75 : vector<4x64xf32>
    %c0_29 = arith.constant 0 : index
    %c0_30 = arith.constant 0 : index
    %77 = vector.load %arg10[%c0_29, %c0_30] : memref<12x1xf32, #tpu.memory_space<vmem>>, vector<4x1xf32>
    %78 = vector.broadcast %77 : vector<4x1xf32> to vector<4x64xf32>
    %79 = arith.mulf %78, %74 : vector<4x64xf32>
    %80 = arith.select %76, %74, %79 : vector<4x64xi1>, vector<4x64xf32>
    %c0_31 = arith.constant 0 : index
    %c0_32 = arith.constant 0 : index
    %81 = vector.load %arg11[%c0_31, %c0_32] : memref<12x1xf32, #tpu.memory_space<vmem>>, vector<4x1xf32>
    %82 = vector.broadcast %81 : vector<4x1xf32> to vector<4x64xf32>
    %83 = arith.mulf %80, %82 : vector<4x64xf32>
    %c0_33 = arith.constant 0 : index
    %c0_34 = arith.constant 0 : index
    %84 = vector.load %arg12[%c0_33, %c0_34] : memref<12x1xf32, #tpu.memory_space<vmem>>, vector<4x1xf32>
    %85 = vector.broadcast %84 : vector<4x1xf32> to vector<4x64xf32>
    %86 = arith.addf %83, %85 : vector<4x64xf32>
    %cst_35 = arith.constant 0.000000e+00 : f32
    %87 = vector.broadcast %cst_35 : f32 to vector<4x64xf32>
    %88 = arith.cmpf ogt, %86, %87 : vector<4x64xf32>
    %c0_36 = arith.constant 0 : index
    %c0_37 = arith.constant 0 : index
    %89 = vector.load %arg13[%c0_36, %c0_37] : memref<12x1xf32, #tpu.memory_space<vmem>>, vector<4x1xf32>
    %90 = vector.broadcast %89 : vector<4x1xf32> to vector<4x64xf32>
    %91 = arith.mulf %90, %86 : vector<4x64xf32>
    %92 = arith.select %88, %86, %91 : vector<4x64xi1>, vector<4x64xf32>
    %c0_38 = arith.constant 0 : index
    %c0_39 = arith.constant 0 : index
    %c0_40 = arith.constant 0 : index
    %93 = vector.load %arg14[%c0_38, %c0_39, %c0_40] : memref<1x12x64xf32, #tpu.memory_space<vmem>>, vector<1x4x64xf32>
    %94 = vector.shape_cast %93 : vector<1x4x64xf32> to vector<4x64xf32>
    %95 = vector.shape_cast %92 : vector<4x64xf32> to vector<1x4x64xf32>
    tpu.vector_store %arg14[%c0_38, %c0_39, %c0_40], %95 {strides = array<i32>} : memref<1x12x64xf32, #tpu.memory_space<vmem>>, vector<1x4x64xf32>,
    %96 = vector.extract_strided_slice %17 {offsets = [4, 0], sizes = [4, 64], strides = [1, 1]} : vector<20x64xf32> to vector<4x64xf32>
    %c0_41 = arith.constant 0 : index
    %c36_42 = arith.constant 36 : index
    %97 = vector.load %arg15[%c0_41, %c36_42] : memref<4x136xf32, #tpu.memory_space<vmem>>, vector<4x64xf32>
    tpu.vector_store %arg15[%c0_41, %c36_42], %96 {strides = array<i32>} : memref<4x136xf32, #tpu.memory_space<vmem>>, vector<4x64xf32>,
    %c0_43 = arith.constant 0 : index
    %c0_44 = arith.constant 0 : index
    %98 = vector.load %arg15[%c0_43, %c0_44] : memref<4x136xf32, #tpu.memory_space<vmem>>, vector<4x136xf32>
    %cst_45 = arith.constant 0.000000e+00 : f32
    %99 = vector.broadcast %cst_45 : f32 to vector<4x64xf32>
    %100 = vector.extract_strided_slice %98 {offsets = [0, 18], sizes = [4, 64], strides = [1, 1]} : vector<4x136xf32> to vector<4x64xf32>
    %101 = vector.extract_strided_slice %15 {offsets = [9, 0], sizes = [1, 64], strides = [1, 1]} : vector<45x64xf32> to vector<1x64xf32>
    %102 = vector.broadcast %101 : vector<1x64xf32> to vector<4x64xf32>
    %103 = arith.mulf %102, %100 : vector<4x64xf32>
    %104 = arith.addf %99, %103 : vector<4x64xf32>
    %105 = vector.extract_strided_slice %98 {offsets = [0, 20], sizes = [4, 64], strides = [1, 1]} : vector<4x136xf32> to vector<4x64xf32>
    %106 = vector.extract_strided_slice %15 {offsets = [10, 0], sizes = [1, 64], strides = [1, 1]} : vector<45x64xf32> to vector<1x64xf32>
    %107 = vector.broadcast %106 : vector<1x64xf32> to vector<4x64xf32>
    %108 = arith.mulf %107, %105 : vector<4x64xf32>
    %109 = arith.addf %104, %108 : vector<4x64xf32>
    %110 = vector.extract_strided_slice %98 {offsets = [0, 22], sizes = [4, 64], strides = [1, 1]} : vector<4x136xf32> to vector<4x64xf32>
    %111 = vector.extract_strided_slice %15 {offsets = [11, 0], sizes = [1, 64], strides = [1, 1]} : vector<45x64xf32> to vector<1x64xf32>
    %112 = vector.broadcast %111 : vector<1x64xf32> to vector<4x64xf32>
    %113 = arith.mulf %112, %110 : vector<4x64xf32>
    %114 = arith.addf %109, %113 : vector<4x64xf32>
    %115 = vector.extract_strided_slice %98 {offsets = [0, 34], sizes = [4, 64], strides = [1, 1]} : vector<4x136xf32> to vector<4x64xf32>
    %116 = vector.extract_strided_slice %15 {offsets = [12, 0], sizes = [1, 64], strides = [1, 1]} : vector<45x64xf32> to vector<1x64xf32>
    %117 = vector.broadcast %116 : vector<1x64xf32> to vector<4x64xf32>
    %118 = arith.mulf %117, %115 : vector<4x64xf32>
    %119 = arith.addf %114, %118 : vector<4x64xf32>
    %120 = vector.extract_strided_slice %98 {offsets = [0, 36], sizes = [4, 64], strides = [1, 1]} : vector<4x136xf32> to vector<4x64xf32>
    %121 = vector.extract_strided_slice %15 {offsets = [13, 0], sizes = [1, 64], strides = [1, 1]} : vector<45x64xf32> to vector<1x64xf32>
    %122 = vector.broadcast %121 : vector<1x64xf32> to vector<4x64xf32>
    %123 = arith.mulf %122, %120 : vector<4x64xf32>
    %124 = arith.addf %119, %123 : vector<4x64xf32>
    %125 = vector.extract_strided_slice %98 {offsets = [0, 38], sizes = [4, 64], strides = [1, 1]} : vector<4x136xf32> to vector<4x64xf32>
    %126 = vector.extract_strided_slice %15 {offsets = [14, 0], sizes = [1, 64], strides = [1, 1]} : vector<45x64xf32> to vector<1x64xf32>
    %127 = vector.broadcast %126 : vector<1x64xf32> to vector<4x64xf32>
    %128 = arith.mulf %127, %125 : vector<4x64xf32>
    %129 = arith.addf %124, %128 : vector<4x64xf32>
    %130 = vector.extract_strided_slice %98 {offsets = [0, 50], sizes = [4, 64], strides = [1, 1]} : vector<4x136xf32> to vector<4x64xf32>
    %131 = vector.extract_strided_slice %15 {offsets = [15, 0], sizes = [1, 64], strides = [1, 1]} : vector<45x64xf32> to vector<1x64xf32>
    %132 = vector.broadcast %131 : vector<1x64xf32> to vector<4x64xf32>
    %133 = arith.mulf %132, %130 : vector<4x64xf32>
    %134 = arith.addf %129, %133 : vector<4x64xf32>
    %135 = vector.extract_strided_slice %98 {offsets = [0, 52], sizes = [4, 64], strides = [1, 1]} : vector<4x136xf32> to vector<4x64xf32>
    %136 = vector.extract_strided_slice %15 {offsets = [16, 0], sizes = [1, 64], strides = [1, 1]} : vector<45x64xf32> to vector<1x64xf32>
    %137 = vector.broadcast %136 : vector<1x64xf32> to vector<4x64xf32>
    %138 = arith.mulf %137, %135 : vector<4x64xf32>
    %139 = arith.addf %134, %138 : vector<4x64xf32>
    %140 = vector.extract_strided_slice %98 {offsets = [0, 54], sizes = [4, 64], strides = [1, 1]} : vector<4x136xf32> to vector<4x64xf32>
    %141 = vector.extract_strided_slice %15 {offsets = [17, 0], sizes = [1, 64], strides = [1, 1]} : vector<45x64xf32> to vector<1x64xf32>
    %142 = vector.broadcast %141 : vector<1x64xf32> to vector<4x64xf32>
    %143 = arith.mulf %142, %140 : vector<4x64xf32>
    %144 = arith.addf %139, %143 : vector<4x64xf32>
    %145 = vector.extract_strided_slice %144 {offsets = [0, 0], sizes = [2, 64], strides = [1, 1]} : vector<4x64xf32> to vector<2x64xf32>
    %c4 = arith.constant 4 : index
    %c0_46 = arith.constant 0 : index
    %146 = vector.load %arg8[%c4, %c0_46] : memref<12x1xf32, #tpu.memory_space<vmem>>, vector<2x1xf32>
    %147 = vector.broadcast %146 : vector<2x1xf32> to vector<2x64xf32>
    %148 = arith.mulf %145, %147 : vector<2x64xf32>
    %c4_47 = arith.constant 4 : index
    %c0_48 = arith.constant 0 : index
    %149 = vector.load %arg9[%c4_47, %c0_48] : memref<12x1xf32, #tpu.memory_space<vmem>>, vector<2x1xf32>
    %150 = vector.broadcast %149 : vector<2x1xf32> to vector<2x64xf32>
    %151 = arith.addf %148, %150 : vector<2x64xf32>
    %cst_49 = arith.constant 0.000000e+00 : f32
    %152 = vector.broadcast %cst_49 : f32 to vector<2x64xf32>
    %153 = arith.cmpf ogt, %151, %152 : vector<2x64xf32>
    %c4_50 = arith.constant 4 : index
    %c0_51 = arith.constant 0 : index
    %154 = vector.load %arg10[%c4_50, %c0_51] : memref<12x1xf32, #tpu.memory_space<vmem>>, vector<2x1xf32>
    %155 = vector.broadcast %154 : vector<2x1xf32> to vector<2x64xf32>
    %156 = arith.mulf %155, %151 : vector<2x64xf32>
    %157 = arith.select %153, %151, %156 : vector<2x64xi1>, vector<2x64xf32>
    %c4_52 = arith.constant 4 : index
    %c0_53 = arith.constant 0 : index
    %158 = vector.load %arg11[%c4_52, %c0_53] : memref<12x1xf32, #tpu.memory_space<vmem>>, vector<2x1xf32>
    %159 = vector.broadcast %158 : vector<2x1xf32> to vector<2x64xf32>
    %160 = arith.mulf %157, %159 : vector<2x64xf32>
    %c4_54 = arith.constant 4 : index
    %c0_55 = arith.constant 0 : index
    %161 = vector.load %arg12[%c4_54, %c0_55] : memref<12x1xf32, #tpu.memory_space<vmem>>, vector<2x1xf32>
    %162 = vector.broadcast %161 : vector<2x1xf32> to vector<2x64xf32>
    %163 = arith.addf %160, %162 : vector<2x64xf32>
    %cst_56 = arith.constant 0.000000e+00 : f32
    %164 = vector.broadcast %cst_56 : f32 to vector<2x64xf32>
    %165 = arith.cmpf ogt, %163, %164 : vector<2x64xf32>
    %c4_57 = arith.constant 4 : index
    %c0_58 = arith.constant 0 : index
    %166 = vector.load %arg13[%c4_57, %c0_58] : memref<12x1xf32, #tpu.memory_space<vmem>>, vector<2x1xf32>
    %167 = vector.broadcast %166 : vector<2x1xf32> to vector<2x64xf32>
    %168 = arith.mulf %167, %163 : vector<2x64xf32>
    %169 = arith.select %165, %163, %168 : vector<2x64xi1>, vector<2x64xf32>
    %c0_59 = arith.constant 0 : index
    %c4_60 = arith.constant 4 : index
    %c0_61 = arith.constant 0 : index
    %170 = vector.load %arg14[%c0_59, %c4_60, %c0_61] : memref<1x12x64xf32, #tpu.memory_space<vmem>>, vector<1x2x64xf32>
    %171 = vector.shape_cast %170 : vector<1x2x64xf32> to vector<2x64xf32>
    %172 = vector.shape_cast %169 : vector<2x64xf32> to vector<1x2x64xf32>
    tpu.vector_store %arg14[%c0_59, %c4_60, %c0_61], %172 {strides = array<i32>} : memref<1x12x64xf32, #tpu.memory_space<vmem>>, vector<1x2x64xf32>,
    %173 = vector.extract_strided_slice %17 {offsets = [8, 0], sizes = [4, 64], strides = [1, 1]} : vector<20x64xf32> to vector<4x64xf32>
    %c0_62 = arith.constant 0 : index
    %c36_63 = arith.constant 36 : index
    %174 = vector.load %arg15[%c0_62, %c36_63] : memref<4x136xf32, #tpu.memory_space<vmem>>, vector<4x64xf32>
    tpu.vector_store %arg15[%c0_62, %c36_63], %173 {strides = array<i32>} : memref<4x136xf32, #tpu.memory_space<vmem>>, vector<4x64xf32>,
    %c0_64 = arith.constant 0 : index
    %c0_65 = arith.constant 0 : index
    %175 = vector.load %arg15[%c0_64, %c0_65] : memref<4x136xf32, #tpu.memory_space<vmem>>, vector<4x136xf32>
    %cst_66 = arith.constant 0.000000e+00 : f32
    %176 = vector.broadcast %cst_66 : f32 to vector<4x64xf32>
    %177 = vector.extract_strided_slice %175 {offsets = [0, 0], sizes = [4, 64], strides = [1, 1]} : vector<4x136xf32> to vector<4x64xf32>
    %178 = vector.extract_strided_slice %15 {offsets = [18, 0], sizes = [1, 64], strides = [1, 1]} : vector<45x64xf32> to vector<1x64xf32>
    %179 = vector.broadcast %178 : vector<1x64xf32> to vector<4x64xf32>
    %180 = arith.mulf %179, %177 : vector<4x64xf32>
    %181 = arith.addf %176, %180 : vector<4x64xf32>
    %182 = vector.extract_strided_slice %175 {offsets = [0, 4], sizes = [4, 64], strides = [1, 1]} : vector<4x136xf32> to vector<4x64xf32>
    %183 = vector.extract_strided_slice %15 {offsets = [19, 0], sizes = [1, 64], strides = [1, 1]} : vector<45x64xf32> to vector<1x64xf32>
    %184 = vector.broadcast %183 : vector<1x64xf32> to vector<4x64xf32>
    %185 = arith.mulf %184, %182 : vector<4x64xf32>
    %186 = arith.addf %181, %185 : vector<4x64xf32>
    %187 = vector.extract_strided_slice %175 {offsets = [0, 8], sizes = [4, 64], strides = [1, 1]} : vector<4x136xf32> to vector<4x64xf32>
    %188 = vector.extract_strided_slice %15 {offsets = [20, 0], sizes = [1, 64], strides = [1, 1]} : vector<45x64xf32> to vector<1x64xf32>
    %189 = vector.broadcast %188 : vector<1x64xf32> to vector<4x64xf32>
    %190 = arith.mulf %189, %187 : vector<4x64xf32>
    %191 = arith.addf %186, %190 : vector<4x64xf32>
    %192 = vector.extract_strided_slice %175 {offsets = [0, 32], sizes = [4, 64], strides = [1, 1]} : vector<4x136xf32> to vector<4x64xf32>
    %193 = vector.extract_strided_slice %15 {offsets = [21, 0], sizes = [1, 64], strides = [1, 1]} : vector<45x64xf32> to vector<1x64xf32>
    %194 = vector.broadcast %193 : vector<1x64xf32> to vector<4x64xf32>
    %195 = arith.mulf %194, %192 : vector<4x64xf32>
    %196 = arith.addf %191, %195 : vector<4x64xf32>
    %197 = vector.extract_strided_slice %175 {offsets = [0, 36], sizes = [4, 64], strides = [1, 1]} : vector<4x136xf32> to vector<4x64xf32>
    %198 = vector.extract_strided_slice %15 {offsets = [22, 0], sizes = [1, 64], strides = [1, 1]} : vector<45x64xf32> to vector<1x64xf32>
    %199 = vector.broadcast %198 : vector<1x64xf32> to vector<4x64xf32>
    %200 = arith.mulf %199, %197 : vector<4x64xf32>
    %201 = arith.addf %196, %200 : vector<4x64xf32>
    %202 = vector.extract_strided_slice %175 {offsets = [0, 40], sizes = [4, 64], strides = [1, 1]} : vector<4x136xf32> to vector<4x64xf32>
    %203 = vector.extract_strided_slice %15 {offsets = [23, 0], sizes = [1, 64], strides = [1, 1]} : vector<45x64xf32> to vector<1x64xf32>
    %204 = vector.broadcast %203 : vector<1x64xf32> to vector<4x64xf32>
    %205 = arith.mulf %204, %202 : vector<4x64xf32>
    %206 = arith.addf %201, %205 : vector<4x64xf32>
    %207 = vector.extract_strided_slice %175 {offsets = [0, 64], sizes = [4, 64], strides = [1, 1]} : vector<4x136xf32> to vector<4x64xf32>
    %208 = vector.extract_strided_slice %15 {offsets = [24, 0], sizes = [1, 64], strides = [1, 1]} : vector<45x64xf32> to vector<1x64xf32>
    %209 = vector.broadcast %208 : vector<1x64xf32> to vector<4x64xf32>
    %210 = arith.mulf %209, %207 : vector<4x64xf32>
    %211 = arith.addf %206, %210 : vector<4x64xf32>
    %212 = vector.extract_strided_slice %175 {offsets = [0, 68], sizes = [4, 64], strides = [1, 1]} : vector<4x136xf32> to vector<4x64xf32>
    %213 = vector.extract_strided_slice %15 {offsets = [25, 0], sizes = [1, 64], strides = [1, 1]} : vector<45x64xf32> to vector<1x64xf32>
    %214 = vector.broadcast %213 : vector<1x64xf32> to vector<4x64xf32>
    %215 = arith.mulf %214, %212 : vector<4x64xf32>
    %216 = arith.addf %211, %215 : vector<4x64xf32>
    %217 = vector.extract_strided_slice %175 {offsets = [0, 72], sizes = [4, 64], strides = [1, 1]} : vector<4x136xf32> to vector<4x64xf32>
    %218 = vector.extract_strided_slice %15 {offsets = [26, 0], sizes = [1, 64], strides = [1, 1]} : vector<45x64xf32> to vector<1x64xf32>
    %219 = vector.broadcast %218 : vector<1x64xf32> to vector<4x64xf32>
    %220 = arith.mulf %219, %217 : vector<4x64xf32>
    %221 = arith.addf %216, %220 : vector<4x64xf32>
    %222 = vector.extract_strided_slice %221 {offsets = [0, 0], sizes = [2, 64], strides = [1, 1]} : vector<4x64xf32> to vector<2x64xf32>
    %c6 = arith.constant 6 : index
    %c0_67 = arith.constant 0 : index
    %223 = vector.load %arg8[%c6, %c0_67] : memref<12x1xf32, #tpu.memory_space<vmem>>, vector<2x1xf32>
    %224 = vector.broadcast %223 : vector<2x1xf32> to vector<2x64xf32>
    %225 = arith.mulf %222, %224 : vector<2x64xf32>
    %c6_68 = arith.constant 6 : index
    %c0_69 = arith.constant 0 : index
    %226 = vector.load %arg9[%c6_68, %c0_69] : memref<12x1xf32, #tpu.memory_space<vmem>>, vector<2x1xf32>
    %227 = vector.broadcast %226 : vector<2x1xf32> to vector<2x64xf32>
    %228 = arith.addf %225, %227 : vector<2x64xf32>
    %cst_70 = arith.constant 0.000000e+00 : f32
    %229 = vector.broadcast %cst_70 : f32 to vector<2x64xf32>
    %230 = arith.cmpf ogt, %228, %229 : vector<2x64xf32>
    %c6_71 = arith.constant 6 : index
    %c0_72 = arith.constant 0 : index
    %231 = vector.load %arg10[%c6_71, %c0_72] : memref<12x1xf32, #tpu.memory_space<vmem>>, vector<2x1xf32>
    %232 = vector.broadcast %231 : vector<2x1xf32> to vector<2x64xf32>
    %233 = arith.mulf %232, %228 : vector<2x64xf32>
    %234 = arith.select %230, %228, %233 : vector<2x64xi1>, vector<2x64xf32>
    %c6_73 = arith.constant 6 : index
    %c0_74 = arith.constant 0 : index
    %235 = vector.load %arg11[%c6_73, %c0_74] : memref<12x1xf32, #tpu.memory_space<vmem>>, vector<2x1xf32>
    %236 = vector.broadcast %235 : vector<2x1xf32> to vector<2x64xf32>
    %237 = arith.mulf %234, %236 : vector<2x64xf32>
    %c6_75 = arith.constant 6 : index
    %c0_76 = arith.constant 0 : index
    %238 = vector.load %arg12[%c6_75, %c0_76] : memref<12x1xf32, #tpu.memory_space<vmem>>, vector<2x1xf32>
    %239 = vector.broadcast %238 : vector<2x1xf32> to vector<2x64xf32>
    %240 = arith.addf %237, %239 : vector<2x64xf32>
    %cst_77 = arith.constant 0.000000e+00 : f32
    %241 = vector.broadcast %cst_77 : f32 to vector<2x64xf32>
    %242 = arith.cmpf ogt, %240, %241 : vector<2x64xf32>
    %c6_78 = arith.constant 6 : index
    %c0_79 = arith.constant 0 : index
    %243 = vector.load %arg13[%c6_78, %c0_79] : memref<12x1xf32, #tpu.memory_space<vmem>>, vector<2x1xf32>
    %244 = vector.broadcast %243 : vector<2x1xf32> to vector<2x64xf32>
    %245 = arith.mulf %244, %240 : vector<2x64xf32>
    %246 = arith.select %242, %240, %245 : vector<2x64xi1>, vector<2x64xf32>
    %c0_80 = arith.constant 0 : index
    %c6_81 = arith.constant 6 : index
    %c0_82 = arith.constant 0 : index
    %247 = vector.load %arg14[%c0_80, %c6_81, %c0_82] : memref<1x12x64xf32, #tpu.memory_space<vmem>>, vector<1x2x64xf32>
    %248 = vector.shape_cast %247 : vector<1x2x64xf32> to vector<2x64xf32>
    %249 = vector.shape_cast %246 : vector<2x64xf32> to vector<1x2x64xf32>
    tpu.vector_store %arg14[%c0_80, %c6_81, %c0_82], %249 {strides = array<i32>} : memref<1x12x64xf32, #tpu.memory_space<vmem>>, vector<1x2x64xf32>,
    %250 = vector.extract_strided_slice %17 {offsets = [12, 0], sizes = [4, 64], strides = [1, 1]} : vector<20x64xf32> to vector<4x64xf32>
    %c0_83 = arith.constant 0 : index
    %c36_84 = arith.constant 36 : index
    %251 = vector.load %arg15[%c0_83, %c36_84] : memref<4x136xf32, #tpu.memory_space<vmem>>, vector<4x64xf32>
    tpu.vector_store %arg15[%c0_83, %c36_84], %250 {strides = array<i32>} : memref<4x136xf32, #tpu.memory_space<vmem>>, vector<4x64xf32>,
    %c0_85 = arith.constant 0 : index
    %c0_86 = arith.constant 0 : index
    %252 = vector.load %arg15[%c0_85, %c0_86] : memref<4x136xf32, #tpu.memory_space<vmem>>, vector<4x136xf32>
    %cst_87 = arith.constant 0.000000e+00 : f32
    %253 = vector.broadcast %cst_87 : f32 to vector<4x64xf32>
    %254 = vector.extract_strided_slice %252 {offsets = [0, 36], sizes = [4, 64], strides = [1, 1]} : vector<4x136xf32> to vector<4x64xf32>
    %255 = vector.extract_strided_slice %15 {offsets = [31, 0], sizes = [1, 64], strides = [1, 1]} : vector<45x64xf32> to vector<1x64xf32>
    %256 = vector.broadcast %255 : vector<1x64xf32> to vector<4x64xf32>
    %257 = arith.mulf %256, %254 : vector<4x64xf32>
    %258 = arith.addf %253, %257 : vector<4x64xf32>
    %259 = vector.extract_strided_slice %258 {offsets = [0, 0], sizes = [2, 64], strides = [1, 1]} : vector<4x64xf32> to vector<2x64xf32>
    %c8 = arith.constant 8 : index
    %c0_88 = arith.constant 0 : index
    %260 = vector.load %arg8[%c8, %c0_88] : memref<12x1xf32, #tpu.memory_space<vmem>>, vector<2x1xf32>
    %261 = vector.broadcast %260 : vector<2x1xf32> to vector<2x64xf32>
    %262 = arith.mulf %259, %261 : vector<2x64xf32>
    %c8_89 = arith.constant 8 : index
    %c0_90 = arith.constant 0 : index
    %263 = vector.load %arg9[%c8_89, %c0_90] : memref<12x1xf32, #tpu.memory_space<vmem>>, vector<2x1xf32>
    %264 = vector.broadcast %263 : vector<2x1xf32> to vector<2x64xf32>
    %265 = arith.addf %262, %264 : vector<2x64xf32>
    %cst_91 = arith.constant 0.000000e+00 : f32
    %266 = vector.broadcast %cst_91 : f32 to vector<2x64xf32>
    %267 = arith.cmpf ogt, %265, %266 : vector<2x64xf32>
    %c8_92 = arith.constant 8 : index
    %c0_93 = arith.constant 0 : index
    %268 = vector.load %arg10[%c8_92, %c0_93] : memref<12x1xf32, #tpu.memory_space<vmem>>, vector<2x1xf32>
    %269 = vector.broadcast %268 : vector<2x1xf32> to vector<2x64xf32>
    %270 = arith.mulf %269, %265 : vector<2x64xf32>
    %271 = arith.select %267, %265, %270 : vector<2x64xi1>, vector<2x64xf32>
    %c8_94 = arith.constant 8 : index
    %c0_95 = arith.constant 0 : index
    %272 = vector.load %arg11[%c8_94, %c0_95] : memref<12x1xf32, #tpu.memory_space<vmem>>, vector<2x1xf32>
    %273 = vector.broadcast %272 : vector<2x1xf32> to vector<2x64xf32>
    %274 = arith.mulf %271, %273 : vector<2x64xf32>
    %c8_96 = arith.constant 8 : index
    %c0_97 = arith.constant 0 : index
    %275 = vector.load %arg12[%c8_96, %c0_97] : memref<12x1xf32, #tpu.memory_space<vmem>>, vector<2x1xf32>
    %276 = vector.broadcast %275 : vector<2x1xf32> to vector<2x64xf32>
    %277 = arith.addf %274, %276 : vector<2x64xf32>
    %cst_98 = arith.constant 0.000000e+00 : f32
    %278 = vector.broadcast %cst_98 : f32 to vector<2x64xf32>
    %279 = arith.cmpf ogt, %277, %278 : vector<2x64xf32>
    %c8_99 = arith.constant 8 : index
    %c0_100 = arith.constant 0 : index
    %280 = vector.load %arg13[%c8_99, %c0_100] : memref<12x1xf32, #tpu.memory_space<vmem>>, vector<2x1xf32>
    %281 = vector.broadcast %280 : vector<2x1xf32> to vector<2x64xf32>
    %282 = arith.mulf %281, %277 : vector<2x64xf32>
    %283 = arith.select %279, %277, %282 : vector<2x64xi1>, vector<2x64xf32>
    %c0_101 = arith.constant 0 : index
    %c8_102 = arith.constant 8 : index
    %c0_103 = arith.constant 0 : index
    %284 = vector.load %arg14[%c0_101, %c8_102, %c0_103] : memref<1x12x64xf32, #tpu.memory_space<vmem>>, vector<1x2x64xf32>
    %285 = vector.shape_cast %284 : vector<1x2x64xf32> to vector<2x64xf32>
    %286 = vector.shape_cast %283 : vector<2x64xf32> to vector<1x2x64xf32>
    tpu.vector_store %arg14[%c0_101, %c8_102, %c0_103], %286 {strides = array<i32>} : memref<1x12x64xf32, #tpu.memory_space<vmem>>, vector<1x2x64xf32>,
    %287 = vector.extract_strided_slice %17 {offsets = [16, 0], sizes = [4, 64], strides = [1, 1]} : vector<20x64xf32> to vector<4x64xf32>
    %c0_104 = arith.constant 0 : index
    %c36_105 = arith.constant 36 : index
    %288 = vector.load %arg15[%c0_104, %c36_105] : memref<4x136xf32, #tpu.memory_space<vmem>>, vector<4x64xf32>
    tpu.vector_store %arg15[%c0_104, %c36_105], %287 {strides = array<i32>} : memref<4x136xf32, #tpu.memory_space<vmem>>, vector<4x64xf32>,
    %c0_106 = arith.constant 0 : index
    %c0_107 = arith.constant 0 : index
    %289 = vector.load %arg15[%c0_106, %c0_107] : memref<4x136xf32, #tpu.memory_space<vmem>>, vector<4x136xf32>
    %cst_108 = arith.constant 0.000000e+00 : f32
    %290 = vector.broadcast %cst_108 : f32 to vector<4x64xf32>
    %291 = vector.extract_strided_slice %289 {offsets = [0, 36], sizes = [4, 64], strides = [1, 1]} : vector<4x136xf32> to vector<4x64xf32>
    %292 = vector.extract_strided_slice %15 {offsets = [40, 0], sizes = [1, 64], strides = [1, 1]} : vector<45x64xf32> to vector<1x64xf32>
    %293 = vector.broadcast %292 : vector<1x64xf32> to vector<4x64xf32>
    %294 = arith.mulf %293, %291 : vector<4x64xf32>
    %295 = arith.addf %290, %294 : vector<4x64xf32>
    %296 = vector.extract_strided_slice %295 {offsets = [0, 0], sizes = [2, 64], strides = [1, 1]} : vector<4x64xf32> to vector<2x64xf32>
    %c10 = arith.constant 10 : index
    %c0_109 = arith.constant 0 : index
    %297 = vector.load %arg8[%c10, %c0_109] : memref<12x1xf32, #tpu.memory_space<vmem>>, vector<2x1xf32>
    %298 = vector.broadcast %297 : vector<2x1xf32> to vector<2x64xf32>
    %299 = arith.mulf %296, %298 : vector<2x64xf32>
    %c10_110 = arith.constant 10 : index
    %c0_111 = arith.constant 0 : index
    %300 = vector.load %arg9[%c10_110, %c0_111] : memref<12x1xf32, #tpu.memory_space<vmem>>, vector<2x1xf32>
    %301 = vector.broadcast %300 : vector<2x1xf32> to vector<2x64xf32>
    %302 = arith.addf %299, %301 : vector<2x64xf32>
    %cst_112 = arith.constant 0.000000e+00 : f32
    %303 = vector.broadcast %cst_112 : f32 to vector<2x64xf32>
    %304 = arith.cmpf ogt, %302, %303 : vector<2x64xf32>
    %c10_113 = arith.constant 10 : index
    %c0_114 = arith.constant 0 : index
    %305 = vector.load %arg10[%c10_113, %c0_114] : memref<12x1xf32, #tpu.memory_space<vmem>>, vector<2x1xf32>
    %306 = vector.broadcast %305 : vector<2x1xf32> to vector<2x64xf32>
    %307 = arith.mulf %306, %302 : vector<2x64xf32>
    %308 = arith.select %304, %302, %307 : vector<2x64xi1>, vector<2x64xf32>
    %c10_115 = arith.constant 10 : index
    %c0_116 = arith.constant 0 : index
    %309 = vector.load %arg11[%c10_115, %c0_116] : memref<12x1xf32, #tpu.memory_space<vmem>>, vector<2x1xf32>
    %310 = vector.broadcast %309 : vector<2x1xf32> to vector<2x64xf32>
    %311 = arith.mulf %308, %310 : vector<2x64xf32>
    %c10_117 = arith.constant 10 : index
    %c0_118 = arith.constant 0 : index
    %312 = vector.load %arg12[%c10_117, %c0_118] : memref<12x1xf32, #tpu.memory_space<vmem>>, vector<2x1xf32>
    %313 = vector.broadcast %312 : vector<2x1xf32> to vector<2x64xf32>
    %314 = arith.addf %311, %313 : vector<2x64xf32>
    %cst_119 = arith.constant 0.000000e+00 : f32
    %315 = vector.broadcast %cst_119 : f32 to vector<2x64xf32>
    %316 = arith.cmpf ogt, %314, %315 : vector<2x64xf32>
    %c10_120 = arith.constant 10 : index
    %c0_121 = arith.constant 0 : index
    %317 = vector.load %arg13[%c10_120, %c0_121] : memref<12x1xf32, #tpu.memory_space<vmem>>, vector<2x1xf32>
    %318 = vector.broadcast %317 : vector<2x1xf32> to vector<2x64xf32>
    %319 = arith.mulf %318, %314 : vector<2x64xf32>
    %320 = arith.select %316, %314, %319 : vector<2x64xi1>, vector<2x64xf32>
    %c0_122 = arith.constant 0 : index
    %c10_123 = arith.constant 10 : index
    %c0_124 = arith.constant 0 : index
    %321 = vector.load %arg14[%c0_122, %c10_123, %c0_124] : memref<1x12x64xf32, #tpu.memory_space<vmem>>, vector<1x2x64xf32>
    %322 = vector.shape_cast %321 : vector<1x2x64xf32> to vector<2x64xf32>
    %323 = vector.shape_cast %320 : vector<2x64xf32> to vector<1x2x64xf32>
    tpu.vector_store %arg14[%c0_122, %c10_123, %c0_124], %323 {strides = array<i32>} : memref<1x12x64xf32, #tpu.memory_space<vmem>>, vector<1x2x64xf32>,
    return
  }
  func.func @transform_0(%arg0: i32) -> (i32, i32, i32) {
    %c0_i32 = arith.constant 0 : i32
    %c0_i32_0 = arith.constant 0 : i32
    %c0_i32_1 = arith.constant 0 : i32
    return %arg0, %c0_i32, %c0_i32_0 : i32, i32, i32
  }
  func.func @transform_1(%arg0: i32) -> (i32, i32) {
    %c0_i32 = arith.constant 0 : i32
    %c0_i32_0 = arith.constant 0 : i32
    %c0_i32_1 = arith.constant 0 : i32
    return %c0_i32, %c0_i32_0 : i32, i32
  }
  func.func @transform_2(%arg0: i32) -> (i32, i32) {
    %c0_i32 = arith.constant 0 : i32
    %c0_i32_0 = arith.constant 0 : i32
    %c0_i32_1 = arith.constant 0 : i32
    return %c0_i32, %c0_i32_0 : i32, i32
  }
  func.func @transform_3(%arg0: i32) -> (i32, i32) {
    %c0_i32 = arith.constant 0 : i32
    %c0_i32_0 = arith.constant 0 : i32
    %c0_i32_1 = arith.constant 0 : i32
    return %c0_i32, %c0_i32_0 : i32, i32
  }
  func.func @transform_4(%arg0: i32) -> (i32, i32) {
    %c0_i32 = arith.constant 0 : i32
    %c0_i32_0 = arith.constant 0 : i32
    %c0_i32_1 = arith.constant 0 : i32
    return %c0_i32, %c0_i32_0 : i32, i32
  }
  func.func @transform_5(%arg0: i32) -> (i32, i32) {
    %c0_i32 = arith.constant 0 : i32
    %c0_i32_0 = arith.constant 0 : i32
    %c0_i32_1 = arith.constant 0 : i32
    return %c0_i32, %c0_i32_0 : i32, i32
  }
  func.func @transform_6(%arg0: i32) -> (i32, i32) {
    %c0_i32 = arith.constant 0 : i32
    %c0_i32_0 = arith.constant 0 : i32
    %c0_i32_1 = arith.constant 0 : i32
    return %c0_i32, %c0_i32_0 : i32, i32
  }
  func.func @transform_7(%arg0: i32) -> (i32, i32) {
    %c0_i32 = arith.constant 0 : i32
    %c0_i32_0 = arith.constant 0 : i32
    %c0_i32_1 = arith.constant 0 : i32
    return %c0_i32, %c0_i32_0 : i32, i32
  }
  func.func @transform_8(%arg0: i32) -> (i32, i32) {
    %c0_i32 = arith.constant 0 : i32
    %c0_i32_0 = arith.constant 0 : i32
    %c0_i32_1 = arith.constant 0 : i32
    return %c0_i32, %c0_i32_0 : i32, i32
  }
  func.func @transform_9(%arg0: i32) -> (i32, i32) {
    %c0_i32 = arith.constant 0 : i32
    %c0_i32_0 = arith.constant 0 : i32
    %c0_i32_1 = arith.constant 0 : i32
    return %c0_i32, %c0_i32_0 : i32, i32
  }
  func.func @transform_10(%arg0: i32) -> (i32, i32) {
    %c0_i32 = arith.constant 0 : i32
    %c0_i32_0 = arith.constant 0 : i32
    %c0_i32_1 = arith.constant 0 : i32
    return %c0_i32, %c0_i32_0 : i32, i32
  }
  func.func @transform_11(%arg0: i32) -> (i32, i32) {
    %c0_i32 = arith.constant 0 : i32
    %c0_i32_0 = arith.constant 0 : i32
    %c0_i32_1 = arith.constant 0 : i32
    return %c0_i32, %c0_i32_0 : i32, i32
  }
  func.func @transform_12(%arg0: i32) -> (i32, i32) {
    %c0_i32 = arith.constant 0 : i32
    %c0_i32_0 = arith.constant 0 : i32
    %c0_i32_1 = arith.constant 0 : i32
    return %c0_i32, %c0_i32_0 : i32, i32
  }
  func.func @transform_13(%arg0: i32) -> (i32, i32, i32) {
    %c0_i32 = arith.constant 0 : i32
    %c0_i32_0 = arith.constant 0 : i32
    %c0_i32_1 = arith.constant 0 : i32
    return %arg0, %c0_i32, %c0_i32_0 : i32, i32, i32
  }
}

</mosaic_0001>

<llo_original>
// kernel: dinp_block_forward.2
$region0: #{dinp_block_forward.2}
  #allocation0 [shape = 'u32[]', space=smem, size = 0x4, offset = 0x4, fixed_abs, tag = 'smem constant byte address 0x4 - core index']
  #allocation1 [shape = 'u32[144,128]{1,0:T(1,128)}', space=vmem, size = 0x12000, scoped, tag = 'internal scratch']
  #allocation2 [shape = 'f32[8,82]{1,0:T(8,128)}', space=vmem, size = 0x1000, scoped, tag = 'scratch operand']
  %s0 = inlined_call_operand.vmem [shape: f32[2,16,64], index: 0, kind: input, shape index: {}]
  %s1 = inlined_call_operand.vmem [shape: f32[2,4], index: 1, kind: input, shape index: {}]
  %s2 = inlined_call_operand.vmem [shape: f32[2,1], index: 2, kind: input, shape index: {}]
  %s3 = inlined_call_operand.vmem [shape: f32[2,1], index: 3, kind: input, shape index: {}]
  %s4 = inlined_call_operand.vmem [shape: f32[9,2], index: 4, kind: input, shape index: {}]
  %s5 = inlined_call_operand.vmem [shape: f32[9,64], index: 5, kind: input, shape index: {}]
  %s6 = inlined_call_operand.vmem [shape: f32[8,16], index: 6, kind: input, shape index: {}]
  %s7 = inlined_call_operand.vmem [shape: f32[2,1], index: 7, kind: input, shape index: {}]
  %s8 = inlined_call_operand.vmem [shape: f32[2,1], index: 8, kind: input, shape index: {}]
  %s9 = inlined_call_operand.vmem [shape: f32[2,1], index: 9, kind: input, shape index: {}]
  %s10 = inlined_call_operand.vmem [shape: f32[2,2,64], index: 10, kind: output, shape index: {}]
  %s11 = sld [smem:[#allocation0]]
  $region73: #{dinp_block_forward.2} parent=0
    _
  %s13 = ssub.s32 1, %s11
  %s14 = scalar_select 0, %s13, %s11
  loop: start=0, step=1, limit=4
  $region2: #{dinp_block_forward.2} parent=0 // loop_pre_header
    _
  $region3: #{dinp_block_forward.2} parent=0 // loop_header
    %s16 = sphi 0, %s20
    %p17 = scmp.ge.s32.totalorder %s16, 4
    %s26 = sphi 0, %s28
    %s29 = sphi 0, %s26
    %s30 = sphi 0, %s29
    %s46 = sphi 0, %s30
    %s50 = sphi 0, %s50
    %s52 = sphi 0, %s50
    %s53 = sphi 0, %s52
    %s67 = sphi 0, %s53
    %s71 = sphi 0, %s71
    %s73 = sphi 0, %s71
    %s74 = sphi 0, %s73
    %s88 = sphi 0, %s74
    %s92 = sphi 0, %s92
    %s94 = sphi 0, %s92
    %s95 = sphi 0, %s94
    %s109 = sphi 0, %s95
    %s113 = sphi 0, %s113
    %s115 = sphi 0, %s113
    %s116 = sphi 0, %s115
    %s130 = sphi 0, %s116
    %s134 = sphi 0, %s134
    %s136 = sphi 0, %s134
    %s137 = sphi 0, %s136
    %s151 = sphi 0, %s137
    %s155 = sphi 0, %s155
    %s157 = sphi 0, %s155
    %s158 = sphi 0, %s157
    %s172 = sphi 0, %s158
    %s176 = sphi 0, %s176
    %s178 = sphi 0, %s176
    %s179 = sphi 0, %s178
    %s193 = sphi 0, %s179
    %s197 = sphi 0, %s197
    %s199 = sphi 0, %s197
    %s200 = sphi 0, %s199
    %s214 = sphi 0, %s200
    %s218 = sphi 0, %s218
    %s220 = sphi 0, %s218
    %s221 = sphi 0, %s220
    %s235 = sphi 0, %s221
    %s241 = sphi 0, %s243
    %s244 = sphi 0, %s241
    %s245 = sphi 0, %s244
    %s261 = sphi 0, %s245
  $region4: #{dinp_block_forward.2} parent=0 // loop_header_branch
    %19 = sbr.rel (%p17) target = $region8
  $region5: #{dinp_block_forward.2} parent=0 // loop_body
    %s21 = ssub.s32 %s16, 1
    %s22 = ssub.s32 %s16, 2
    %s23 = sadd.s32 %s16, 1
    %s24 = ssub.s32 %s16, %s23
    %p25 = scmp.eq.s32.totalorder %s24, 0
    %s27 = sadd.s32 %s26, 1
    %s28 = scalar_select %p25, %s26, %s27
    %p31 = pneg %p25
    %p32 = scmp.eq.s32.totalorder %s16, 1
    %p33 = por %p31, %p32
    %p34 = scmp.ne.s32.totalorder %s26, %s29
    %p35 = scmp.eq.s32.totalorder %s16, 0
    %p36 = por %p34, %p35
    %p37 = scmp.ne.s32.totalorder %s26, %s29
    %p38 = scmp.eq.s32.totalorder %s21, 1
    %p39 = por %p37, %p38
    %p40 = scmp.ne.s32.totalorder %s29, %s30
    %p41 = scmp.eq.s32.totalorder %s21, 0
    %p42 = por %p40, %p41
    %p43 = scmp.ne.s32.totalorder %s29, %s30
    %p44 = scmp.eq.s32.totalorder %s22, 1
    %p45 = por %p43, %p44
    %p47 = scmp.ne.s32.totalorder %s30, %s46
    %p48 = scmp.eq.s32.totalorder %s22, 0
    %p49 = por %p47, %p48
    %s51 = sadd.s32 %s50, 1
    %p54 = scmp.eq.s32.totalorder %s16, 1
    %p55 = scmp.ne.s32.totalorder %s50, %s52
    %p56 = scmp.eq.s32.totalorder %s16, 0
    %p57 = por %p55, %p56
    %p58 = scmp.ne.s32.totalorder %s50, %s52
    %p59 = scmp.eq.s32.totalorder %s21, 1
    %p60 = por %p58, %p59
    %p61 = scmp.ne.s32.totalorder %s52, %s53
    %p62 = scmp.eq.s32.totalorder %s21, 0
    %p63 = por %p61, %p62
    %p64 = scmp.ne.s32.totalorder %s52, %s53
    %p65 = scmp.eq.s32.totalorder %s22, 1
    %p66 = por %p64, %p65
    %p68 = scmp.ne.s32.totalorder %s53, %s67
    %p69 = scmp.eq.s32.totalorder %s22, 0
    %p70 = por %p68, %p69
    %s72 = sadd.s32 %s71, 1
    %p75 = scmp.eq.s32.totalorder %s16, 1
    %p76 = scmp.ne.s32.totalorder %s71, %s73
    %p77 = scmp.eq.s32.totalorder %s16, 0
    %p78 = por %p76, %p77
    %p79 = scmp.ne.s32.totalorder %s71, %s73
    %p80 = scmp.eq.s32.totalorder %s21, 1
    %p81 = por %p79, %p80
    %p82 = scmp.ne.s32.totalorder %s73, %s74
    %p83 = scmp.eq.s32.totalorder %s21, 0
    %p84 = por %p82, %p83
    %p85 = scmp.ne.s32.totalorder %s73, %s74
    %p86 = scmp.eq.s32.totalorder %s22, 1
    %p87 = por %p85, %p86
    %p89 = scmp.ne.s32.totalorder %s74, %s88
    %p90 = scmp.eq.s32.totalorder %s22, 0
    %p91 = por %p89, %p90
    %s93 = sadd.s32 %s92, 1
    %p96 = scmp.eq.s32.totalorder %s16, 1
    %p97 = scmp.ne.s32.totalorder %s92, %s94
    %p98 = scmp.eq.s32.totalorder %s16, 0
    %p99 = por %p97, %p98
    %p100 = scmp.ne.s32.totalorder %s92, %s94
    %p101 = scmp.eq.s32.totalorder %s21, 1
    %p102 = por %p100, %p101
    %p103 = scmp.ne.s32.totalorder %s94, %s95
    %p104 = scmp.eq.s32.totalorder %s21, 0
    %p105 = por %p103, %p104
    %p106 = scmp.ne.s32.totalorder %s94, %s95
    %p107 = scmp.eq.s32.totalorder %s22, 1
    %p108 = por %p106, %p107
    %p110 = scmp.ne.s32.totalorder %s95, %s109
    %p111 = scmp.eq.s32.totalorder %s22, 0
    %p112 = por %p110, %p111
    %s114 = sadd.s32 %s113, 1
    %p117 = scmp.eq.s32.totalorder %s16, 1
    %p118 = scmp.ne.s32.totalorder %s113, %s115
    %p119 = scmp.eq.s32.totalorder %s16, 0
    %p120 = por %p118, %p119
    %p121 = scmp.ne.s32.totalorder %s113, %s115
    %p122 = scmp.eq.s32.totalorder %s21, 1
    %p123 = por %p121, %p122
    %p124 = scmp.ne.s32.totalorder %s115, %s116
    %p125 = scmp.eq.s32.totalorder %s21, 0
    %p126 = por %p124, %p125
    %p127 = scmp.ne.s32.totalorder %s115, %s116
    %p128 = scmp.eq.s32.totalorder %s22, 1
    %p129 = por %p127, %p128
    %p131 = scmp.ne.s32.totalorder %s116, %s130
    %p132 = scmp.eq.s32.totalorder %s22, 0
    %p133 = por %p131, %p132
    %s135 = sadd.s32 %s134, 1
    %p138 = scmp.eq.s32.totalorder %s16, 1
    %p139 = scmp.ne.s32.totalorder %s134, %s136
    %p140 = scmp.eq.s32.totalorder %s16, 0
    %p141 = por %p139, %p140
    %p142 = scmp.ne.s32.totalorder %s134, %s136
    %p143 = scmp.eq.s32.totalorder %s21, 1
    %p144 = por %p142, %p143
    %p145 = scmp.ne.s32.totalorder %s136, %s137
    %p146 = scmp.eq.s32.totalorder %s21, 0
    %p147 = por %p145, %p146
    %p148 = scmp.ne.s32.totalorder %s136, %s137
    %p149 = scmp.eq.s32.totalorder %s22, 1
    %p150 = por %p148, %p149
    %p152 = scmp.ne.s32.totalorder %s137, %s151
    %p153 = scmp.eq.s32.totalorder %s22, 0
    %p154 = por %p152, %p153
    %s156 = sadd.s32 %s155, 1
    %p159 = scmp.eq.s32.totalorder %s16, 1
    %p160 = scmp.ne.s32.totalorder %s155, %s157
    %p161 = scmp.eq.s32.totalorder %s16, 0
    %p162 = por %p160, %p161
    %p163 = scmp.ne.s32.totalorder %s155, %s157
    %p164 = scmp.eq.s32.totalorder %s21, 1
    %p165 = por %p163, %p164
    %p166 = scmp.ne.s32.totalorder %s157, %s158
    %p167 = scmp.eq.s32.totalorder %s21, 0
    %p168 = por %p166, %p167
    %p169 = scmp.ne.s32.totalorder %s157, %s158
    %p170 = scmp.eq.s32.totalorder %s22, 1
    %p171 = por %p169, %p170
    %p173 = scmp.ne.s32.totalorder %s158, %s172
    %p174 = scmp.eq.s32.totalorder %s22, 0
    %p175 = por %p173, %p174
    %s177 = sadd.s32 %s176, 1
    %p180 = scmp.eq.s32.totalorder %s16, 1
    %p181 = scmp.ne.s32.totalorder %s176, %s178
    %p182 = scmp.eq.s32.totalorder %s16, 0
    %p183 = por %p181, %p182
    %p184 = scmp.ne.s32.totalorder %s176, %s178
    %p185 = scmp.eq.s32.totalorder %s21, 1
    %p186 = por %p184, %p185
    %p187 = scmp.ne.s32.totalorder %s178, %s179
    %p188 = scmp.eq.s32.totalorder %s21, 0
    %p189 = por %p187, %p188
    %p190 = scmp.ne.s32.totalorder %s178, %s179
    %p191 = scmp.eq.s32.totalorder %s22, 1
    %p192 = por %p190, %p191
    %p194 = scmp.ne.s32.totalorder %s179, %s193
    %p195 = scmp.eq.s32.totalorder %s22, 0
    %p196 = por %p194, %p195
    %s198 = sadd.s32 %s197, 1
    %p201 = scmp.eq.s32.totalorder %s16, 1
    %p202 = scmp.ne.s32.totalorder %s197, %s199
    %p203 = scmp.eq.s32.totalorder %s16, 0
    %p204 = por %p202, %p203
    %p205 = scmp.ne.s32.totalorder %s197, %s199
    %p206 = scmp.eq.s32.totalorder %s21, 1
    %p207 = por %p205, %p206
    %p208 = scmp.ne.s32.totalorder %s199, %s200
    %p209 = scmp.eq.s32.totalorder %s21, 0
    %p210 = por %p208, %p209
    %p211 = scmp.ne.s32.totalorder %s199, %s200
    %p212 = scmp.eq.s32.totalorder %s22, 1
    %p213 = por %p211, %p212
    %p215 = scmp.ne.s32.totalorder %s200, %s214
    %p216 = scmp.eq.s32.totalorder %s22, 0
    %p217 = por %p215, %p216
    %s219 = sadd.s32 %s218, 1
    %p222 = scmp.eq.s32.totalorder %s16, 1
    %p223 = scmp.ne.s32.totalorder %s218, %s220
    %p224 = scmp.eq.s32.totalorder %s16, 0
    %p225 = por %p223, %p224
    %p226 = scmp.ne.s32.totalorder %s218, %s220
    %p227 = scmp.eq.s32.totalorder %s21, 1
    %p228 = por %p226, %p227
    %p229 = scmp.ne.s32.totalorder %s220, %s221
    %p230 = scmp.eq.s32.totalorder %s21, 0
    %p231 = por %p229, %p230
    %p232 = scmp.ne.s32.totalorder %s220, %s221
    %p233 = scmp.eq.s32.totalorder %s22, 1
    %p234 = por %p232, %p233
    %p236 = scmp.ne.s32.totalorder %s221, %s235
    %p237 = scmp.eq.s32.totalorder %s22, 0
    %p238 = por %p236, %p237
    %s239 = ssub.s32 %s16, %s23
    %p240 = scmp.eq.s32.totalorder %s239, 0
    %s242 = sadd.s32 %s241, 1
    %s243 = scalar_select %p240, %s241, %s242
    %p246 = pneg %p240
    %p247 = scmp.eq.s32.totalorder %s16, 1
    %p248 = por %p246, %p247
    %p249 = scmp.ne.s32.totalorder %s241, %s244
    %p250 = scmp.eq.s32.totalorder %s16, 0
    %p251 = por %p249, %p250
    %p252 = scmp.ne.s32.totalorder %s241, %s244
    %p253 = scmp.eq.s32.totalorder %s21, 1
    %p254 = por %p252, %p253
    %p255 = scmp.ne.s32.totalorder %s244, %s245
    %p256 = scmp.eq.s32.totalorder %s21, 0
    %p257 = por %p255, %p256
    %p258 = scmp.ne.s32.totalorder %s244, %s245
    %p259 = scmp.eq.s32.totalorder %s22, 1
    %p260 = por %p258, %p259
    %p262 = scmp.ne.s32.totalorder %s245, %s261
    %p263 = scmp.eq.s32.totalorder %s22, 0
    %p264 = por %p262, %p263
    %p265 = scmp.le.s32.totalorder 1, %s16
    %p266 = scmp.lt.s32.totalorder %s16, 3
    %p267 = pnand %p265, %p266
    %p268 = pneg %p267
    // Predicated region
    $region9: #{dinp_block_forward.2} parent=5 // pred_check
      _
    $region10: #{dinp_block_forward.2} parent=5 // pred_check_branch
      %270 = sbr.rel (%p267) target = $region12
    $region11: #{dinp_block_forward.2} parent=5 // pred_region
      %s271 = ssub.s32 %s16, 1
      // Predicated region
      $region13: #{dinp_block_forward.2} parent=11 // pred_check
        %p272 = pneg %p63
      $region14: #{dinp_block_forward.2} parent=11 // pred_check_branch
        %274 = sbr.rel (%p272) target = $region16
      $region15: #{dinp_block_forward.2} parent=11 // pred_region
        _
      $region16: #{dinp_block_forward.2} parent=11 // pred_fallthru
        _
      // Predicated region
      $region17: #{dinp_block_forward.2} parent=11 // pred_check
        %p275 = pneg %p84
      $region18: #{dinp_block_forward.2} parent=11 // pred_check_branch
        %277 = sbr.rel (%p275) target = $region20
      $region19: #{dinp_block_forward.2} parent=11 // pred_region
        _
      $region20: #{dinp_block_forward.2} parent=11 // pred_fallthru
        _
      // Predicated region
      $region21: #{dinp_block_forward.2} parent=11 // pred_check
        %p278 = pneg %p105
      $region22: #{dinp_block_forward.2} parent=11 // pred_check_branch
        %280 = sbr.rel (%p278) target = $region24
      $region23: #{dinp_block_forward.2} parent=11 // pred_region
        _
      $region24: #{dinp_block_forward.2} parent=11 // pred_fallthru
        _
      // Predicated region
      $region25: #{dinp_block_forward.2} parent=11 // pred_check
        %p281 = pneg %p126
      $region26: #{dinp_block_forward.2} parent=11 // pred_check_branch
        %283 = sbr.rel (%p281) target = $region28
      $region27: #{dinp_block_forward.2} parent=11 // pred_region
        _
      $region28: #{dinp_block_forward.2} parent=11 // pred_fallthru
        _
      // Predicated region
      $region29: #{dinp_block_forward.2} parent=11 // pred_check
        %p284 = pneg %p147
      $region30: #{dinp_block_forward.2} parent=11 // pred_check_branch
        %286 = sbr.rel (%p284) target = $region32
      $region31: #{dinp_block_forward.2} parent=11 // pred_region
        _
      $region32: #{dinp_block_forward.2} parent=11 // pred_fallthru
        _
      // Predicated region
      $region33: #{dinp_block_forward.2} parent=11 // pred_check
        %p287 = pneg %p168
      $region34: #{dinp_block_forward.2} parent=11 // pred_check_branch
        %289 = sbr.rel (%p287) target = $region36
      $region35: #{dinp_block_forward.2} parent=11 // pred_region
        _
      $region36: #{dinp_block_forward.2} parent=11 // pred_fallthru
        _
      // Predicated region
      $region37: #{dinp_block_forward.2} parent=11 // pred_check
        %p290 = pneg %p189
      $region38: #{dinp_block_forward.2} parent=11 // pred_check_branch
        %292 = sbr.rel (%p290) target = $region40
      $region39: #{dinp_block_forward.2} parent=11 // pred_region
        _
      $region40: #{dinp_block_forward.2} parent=11 // pred_fallthru
        _
      // Predicated region
      $region41: #{dinp_block_forward.2} parent=11 // pred_check
        %p293 = pneg %p210
      $region42: #{dinp_block_forward.2} parent=11 // pred_check_branch
        %295 = sbr.rel (%p293) target = $region44
      $region43: #{dinp_block_forward.2} parent=11 // pred_region
        _
      $region44: #{dinp_block_forward.2} parent=11 // pred_fallthru
        _
      // Predicated region
      $region45: #{dinp_block_forward.2} parent=11 // pred_check
        %p296 = pneg %p231
      $region46: #{dinp_block_forward.2} parent=11 // pred_check_branch
        %298 = sbr.rel (%p296) target = $region48
      $region47: #{dinp_block_forward.2} parent=11 // pred_region
        _
      $region48: #{dinp_block_forward.2} parent=11 // pred_fallthru
        _
    $region12: #{dinp_block_forward.2} parent=5 // pred_fallthru
      _
    %p299 = scmp.lt.s32.totalorder %s16, 2
    // Predicated region
    $region49: #{dinp_block_forward.2} parent=5 // pred_check
      %p300 = pneg %p299
    $region50: #{dinp_block_forward.2} parent=5 // pred_check_branch
      %302 = sbr.rel (%p300) target = $region52
    $region51: #{dinp_block_forward.2} parent=5 // pred_region
      // Predicated region
      $region53: #{dinp_block_forward.2} parent=51 // pred_check
        %p303 = pneg %p36
      $region54: #{dinp_block_forward.2} parent=51 // pred_check_branch
        %305 = sbr.rel (%p303) target = $region56
      $region55: #{dinp_block_forward.2} parent=51 // pred_region
        %p306 = scmp.lt.s32.totalorder %s16, 1
        %s307 = scalar_select %p306, %s16, 1
        %s308 = smul.addr %s307, 2
        %s309 = smul.addr %s308, 8
        %s310 = scalar_lea.vmem %s0, %s309
      $region56: #{dinp_block_forward.2} parent=51 // pred_fallthru
        _
    $region52: #{dinp_block_forward.2} parent=5 // pred_fallthru
      _
    %p311 = scmp.le.s32.totalorder 1, %s16
    %p312 = scmp.lt.s32.totalorder %s16, 3
    %p313 = pnand %p311, %p312
    %p314 = pneg %p313
    // Predicated region
    $region57: #{dinp_block_forward.2} parent=5 // pred_check
      _
    $region58: #{dinp_block_forward.2} parent=5 // pred_check_branch
      %316 = sbr.rel (%p313) target = $region60
    $region59: #{dinp_block_forward.2} parent=5 // pred_region
      %s317 = ssub.s32 %s16, 1
      %p318 = scmp.lt.s32.totalorder %s21, 1
      %s319 = scalar_select %p318, %s21, 1
      %s320 = smul.addr %s319, 2
      %s321 = smul.addr %s320, 8
      %s322 = scalar_lea.vmem %s0, %s321
      %p323 = pneg %p42
      %p324 = pneg %p39
      %p325 = pneg %p63
      %p326 = pneg %p60
      %p327 = pneg %p84
      %p328 = pneg %p81
      %p329 = pneg %p105
      %p330 = pneg %p102
      %p331 = pneg %p126
      %p332 = pneg %p123
      %p333 = pneg %p147
      %p334 = pneg %p144
      %p335 = pneg %p168
      %p336 = pneg %p165
      %p337 = pneg %p189
      %p338 = pneg %p186
      %p339 = pneg %p210
      %p340 = pneg %p207
      %p341 = pneg %p231
      %p342 = pneg %p228
      %p343 = pneg %p257
      %p344 = pneg %p254
      %p345 = scmp.lt.s32.totalorder %s21, 1
      %s346 = scalar_select %p345, %s21, 1
      %s347 = smul.addr %s346, 2
      %s348 = scalar_lea.vmem %s10, %s347
      %p349 = scmp.lt.s32.totalorder %s21, 1
      %s350 = scalar_select %p349, %s21, 1
      %s351 = smul.addr %s350, 2
      %s352 = smul.addr %s351, 8
      %s353 = scalar_lea.vmem %s0, %s352
      %p354 = scmp.lt.s32.totalorder %s21, 1
      %s355 = scalar_select %p354, %s21, 1
      %s356 = smul.addr %s355, 2
      %s357 = scalar_lea.vmem %s10, %s356
      %v358 = vld [vmem:[%s353] sm:$0xff]
      %v359 = vld [vmem:[%s353 + $0x8] sm:$0xff]
      %v361 = vrot.slane %v358, 4
      %v363 = vadd.f32 %v358, %v361
      %v364 = vadd.f32 %v363, %v359
      %v366 = vrot.slane %v359, 4
      %v368 = vadd.f32 %v364, %v366
      %v369 = vmul.f32 %v368, 0.25
      %v370 = vld [vmem:[%s1] sm:$0x3]
      %vm371 = vcmask 31744
      %v373 = vsel %vm371, %v370, 0
      %vm375 = vcmask 1043456
      %v377 = vsel %vm375, %v369, 0
      %379 = vmatprep.subr.mxu0 0.0
      %380 = vmatpush1.msra.mxu0 %v377
      %381 = vmatprep.subr.mxu0 0.0
      %382 = vmatpush1.msra.mxu0 0.0
      %383 = vmatprep.subr.mxu0 0.0
      %384 = vmatpush1.msra.mxu0 0.0
      %385 = vmatprep.subr.mxu0 0.0
      %386 = vmatpush1.msra.mxu0 0.0
      %387 = vmatprep.subr.mxu0 0.0
      %388 = vmatpush1.msra.mxu0 0.0
      %389 = vmatprep.subr.mxu0 0.0
      %390 = vmatpush1.msra.mxu0 0.0
      %391 = vmatprep.subr.mxu0 0.0
      %392 = vmatpush1.msra.mxu0 0.0
      %393 = vmatprep.subr.mxu0 0.0
      %394 = vmatpush1.msra.mxu0 0.0
      %395 = vmatprep.subr.mxu0 0.0
      %396 = vmatpush1.msra.mxu0 0.0
      %397 = vmatprep.subr.mxu0 0.0
      %398 = vmatpush1.msra.mxu0 0.0
      %399 = vmatprep.subr.mxu0 0.0
      %400 = vmatpush1.msra.mxu0 0.0
      %401 = vmatprep.subr.mxu0 0.0
      %402 = vmatpush1.msra.mxu0 0.0
      %403 = vmatprep.subr.mxu0 0.0
      %404 = vmatpush1.msra.mxu0 0.0
      %405 = vmatprep.subr.mxu0 0.0
      %406 = vmatpush1.msra.mxu0 0.0
      %407 = vmatprep.subr.mxu0 0.0
      %408 = vmatpush1.msra.mxu0 0.0
      %409 = vmatprep.subr.mxu0 0.0
      %410 = vmatpush1.msra.mxu0 0.0
      %411 = vmatprep.subr.mxu0 0.0
      %412 = vmatpush1.msra.mxu0 0.0
      %413 = vmatprep.subr.mxu0 0.0
      %414 = vmatpush1.msra.mxu0 0.0
      %415 = vmatprep.subr.mxu0 0.0
      %416 = vmatpush1.msra.mxu0 0.0
      %417 = vmatprep.subr.mxu0 0.0
      %418 = vmatpush1.msra.mxu0 0.0
      %419 = vmatprep.subr.mxu0 0.0
      %420 = vmatpush1.msra.mxu0 0.0
      %421 = vmatprep.subr.mxu0 0.0
      %422 = vmatpush1.msra.mxu0 0.0
      %423 = vmatprep.subr.mxu0 0.0
      %424 = vmatpush1.msra.mxu0 0.0
      %425 = vmatprep.subr.mxu0 0.0
      %426 = vmatpush1.msra.mxu0 0.0
      %427 = vmatprep.subr.mxu0 0.0
      %428 = vmatpush1.msra.mxu0 0.0
      %429 = vmatprep.subr.mxu0 0.0
      %430 = vmatpush1.msra.mxu0 0.0
      %431 = vmatprep.subr.mxu0 0.0
      %432 = vmatpush1.msra.mxu0 0.0
      %433 = vmatprep.subr.mxu0 0.0
      %434 = vmatpush1.msra.mxu0 0.0
      %435 = vmatprep.subr.mxu0 0.0
      %436 = vmatpush1.msra.mxu0 0.0
      %437 = vmatprep.subr.mxu0 0.0
      %438 = vmatpush1.msra.mxu0 0.0
      %439 = vmatprep.subr.mxu0 0.0
      %440 = vmatpush1.msra.mxu0 0.0
      %441 = vmatprep.subr.mxu0 0.0
      %442 = vmatpush1.msra.mxu0 0.0
      %443 = vmatprep.mubr.f32.mxu0 0.0
      %444 = vmatmul.mubr.f32.gmra.mrb[0].mxu0 %v373
      %v445 = vpop.f32.mrb[0].mxu0
      %v446 = vadd.f32 0.0, %v445
      %v447 = vpop.f32.mrb[0].mxu0
      %448 = vdwg.mxu0
      %v449 = vld [vmem:[%s2] sm:$0x3]
      %451 = vset.pattern.permute.xlu0 0
      %452 = vperm.xlu0 %451, %v449
      %v453 = vpop.permute.xlu0 %452
      %v455 = vmul.f32 %v446, %v453
      %v456 = vld [vmem:[%s3] sm:$0x3]
      %458 = vset.pattern.permute.xlu0 0
      %459 = vperm.xlu0 %458, %v456
      %v460 = vpop.permute.xlu0 %459
      %v462 = vadd.f32 %v455, %v460
      %v463 = vmax.f32 %v462, 0.0
      %v464 = vld [vmem:[%s4] sm:$0xff]
      %v465 = vld [vmem:[%s4 + $0x8] sm:$0x1]
      %vm466 = vcmask 15360
      %v468 = vsel %vm466, %v464, 0
      %v471 = vsel %vm466, %v465, 0
      %vm473 = vcmask 1041408
      %v475 = vsel %vm473, %v463, 0
      %477 = vmatprep.subr.mxu0 0.0
      %478 = vmatpush1.msra.mxu0 %v475
      %479 = vmatprep.subr.mxu0 0.0
      %480 = vmatpush1.msra.mxu0 0.0
      %481 = vmatprep.subr.mxu0 0.0
      %482 = vmatpush1.msra.mxu0 0.0
      %483 = vmatprep.subr.mxu0 0.0
      %484 = vmatpush1.msra.mxu0 0.0
      %485 = vmatprep.subr.mxu0 0.0
      %486 = vmatpush1.msra.mxu0 0.0
      %487 = vmatprep.subr.mxu0 0.0
      %488 = vmatpush1.msra.mxu0 0.0
      %489 = vmatprep.subr.mxu0 0.0
      %490 = vmatpush1.msra.mxu0 0.0
      %491 = vmatprep.subr.mxu0 0.0
      %492 = vmatpush1.msra.mxu0 0.0
      %493 = vmatprep.subr.mxu0 0.0
      %494 = vmatpush1.msra.mxu0 0.0
      %495 = vmatprep.subr.mxu0 0.0
      %496 = vmatpush1.msra.mxu0 0.0
      %497 = vmatprep.subr.mxu0 0.0
      %498 = vmatpush1.msra.mxu0 0.0
      %499 = vmatprep.subr.mxu0 0.0
      %500 = vmatpush1.msra.mxu0 0.0
      %501 = vmatprep.subr.mxu0 0.0
      %502 = vmatpush1.msra.mxu0 0.0
      %503 = vmatprep.subr.mxu0 0.0
      %504 = vmatpush1.msra.mxu0 0.0
      %505 = vmatprep.subr.mxu0 0.0
      %506 = vmatpush1.msra.mxu0 0.0
      %507 = vmatprep.subr.mxu0 0.0
      %508 = vmatpush1.msra.mxu0 0.0
      %509 = vmatprep.subr.mxu0 0.0
      %510 = vmatpush1.msra.mxu0 0.0
      %511 = vmatprep.subr.mxu0 0.0
      %512 = vmatpush1.msra.mxu0 0.0
      %513 = vmatprep.subr.mxu0 0.0
      %514 = vmatpush1.msra.mxu0 0.0
      %515 = vmatprep.subr.mxu0 0.0
      %516 = vmatpush1.msra.mxu0 0.0
      %517 = vmatprep.subr.mxu0 0.0
      %518 = vmatpush1.msra.mxu0 0.0
      %519 = vmatprep.subr.mxu0 0.0
      %520 = vmatpush1.msra.mxu0 0.0
      %521 = vmatprep.subr.mxu0 0.0
      %522 = vmatpush1.msra.mxu0 0.0
      %523 = vmatprep.subr.mxu0 0.0
      %524 = vmatpush1.msra.mxu0 0.0
      %525 = vmatprep.subr.mxu0 0.0
      %526 = vmatpush1.msra.mxu0 0.0
      %527 = vmatprep.subr.mxu0 0.0
      %528 = vmatpush1.msra.mxu0 0.0
      %529 = vmatprep.subr.mxu0 0.0
      %530 = vmatpush1.msra.mxu0 0.0
      %531 = vmatprep.subr.mxu0 0.0
      %532 = vmatpush1.msra.mxu0 0.0
      %533 = vmatprep.subr.mxu0 0.0
      %534 = vmatpush1.msra.mxu0 0.0
      %535 = vmatprep.subr.mxu0 0.0
      %536 = vmatpush1.msra.mxu0 0.0
      %537 = vmatprep.subr.mxu0 0.0
      %538 = vmatpush1.msra.mxu0 0.0
      %539 = vmatprep.subr.mxu0 0.0
      %540 = vmatpush1.msra.mxu0 0.0
      %541 = vmatprep.mubr.f32.mxu0 0.0
      %542 = vmatmul.mubr.f32.gmra.mrb[0].mxu0 %v468
      %v543 = vpop.f32.mrb[0].mxu0
      %v544 = vadd.f32 0.0, %v543
      %v545 = vpop.f32.mrb[0].mxu0
      %546 = vmatprep.mubr.f32.mxu0 0.0
      %547 = vmatmul.mubr.f32.gmra.mrb[0].mxu0 %v471
      %v548 = vpop.f32.mrb[0].mxu0
      %v549 = vadd.f32 0.0, %v548
      %v550 = vpop.f32.mrb[0].mxu0
      %551 = vdwg.mxu0
      %v552 = vld [vmem:[%s5] sm:$0xff]
      %v553 = vld [vmem:[%s5 + $0x8] sm:$0x1]
      %v554 = vmul.f32 %v544, %v552
      %v555 = vmul.f32 %v549, %v553
      %v556 = vld [vmem:[%s6] sm:$0xff]
      %vm557 = vcmask 130048
      %v559 = vsel %vm557, %v556, 0
      %561 = vmatprep.subr.mxu0 0.0
      %562 = vmatpush1.msra.mxu0 %v358
      %563 = vmatprep.subr.mxu0 0.0
      %564 = vmatpush1.msra.mxu0 %v359
      %565 = vmatprep.subr.mxu0 0.0
      %566 = vmatpush1.msra.mxu0 0.0
      %567 = vmatprep.subr.mxu0 0.0
      %568 = vmatpush1.msra.mxu0 0.0
      %569 = vmatprep.subr.mxu0 0.0
      %570 = vmatpush1.msra.mxu0 0.0
      %571 = vmatprep.subr.mxu0 0.0
      %572 = vmatpush1.msra.mxu0 0.0
      %573 = vmatprep.subr.mxu0 0.0
      %574 = vmatpush1.msra.mxu0 0.0
      %575 = vmatprep.subr.mxu0 0.0
      %576 = vmatpush1.msra.mxu0 0.0
      %577 = vmatprep.subr.mxu0 0.0
      %578 = vmatpush1.msra.mxu0 0.0
      %579 = vmatprep.subr.mxu0 0.0
      %580 = vmatpush1.msra.mxu0 0.0
      %581 = vmatprep.subr.mxu0 0.0
      %582 = vmatpush1.msra.mxu0 0.0
      %583 = vmatprep.subr.mxu0 0.0
      %584 = vmatpush1.msra.mxu0 0.0
      %585 = vmatprep.subr.mxu0 0.0
      %586 = vmatpush1.msra.mxu0 0.0
      %587 = vmatprep.subr.mxu0 0.0
      %588 = vmatpush1.msra.mxu0 0.0
      %589 = vmatprep.subr.mxu0 0.0
      %590 = vmatpush1.msra.mxu0 0.0
      %591 = vmatprep.subr.mxu0 0.0
      %592 = vmatpush1.msra.mxu0 0.0
      %593 = vmatprep.subr.mxu0 0.0
      %594 = vmatpush1.msra.mxu0 0.0
      %595 = vmatprep.subr.mxu0 0.0
      %596 = vmatpush1.msra.mxu0 0.0
      %597 = vmatprep.subr.mxu0 0.0
      %598 = vmatpush1.msra.mxu0 0.0
      %599 = vmatprep.subr.mxu0 0.0
      %600 = vmatpush1.msra.mxu0 0.0
      %601 = vmatprep.subr.mxu0 0.0
      %602 = vmatpush1.msra.mxu0 0.0
      %603 = vmatprep.subr.mxu0 0.0
      %604 = vmatpush1.msra.mxu0 0.0
      %605 = vmatprep.subr.mxu0 0.0
      %606 = vmatpush1.msra.mxu0 0.0
      %607 = vmatprep.subr.mxu0 0.0
      %608 = vmatpush1.msra.mxu0 0.0
      %609 = vmatprep.subr.mxu0 0.0
      %610 = vmatpush1.msra.mxu0 0.0
      %611 = vmatprep.subr.mxu0 0.0
      %612 = vmatpush1.msra.mxu0 0.0
      %613 = vmatprep.subr.mxu0 0.0
      %614 = vmatpush1.msra.mxu0 0.0
      %615 = vmatprep.subr.mxu0 0.0
      %616 = vmatpush1.msra.mxu0 0.0
      %617 = vmatprep.subr.mxu0 0.0
      %618 = vmatpush1.msra.mxu0 0.0
      %619 = vmatprep.subr.mxu0 0.0
      %620 = vmatpush1.msra.mxu0 0.0
      %621 = vmatprep.subr.mxu0 0.0
      %622 = vmatpush1.msra.mxu0 0.0
      %623 = vmatprep.subr.mxu0 0.0
      %624 = vmatpush1.msra.mxu0 0.0
      %625 = vmatprep.mubr.f32.mxu0 0.0
      %626 = vmatmul.mubr.f32.gmra.mrb[0].mxu0 %v559
      %v627 = vpop.f32.mrb[0].mxu0
      %v628 = vadd.f32 0.0, %v627
      %v629 = vpop.f32.mrb[0].mxu0
      %630 = vdwg.mxu0
      %vm631 = vcmask 670720
      %632 = vst.msk [vmem:[#allocation2] sm:$0xff] %vm631, 0.0
      %634 = vrot.lane.b32.xlu0 %v628, 9
      %v635 = vpop.permute.xlu0 %634
      %vm637 = vcmask 597064
      %638 = vst.msk [vmem:[#allocation2] sm:$0xff] %vm637, %v635
      %v639 = vld [vmem:[#allocation2] sm:$0xff]
      %v640 = vlaneseq
      %v641 = vshrl.u32 %v640, 7
      %v642 = vsub.s32 0, %v641
      %v643 = vrot.slane %v554, %v642
      %v644 = vmul.f32 %v643, %v639
      %v645 = vadd.f32 %v644, 0.0
      %v646 = vlaneseq
      %v647 = vshrl.u32 %v646, 7
      %v648 = vsub.s32 1, %v647
      %v649 = vrot.slane %v554, %v648
      %v651 = vrot.slane %v639, 4
      %652 = vrot.lane.b32.xlu0 %v651, 127
      %v653 = vpop.permute.xlu0 %652
      %v655 = vmul.f32 %v649, %v653
      %v657 = vrot.slane %v655, 2
      %v659 = vadd.f32 %v645, %v657
      %v660 = vlaneseq
      %v661 = vshrl.u32 %v660, 7
      %v662 = vsub.s32 2, %v661
      %v663 = vrot.slane %v554, %v662
      %v664 = vrot.slane %v639, 6
      %665 = vrot.lane.b32.xlu0 %v664, 127
      %v666 = vpop.permute.xlu0 %665
      %v668 = vmul.f32 %v663, %v666
      %v670 = vrot.slane %v668, 2
      %v672 = vadd.f32 %v659, %v670
      %v673 = vlaneseq
      %v674 = vshrl.u32 %v673, 7
      %v675 = vsub.s32 3, %v674
      %v676 = vrot.slane %v554, %v675
      %v677 = vrot.slane %v639, 2
      %678 = vrot.lane.b32.xlu0 %v677, 120
      %v679 = vpop.permute.xlu0 %678
      %v681 = vmul.f32 %v676, %v679
      %v683 = vrot.slane %v681, 2
      %v685 = vadd.f32 %v672, %v683
      %v686 = vlaneseq
      %v687 = vshrl.u32 %v686, 7
      %v688 = vsub.s32 4, %v687
      %v689 = vrot.slane %v554, %v688
      %690 = vrot.lane.b32.xlu0 %v639, 119
      %v691 = vpop.permute.xlu0 %690
      %v693 = vmul.f32 %v689, %v691
      %v695 = vrot.slane %v693, 2
      %v697 = vadd.f32 %v685, %v695
      %v698 = vlaneseq
      %v699 = vshrl.u32 %v698, 7
      %v700 = vsub.s32 5, %v699
      %v701 = vrot.slane %v554, %v700
      %702 = vrot.lane.b32.xlu0 %v677, 119
      %v703 = vpop.permute.xlu0 %702
      %v705 = vmul.f32 %v701, %v703
      %v707 = vrot.slane %v705, 2
      %v709 = vadd.f32 %v697, %v707
      %v710 = vlaneseq
      %v711 = vshrl.u32 %v710, 7
      %v712 = vsub.s32 6, %v711
      %v713 = vrot.slane %v554, %v712
      %714 = vrot.lane.b32.xlu0 %v664, 120
      %v715 = vpop.permute.xlu0 %714
      %v717 = vmul.f32 %v713, %v715
      %v719 = vrot.slane %v717, 2
      %v721 = vadd.f32 %v709, %v719
      %v722 = vlaneseq
      %v723 = vshrl.u32 %v722, 7
      %v724 = vsub.s32 7, %v723
      %v725 = vrot.slane %v554, %v724
      %726 = vrot.lane.b32.xlu0 %v651, 119
      %v727 = vpop.permute.xlu0 %726
      %v729 = vmul.f32 %v725, %v727
      %v731 = vrot.slane %v729, 2
      %v733 = vadd.f32 %v721, %v731
      %v734 = vlaneseq
      %v735 = vshrl.u32 %v734, 7
      %v736 = vsub.s32 0, %v735
      %v737 = vrot.slane %v555, %v736
      %738 = vrot.lane.b32.xlu0 %v664, 119
      %v739 = vpop.permute.xlu0 %738
      %v741 = vmul.f32 %v737, %v739
      %v743 = vrot.slane %v741, 2
      %v745 = vadd.f32 %v733, %v743
      %v746 = vld [vmem:[%s7] sm:$0x3]
      %748 = vset.pattern.permute.xlu0 0
      %749 = vperm.xlu0 %748, %v746
      %v750 = vpop.permute.xlu0 %749
      %v751 = vrot.slane %v750, 2
      %v753 = vmul.f32 %v745, %v751
      %v754 = vld [vmem:[%s8] sm:$0x3]
      %756 = vset.pattern.permute.xlu0 0
      %757 = vperm.xlu0 %756, %v754
      %v758 = vpop.permute.xlu0 %757
      %v759 = vrot.slane %v758, 2
      %v761 = vadd.f32 %v753, %v759
      %vm762 = vcmp.gt.f32.partialorder %v761, 0.0
      %v763 = vld [vmem:[%s9] sm:$0x3]
      %765 = vset.pattern.permute.xlu0 0
      %766 = vperm.xlu0 %765, %v763
      %v767 = vpop.permute.xlu0 %766
      %v770 = vrot.slane %v761, 6
      %v772 = vmul.f32 %v767, %v770
      %v774 = vrot.slane %v772, 2
      %v776 = vsel %vm762, %v761, %v774
      %vm777 = vcmask 523270
      %778 = vst.msk [vmem:[%s357 - $0x6] sm:$0xc0] %vm777, %v776
      %p779 = scmp.lt.s32.totalorder %s21, 1
      %s780 = scalar_select %p779, %s21, 1
      %s781 = smul.addr %s780, 2
      %s782 = scalar_lea.vmem %s10, %s781
      // Predicated region
      $region61: #{dinp_block_forward.2} parent=59 // pred_check
        %p783 = pneg %p254
      $region62: #{dinp_block_forward.2} parent=59 // pred_check_branch
        %785 = sbr.rel (%p783) target = $region64
      $region63: #{dinp_block_forward.2} parent=59 // pred_region
        _
      $region64: #{dinp_block_forward.2} parent=59 // pred_fallthru
        _
    $region60: #{dinp_block_forward.2} parent=5 // pred_fallthru
      _
    %p786 = scmp.le.s32.totalorder 2, %s16
    // Predicated region
    $region65: #{dinp_block_forward.2} parent=5 // pred_check
      %p787 = pneg %p786
    $region66: #{dinp_block_forward.2} parent=5 // pred_check_branch
      %789 = sbr.rel (%p787) target = $region68
    $region67: #{dinp_block_forward.2} parent=5 // pred_region
      %s790 = ssub.s32 %s16, 2
      // Predicated region
      $region69: #{dinp_block_forward.2} parent=67 // pred_check
        %p791 = pneg %p260
      $region70: #{dinp_block_forward.2} parent=67 // pred_check_branch
        %793 = sbr.rel (%p791) target = $region72
      $region71: #{dinp_block_forward.2} parent=67 // pred_region
        %p794 = scmp.lt.s32.totalorder %s22, 1
        %s795 = scalar_select %p794, %s22, 1
        %s796 = smul.addr %s795, 2
        %s797 = scalar_lea.vmem %s10, %s796
      $region72: #{dinp_block_forward.2} parent=67 // pred_fallthru
        _
    $region68: #{dinp_block_forward.2} parent=5 // pred_fallthru
      _
  $region6: #{dinp_block_forward.2} parent=0 // loop_footer
    %s20 = sadd.s32 1, %s16
  $region7: #{dinp_block_forward.2} parent=0 // loop_footer_branch
    %15 = sbr.rel target = $region3
  $region8: #{dinp_block_forward.2} parent=0 // loop_exit
    _

// kernel: dinp_block_forward.3
$region0: #{dinp_block_forward.3}
  #allocation0 [shape = 'u32[]', space=smem, size = 0x4, offset = 0x4, fixed_abs, tag = 'smem constant byte address 0x4 - core index']
  #allocation1 [shape = 'u32[144,128]{1,0:T(1,128)}', space=vmem, size = 0x12000, scoped, tag = 'internal scratch']
  #allocation2 [shape = 'f32[4,136]{1,0:T(4,128)}', space=vmem, size = 0x1000, scoped, tag = 'scratch operand']
  %s0 = inlined_call_operand.vmem [shape: f32[2,2,64], index: 0, kind: input, shape index: {}]
  %s1 = inlined_call_operand.vmem [shape: f32[20,2], index: 1, kind: input, shape index: {}]
  %s2 = inlined_call_operand.vmem [shape: f32[20,1], index: 2, kind: input, shape index: {}]
  %s3 = inlined_call_operand.vmem [shape: f32[20,1], index: 3, kind: input, shape index: {}]
  %s4 = inlined_call_operand.vmem [shape: f32[45,20], index: 4, kind: input, shape index: {}]
  %s5 = inlined_call_operand.vmem [shape: f32[45,64], index: 5, kind: input, shape index: {}]
  %s6 = inlined_call_operand.vmem [shape: f32[20,2], index: 6, kind: input, shape index: {}]
  %s7 = inlined_call_operand.vmem [shape: f32[12,1], index: 7, kind: input, shape index: {}]
  %s8 = inlined_call_operand.vmem [shape: f32[12,1], index: 8, kind: input, shape index: {}]
  %s9 = inlined_call_operand.vmem [shape: f32[12,1], index: 9, kind: input, shape index: {}]
  %s10 = inlined_call_operand.vmem [shape: f32[12,1], index: 10, kind: input, shape index: {}]
  %s11 = inlined_call_operand.vmem [shape: f32[12,1], index: 11, kind: input, shape index: {}]
  %s12 = inlined_call_operand.vmem [shape: f32[12,1], index: 12, kind: input, shape index: {}]
  %s13 = inlined_call_operand.vmem [shape: f32[2,12,64], index: 13, kind: output, shape index: {}]
  %s14 = sld [smem:[#allocation0]]
  $region85: #{dinp_block_forward.3} parent=0
    _
  %s16 = ssub.s32 1, %s14
  %s17 = scalar_select 0, %s16, %s14
  loop: start=0, step=1, limit=4
  $region2: #{dinp_block_forward.3} parent=0 // loop_pre_header
    _
  $region3: #{dinp_block_forward.3} parent=0 // loop_header
    %s19 = sphi 0, %s23
    %p20 = scmp.ge.s32.totalorder %s19, 4
    %s29 = sphi 0, %s31
    %s32 = sphi 0, %s29
    %s33 = sphi 0, %s32
    %s49 = sphi 0, %s33
    %s53 = sphi 0, %s53
    %s55 = sphi 0, %s53
    %s56 = sphi 0, %s55
    %s70 = sphi 0, %s56
    %s74 = sphi 0, %s74
    %s76 = sphi 0, %s74
    %s77 = sphi 0, %s76
    %s91 = sphi 0, %s77
    %s95 = sphi 0, %s95
    %s97 = sphi 0, %s95
    %s98 = sphi 0, %s97
    %s112 = sphi 0, %s98
    %s116 = sphi 0, %s116
    %s118 = sphi 0, %s116
    %s119 = sphi 0, %s118
    %s133 = sphi 0, %s119
    %s137 = sphi 0, %s137
    %s139 = sphi 0, %s137
    %s140 = sphi 0, %s139
    %s154 = sphi 0, %s140
    %s158 = sphi 0, %s158
    %s160 = sphi 0, %s158
    %s161 = sphi 0, %s160
    %s175 = sphi 0, %s161
    %s179 = sphi 0, %s179
    %s181 = sphi 0, %s179
    %s182 = sphi 0, %s181
    %s196 = sphi 0, %s182
    %s200 = sphi 0, %s200
    %s202 = sphi 0, %s200
    %s203 = sphi 0, %s202
    %s217 = sphi 0, %s203
    %s221 = sphi 0, %s221
    %s223 = sphi 0, %s221
    %s224 = sphi 0, %s223
    %s238 = sphi 0, %s224
    %s242 = sphi 0, %s242
    %s244 = sphi 0, %s242
    %s245 = sphi 0, %s244
    %s259 = sphi 0, %s245
    %s263 = sphi 0, %s263
    %s265 = sphi 0, %s263
    %s266 = sphi 0, %s265
    %s280 = sphi 0, %s266
    %s284 = sphi 0, %s284
    %s286 = sphi 0, %s284
    %s287 = sphi 0, %s286
    %s301 = sphi 0, %s287
    %s307 = sphi 0, %s309
    %s310 = sphi 0, %s307
    %s311 = sphi 0, %s310
    %s327 = sphi 0, %s311
  $region4: #{dinp_block_forward.3} parent=0 // loop_header_branch
    %22 = sbr.rel (%p20) target = $region8
  $region5: #{dinp_block_forward.3} parent=0 // loop_body
    %s24 = ssub.s32 %s19, 1
    %s25 = ssub.s32 %s19, 2
    %s26 = sadd.s32 %s19, 1
    %s27 = ssub.s32 %s19, %s26
    %p28 = scmp.eq.s32.totalorder %s27, 0
    %s30 = sadd.s32 %s29, 1
    %s31 = scalar_select %p28, %s29, %s30
    %p34 = pneg %p28
    %p35 = scmp.eq.s32.totalorder %s19, 1
    %p36 = por %p34, %p35
    %p37 = scmp.ne.s32.totalorder %s29, %s32
    %p38 = scmp.eq.s32.totalorder %s19, 0
    %p39 = por %p37, %p38
    %p40 = scmp.ne.s32.totalorder %s29, %s32
    %p41 = scmp.eq.s32.totalorder %s24, 1
    %p42 = por %p40, %p41
    %p43 = scmp.ne.s32.totalorder %s32, %s33
    %p44 = scmp.eq.s32.totalorder %s24, 0
    %p45 = por %p43, %p44
    %p46 = scmp.ne.s32.totalorder %s32, %s33
    %p47 = scmp.eq.s32.totalorder %s25, 1
    %p48 = por %p46, %p47
    %p50 = scmp.ne.s32.totalorder %s33, %s49
    %p51 = scmp.eq.s32.totalorder %s25, 0
    %p52 = por %p50, %p51
    %s54 = sadd.s32 %s53, 1
    %p57 = scmp.eq.s32.totalorder %s19, 1
    %p58 = scmp.ne.s32.totalorder %s53, %s55
    %p59 = scmp.eq.s32.totalorder %s19, 0
    %p60 = por %p58, %p59
    %p61 = scmp.ne.s32.totalorder %s53, %s55
    %p62 = scmp.eq.s32.totalorder %s24, 1
    %p63 = por %p61, %p62
    %p64 = scmp.ne.s32.totalorder %s55, %s56
    %p65 = scmp.eq.s32.totalorder %s24, 0
    %p66 = por %p64, %p65
    %p67 = scmp.ne.s32.totalorder %s55, %s56
    %p68 = scmp.eq.s32.totalorder %s25, 1
    %p69 = por %p67, %p68
    %p71 = scmp.ne.s32.totalorder %s56, %s70
    %p72 = scmp.eq.s32.totalorder %s25, 0
    %p73 = por %p71, %p72
    %s75 = sadd.s32 %s74, 1
    %p78 = scmp.eq.s32.totalorder %s19, 1
    %p79 = scmp.ne.s32.totalorder %s74, %s76
    %p80 = scmp.eq.s32.totalorder %s19, 0
    %p81 = por %p79, %p80
    %p82 = scmp.ne.s32.totalorder %s74, %s76
    %p83 = scmp.eq.s32.totalorder %s24, 1
    %p84 = por %p82, %p83
    %p85 = scmp.ne.s32.totalorder %s76, %s77
    %p86 = scmp.eq.s32.totalorder %s24, 0
    %p87 = por %p85, %p86
    %p88 = scmp.ne.s32.totalorder %s76, %s77
    %p89 = scmp.eq.s32.totalorder %s25, 1
    %p90 = por %p88, %p89
    %p92 = scmp.ne.s32.totalorder %s77, %s91
    %p93 = scmp.eq.s32.totalorder %s25, 0
    %p94 = por %p92, %p93
    %s96 = sadd.s32 %s95, 1
    %p99 = scmp.eq.s32.totalorder %s19, 1
    %p100 = scmp.ne.s32.totalorder %s95, %s97
    %p101 = scmp.eq.s32.totalorder %s19, 0
    %p102 = por %p100, %p101
    %p103 = scmp.ne.s32.totalorder %s95, %s97
    %p104 = scmp.eq.s32.totalorder %s24, 1
    %p105 = por %p103, %p104
    %p106 = scmp.ne.s32.totalorder %s97, %s98
    %p107 = scmp.eq.s32.totalorder %s24, 0
    %p108 = por %p106, %p107
    %p109 = scmp.ne.s32.totalorder %s97, %s98
    %p110 = scmp.eq.s32.totalorder %s25, 1
    %p111 = por %p109, %p110
    %p113 = scmp.ne.s32.totalorder %s98, %s112
    %p114 = scmp.eq.s32.totalorder %s25, 0
    %p115 = por %p113, %p114
    %s117 = sadd.s32 %s116, 1
    %p120 = scmp.eq.s32.totalorder %s19, 1
    %p121 = scmp.ne.s32.totalorder %s116, %s118
    %p122 = scmp.eq.s32.totalorder %s19, 0
    %p123 = por %p121, %p122
    %p124 = scmp.ne.s32.totalorder %s116, %s118
    %p125 = scmp.eq.s32.totalorder %s24, 1
    %p126 = por %p124, %p125
    %p127 = scmp.ne.s32.totalorder %s118, %s119
    %p128 = scmp.eq.s32.totalorder %s24, 0
    %p129 = por %p127, %p128
    %p130 = scmp.ne.s32.totalorder %s118, %s119
    %p131 = scmp.eq.s32.totalorder %s25, 1
    %p132 = por %p130, %p131
    %p134 = scmp.ne.s32.totalorder %s119, %s133
    %p135 = scmp.eq.s32.totalorder %s25, 0
    %p136 = por %p134, %p135
    %s138 = sadd.s32 %s137, 1
    %p141 = scmp.eq.s32.totalorder %s19, 1
    %p142 = scmp.ne.s32.totalorder %s137, %s139
    %p143 = scmp.eq.s32.totalorder %s19, 0
    %p144 = por %p142, %p143
    %p145 = scmp.ne.s32.totalorder %s137, %s139
    %p146 = scmp.eq.s32.totalorder %s24, 1
    %p147 = por %p145, %p146
    %p148 = scmp.ne.s32.totalorder %s139, %s140
    %p149 = scmp.eq.s32.totalorder %s24, 0
    %p150 = por %p148, %p149
    %p151 = scmp.ne.s32.totalorder %s139, %s140
    %p152 = scmp.eq.s32.totalorder %s25, 1
    %p153 = por %p151, %p152
    %p155 = scmp.ne.s32.totalorder %s140, %s154
    %p156 = scmp.eq.s32.totalorder %s25, 0
    %p157 = por %p155, %p156
    %s159 = sadd.s32 %s158, 1
    %p162 = scmp.eq.s32.totalorder %s19, 1
    %p163 = scmp.ne.s32.totalorder %s158, %s160
    %p164 = scmp.eq.s32.totalorder %s19, 0
    %p165 = por %p163, %p164
    %p166 = scmp.ne.s32.totalorder %s158, %s160
    %p167 = scmp.eq.s32.totalorder %s24, 1
    %p168 = por %p166, %p167
    %p169 = scmp.ne.s32.totalorder %s160, %s161
    %p170 = scmp.eq.s32.totalorder %s24, 0
    %p171 = por %p169, %p170
    %p172 = scmp.ne.s32.totalorder %s160, %s161
    %p173 = scmp.eq.s32.totalorder %s25, 1
    %p174 = por %p172, %p173
    %p176 = scmp.ne.s32.totalorder %s161, %s175
    %p177 = scmp.eq.s32.totalorder %s25, 0
    %p178 = por %p176, %p177
    %s180 = sadd.s32 %s179, 1
    %p183 = scmp.eq.s32.totalorder %s19, 1
    %p184 = scmp.ne.s32.totalorder %s179, %s181
    %p185 = scmp.eq.s32.totalorder %s19, 0
    %p186 = por %p184, %p185
    %p187 = scmp.ne.s32.totalorder %s179, %s181
    %p188 = scmp.eq.s32.totalorder %s24, 1
    %p189 = por %p187, %p188
    %p190 = scmp.ne.s32.totalorder %s181, %s182
    %p191 = scmp.eq.s32.totalorder %s24, 0
    %p192 = por %p190, %p191
    %p193 = scmp.ne.s32.totalorder %s181, %s182
    %p194 = scmp.eq.s32.totalorder %s25, 1
    %p195 = por %p193, %p194
    %p197 = scmp.ne.s32.totalorder %s182, %s196
    %p198 = scmp.eq.s32.totalorder %s25, 0
    %p199 = por %p197, %p198
    %s201 = sadd.s32 %s200, 1
    %p204 = scmp.eq.s32.totalorder %s19, 1
    %p205 = scmp.ne.s32.totalorder %s200, %s202
    %p206 = scmp.eq.s32.totalorder %s19, 0
    %p207 = por %p205, %p206
    %p208 = scmp.ne.s32.totalorder %s200, %s202
    %p209 = scmp.eq.s32.totalorder %s24, 1
    %p210 = por %p208, %p209
    %p211 = scmp.ne.s32.totalorder %s202, %s203
    %p212 = scmp.eq.s32.totalorder %s24, 0
    %p213 = por %p211, %p212
    %p214 = scmp.ne.s32.totalorder %s202, %s203
    %p215 = scmp.eq.s32.totalorder %s25, 1
    %p216 = por %p214, %p215
    %p218 = scmp.ne.s32.totalorder %s203, %s217
    %p219 = scmp.eq.s32.totalorder %s25, 0
    %p220 = por %p218, %p219
    %s222 = sadd.s32 %s221, 1
    %p225 = scmp.eq.s32.totalorder %s19, 1
    %p226 = scmp.ne.s32.totalorder %s221, %s223
    %p227 = scmp.eq.s32.totalorder %s19, 0
    %p228 = por %p226, %p227
    %p229 = scmp.ne.s32.totalorder %s221, %s223
    %p230 = scmp.eq.s32.totalorder %s24, 1
    %p231 = por %p229, %p230
    %p232 = scmp.ne.s32.totalorder %s223, %s224
    %p233 = scmp.eq.s32.totalorder %s24, 0
    %p234 = por %p232, %p233
    %p235 = scmp.ne.s32.totalorder %s223, %s224
    %p236 = scmp.eq.s32.totalorder %s25, 1
    %p237 = por %p235, %p236
    %p239 = scmp.ne.s32.totalorder %s224, %s238
    %p240 = scmp.eq.s32.totalorder %s25, 0
    %p241 = por %p239, %p240
    %s243 = sadd.s32 %s242, 1
    %p246 = scmp.eq.s32.totalorder %s19, 1
    %p247 = scmp.ne.s32.totalorder %s242, %s244
    %p248 = scmp.eq.s32.totalorder %s19, 0
    %p249 = por %p247, %p248
    %p250 = scmp.ne.s32.totalorder %s242, %s244
    %p251 = scmp.eq.s32.totalorder %s24, 1
    %p252 = por %p250, %p251
    %p253 = scmp.ne.s32.totalorder %s244, %s245
    %p254 = scmp.eq.s32.totalorder %s24, 0
    %p255 = por %p253, %p254
    %p256 = scmp.ne.s32.totalorder %s244, %s245
    %p257 = scmp.eq.s32.totalorder %s25, 1
    %p258 = por %p256, %p257
    %p260 = scmp.ne.s32.totalorder %s245, %s259
    %p261 = scmp.eq.s32.totalorder %s25, 0
    %p262 = por %p260, %p261
    %s264 = sadd.s32 %s263, 1
    %p267 = scmp.eq.s32.totalorder %s19, 1
    %p268 = scmp.ne.s32.totalorder %s263, %s265
    %p269 = scmp.eq.s32.totalorder %s19, 0
    %p270 = por %p268, %p269
    %p271 = scmp.ne.s32.totalorder %s263, %s265
    %p272 = scmp.eq.s32.totalorder %s24, 1
    %p273 = por %p271, %p272
    %p274 = scmp.ne.s32.totalorder %s265, %s266
    %p275 = scmp.eq.s32.totalorder %s24, 0
    %p276 = por %p274, %p275
    %p277 = scmp.ne.s32.totalorder %s265, %s266
    %p278 = scmp.eq.s32.totalorder %s25, 1
    %p279 = por %p277, %p278
    %p281 = scmp.ne.s32.totalorder %s266, %s280
    %p282 = scmp.eq.s32.totalorder %s25, 0
    %p283 = por %p281, %p282
    %s285 = sadd.s32 %s284, 1
    %p288 = scmp.eq.s32.totalorder %s19, 1
    %p289 = scmp.ne.s32.totalorder %s284, %s286
    %p290 = scmp.eq.s32.totalorder %s19, 0
    %p291 = por %p289, %p290
    %p292 = scmp.ne.s32.totalorder %s284, %s286
    %p293 = scmp.eq.s32.totalorder %s24, 1
    %p294 = por %p292, %p293
    %p295 = scmp.ne.s32.totalorder %s286, %s287
    %p296 = scmp.eq.s32.totalorder %s24, 0
    %p297 = por %p295, %p296
    %p298 = scmp.ne.s32.totalorder %s286, %s287
    %p299 = scmp.eq.s32.totalorder %s25, 1
    %p300 = por %p298, %p299
    %p302 = scmp.ne.s32.totalorder %s287, %s301
    %p303 = scmp.eq.s32.totalorder %s25, 0
    %p304 = por %p302, %p303
    %s305 = ssub.s32 %s19, %s26
    %p306 = scmp.eq.s32.totalorder %s305, 0
    %s308 = sadd.s32 %s307, 1
    %s309 = scalar_select %p306, %s307, %s308
    %p312 = pneg %p306
    %p313 = scmp.eq.s32.totalorder %s19, 1
    %p314 = por %p312, %p313
    %p315 = scmp.ne.s32.totalorder %s307, %s310
    %p316 = scmp.eq.s32.totalorder %s19, 0
    %p317 = por %p315, %p316
    %p318 = scmp.ne.s32.totalorder %s307, %s310
    %p319 = scmp.eq.s32.totalorder %s24, 1
    %p320 = por %p318, %p319
    %p321 = scmp.ne.s32.totalorder %s310, %s311
    %p322 = scmp.eq.s32.totalorder %s24, 0
    %p323 = por %p321, %p322
    %p324 = scmp.ne.s32.totalorder %s310, %s311
    %p325 = scmp.eq.s32.totalorder %s25, 1
    %p326 = por %p324, %p325
    %p328 = scmp.ne.s32.totalorder %s311, %s327
    %p329 = scmp.eq.s32.totalorder %s25, 0
    %p330 = por %p328, %p329
    %p331 = scmp.le.s32.totalorder 1, %s19
    %p332 = scmp.lt.s32.totalorder %s19, 3
    %p333 = pnand %p331, %p332
    %p334 = pneg %p333
    // Predicated region
    $region9: #{dinp_block_forward.3} parent=5 // pred_check
      _
    $region10: #{dinp_block_forward.3} parent=5 // pred_check_branch
      %336 = sbr.rel (%p333) target = $region12
    $region11: #{dinp_block_forward.3} parent=5 // pred_region
      %s337 = ssub.s32 %s19, 1
      // Predicated region
      $region13: #{dinp_block_forward.3} parent=11 // pred_check
        %p338 = pneg %p66
      $region14: #{dinp_block_forward.3} parent=11 // pred_check_branch
        %340 = sbr.rel (%p338) target = $region16
      $region15: #{dinp_block_forward.3} parent=11 // pred_region
        _
      $region16: #{dinp_block_forward.3} parent=11 // pred_fallthru
        _
      // Predicated region
      $region17: #{dinp_block_forward.3} parent=11 // pred_check
        %p341 = pneg %p87
      $region18: #{dinp_block_forward.3} parent=11 // pred_check_branch
        %343 = sbr.rel (%p341) target = $region20
      $region19: #{dinp_block_forward.3} parent=11 // pred_region
        _
      $region20: #{dinp_block_forward.3} parent=11 // pred_fallthru
        _
      // Predicated region
      $region21: #{dinp_block_forward.3} parent=11 // pred_check
        %p344 = pneg %p108
      $region22: #{dinp_block_forward.3} parent=11 // pred_check_branch
        %346 = sbr.rel (%p344) target = $region24
      $region23: #{dinp_block_forward.3} parent=11 // pred_region
        _
      $region24: #{dinp_block_forward.3} parent=11 // pred_fallthru
        _
      // Predicated region
      $region25: #{dinp_block_forward.3} parent=11 // pred_check
        %p347 = pneg %p129
      $region26: #{dinp_block_forward.3} parent=11 // pred_check_branch
        %349 = sbr.rel (%p347) target = $region28
      $region27: #{dinp_block_forward.3} parent=11 // pred_region
        _
      $region28: #{dinp_block_forward.3} parent=11 // pred_fallthru
        _
      // Predicated region
      $region29: #{dinp_block_forward.3} parent=11 // pred_check
        %p350 = pneg %p150
      $region30: #{dinp_block_forward.3} parent=11 // pred_check_branch
        %352 = sbr.rel (%p350) target = $region32
      $region31: #{dinp_block_forward.3} parent=11 // pred_region
        _
      $region32: #{dinp_block_forward.3} parent=11 // pred_fallthru
        _
      // Predicated region
      $region33: #{dinp_block_forward.3} parent=11 // pred_check
        %p353 = pneg %p171
      $region34: #{dinp_block_forward.3} parent=11 // pred_check_branch
        %355 = sbr.rel (%p353) target = $region36
      $region35: #{dinp_block_forward.3} parent=11 // pred_region
        _
      $region36: #{dinp_block_forward.3} parent=11 // pred_fallthru
        _
      // Predicated region
      $region37: #{dinp_block_forward.3} parent=11 // pred_check
        %p356 = pneg %p192
      $region38: #{dinp_block_forward.3} parent=11 // pred_check_branch
        %358 = sbr.rel (%p356) target = $region40
      $region39: #{dinp_block_forward.3} parent=11 // pred_region
        _
      $region40: #{dinp_block_forward.3} parent=11 // pred_fallthru
        _
      // Predicated region
      $region41: #{dinp_block_forward.3} parent=11 // pred_check
        %p359 = pneg %p213
      $region42: #{dinp_block_forward.3} parent=11 // pred_check_branch
        %361 = sbr.rel (%p359) target = $region44
      $region43: #{dinp_block_forward.3} parent=11 // pred_region
        _
      $region44: #{dinp_block_forward.3} parent=11 // pred_fallthru
        _
      // Predicated region
      $region45: #{dinp_block_forward.3} parent=11 // pred_check
        %p362 = pneg %p234
      $region46: #{dinp_block_forward.3} parent=11 // pred_check_branch
        %364 = sbr.rel (%p362) target = $region48
      $region47: #{dinp_block_forward.3} parent=11 // pred_region
        _
      $region48: #{dinp_block_forward.3} parent=11 // pred_fallthru
        _
      // Predicated region
      $region49: #{dinp_block_forward.3} parent=11 // pred_check
        %p365 = pneg %p255
      $region50: #{dinp_block_forward.3} parent=11 // pred_check_branch
        %367 = sbr.rel (%p365) target = $region52
      $region51: #{dinp_block_forward.3} parent=11 // pred_region
        _
      $region52: #{dinp_block_forward.3} parent=11 // pred_fallthru
        _
      // Predicated region
      $region53: #{dinp_block_forward.3} parent=11 // pred_check
        %p368 = pneg %p276
      $region54: #{dinp_block_forward.3} parent=11 // pred_check_branch
        %370 = sbr.rel (%p368) target = $region56
      $region55: #{dinp_block_forward.3} parent=11 // pred_region
        _
      $region56: #{dinp_block_forward.3} parent=11 // pred_fallthru
        _
      // Predicated region
      $region57: #{dinp_block_forward.3} parent=11 // pred_check
        %p371 = pneg %p297
      $region58: #{dinp_block_forward.3} parent=11 // pred_check_branch
        %373 = sbr.rel (%p371) target = $region60
      $region59: #{dinp_block_forward.3} parent=11 // pred_region
        _
      $region60: #{dinp_block_forward.3} parent=11 // pred_fallthru
        _
    $region12: #{dinp_block_forward.3} parent=5 // pred_fallthru
      _
    %p374 = scmp.lt.s32.totalorder %s19, 2
    // Predicated region
    $region61: #{dinp_block_forward.3} parent=5 // pred_check
      %p375 = pneg %p374
    $region62: #{dinp_block_forward.3} parent=5 // pred_check_branch
      %377 = sbr.rel (%p375) target = $region64
    $region63: #{dinp_block_forward.3} parent=5 // pred_region
      // Predicated region
      $region65: #{dinp_block_forward.3} parent=63 // pred_check
        %p378 = pneg %p39
      $region66: #{dinp_block_forward.3} parent=63 // pred_check_branch
        %380 = sbr.rel (%p378) target = $region68
      $region67: #{dinp_block_forward.3} parent=63 // pred_region
        %p381 = scmp.lt.s32.totalorder %s19, 1
        %s382 = scalar_select %p381, %s19, 1
        %s383 = smul.addr %s382, 2
        %s384 = scalar_lea.vmem %s0, %s383
      $region68: #{dinp_block_forward.3} parent=63 // pred_fallthru
        _
    $region64: #{dinp_block_forward.3} parent=5 // pred_fallthru
      _
    %p385 = scmp.le.s32.totalorder 1, %s19
    %p386 = scmp.lt.s32.totalorder %s19, 3
    %p387 = pnand %p385, %p386
    %p388 = pneg %p387
    // Predicated region
    $region69: #{dinp_block_forward.3} parent=5 // pred_check
      _
    $region70: #{dinp_block_forward.3} parent=5 // pred_check_branch
      %390 = sbr.rel (%p387) target = $region72
    $region71: #{dinp_block_forward.3} parent=5 // pred_region
      %s391 = ssub.s32 %s19, 1
      %p392 = scmp.lt.s32.totalorder %s24, 1
      %s393 = scalar_select %p392, %s24, 1
      %s394 = smul.addr %s393, 2
      %s395 = scalar_lea.vmem %s0, %s394
      %p396 = pneg %p45
      %p397 = pneg %p42
      %p398 = pneg %p66
      %p399 = pneg %p63
      %p400 = pneg %p87
      %p401 = pneg %p84
      %p402 = pneg %p108
      %p403 = pneg %p105
      %p404 = pneg %p129
      %p405 = pneg %p126
      %p406 = pneg %p150
      %p407 = pneg %p147
      %p408 = pneg %p171
      %p409 = pneg %p168
      %p410 = pneg %p192
      %p411 = pneg %p189
      %p412 = pneg %p213
      %p413 = pneg %p210
      %p414 = pneg %p234
      %p415 = pneg %p231
      %p416 = pneg %p255
      %p417 = pneg %p252
      %p418 = pneg %p276
      %p419 = pneg %p273
      %p420 = pneg %p297
      %p421 = pneg %p294
      %p422 = pneg %p323
      %p423 = pneg %p320
      %p424 = scmp.lt.s32.totalorder %s24, 1
      %s425 = scalar_select %p424, %s24, 1
      %s426 = smul.addr %s425, 2
      %s427 = smul.addr %s426, 8
      %s428 = scalar_lea.vmem %s13, %s427
      %p429 = scmp.lt.s32.totalorder %s24, 1
      %s430 = scalar_select %p429, %s24, 1
      %s431 = smul.addr %s430, 2
      %s432 = scalar_lea.vmem %s0, %s431
      %p433 = scmp.lt.s32.totalorder %s24, 1
      %s434 = scalar_select %p433, %s24, 1
      %s435 = smul.addr %s434, 2
      %s436 = smul.addr %s435, 8
      %s437 = scalar_lea.vmem %s13, %s436
      %v438 = vld [vmem:[%s432] sm:$0x3]
      %v439 = vld [vmem:[%s1] sm:$0xff]
      %v440 = vld [vmem:[%s1 + $0x8] sm:$0xff]
      %v441 = vld [vmem:[%s1 + $0x10] sm:$0xf]
      %vm442 = vcmask 15360
      %v444 = vsel %vm442, %v439, 0
      %v447 = vsel %vm442, %v440, 0
      %v450 = vsel %vm442, %v441, 0
      %vm452 = vcmask 1041408
      %v454 = vsel %vm452, %v438, 0
      %456 = vmatprep.subr.mxu0 0.0
      %457 = vmatpush1.msra.mxu0 %v454
      %458 = vmatprep.subr.mxu0 0.0
      %459 = vmatpush1.msra.mxu0 0.0
      %460 = vmatprep.subr.mxu0 0.0
      %461 = vmatpush1.msra.mxu0 0.0
      %462 = vmatprep.subr.mxu0 0.0
      %463 = vmatpush1.msra.mxu0 0.0
      %464 = vmatprep.subr.mxu0 0.0
      %465 = vmatpush1.msra.mxu0 0.0
      %466 = vmatprep.subr.mxu0 0.0
      %467 = vmatpush1.msra.mxu0 0.0
      %468 = vmatprep.subr.mxu0 0.0
      %469 = vmatpush1.msra.mxu0 0.0
      %470 = vmatprep.subr.mxu0 0.0
      %471 = vmatpush1.msra.mxu0 0.0
      %472 = vmatprep.subr.mxu0 0.0
      %473 = vmatpush1.msra.mxu0 0.0
      %474 = vmatprep.subr.mxu0 0.0
      %475 = vmatpush1.msra.mxu0 0.0
      %476 = vmatprep.subr.mxu0 0.0
      %477 = vmatpush1.msra.mxu0 0.0
      %478 = vmatprep.subr.mxu0 0.0
      %479 = vmatpush1.msra.mxu0 0.0
      %480 = vmatprep.subr.mxu0 0.0
      %481 = vmatpush1.msra.mxu0 0.0
      %482 = vmatprep.subr.mxu0 0.0
      %483 = vmatpush1.msra.mxu0 0.0
      %484 = vmatprep.subr.mxu0 0.0
      %485 = vmatpush1.msra.mxu0 0.0
      %486 = vmatprep.subr.mxu0 0.0
      %487 = vmatpush1.msra.mxu0 0.0
      %488 = vmatprep.subr.mxu0 0.0
      %489 = vmatpush1.msra.mxu0 0.0
      %490 = vmatprep.subr.mxu0 0.0
      %491 = vmatpush1.msra.mxu0 0.0
      %492 = vmatprep.subr.mxu0 0.0
      %493 = vmatpush1.msra.mxu0 0.0
      %494 = vmatprep.subr.mxu0 0.0
      %495 = vmatpush1.msra.mxu0 0.0
      %496 = vmatprep.subr.mxu0 0.0
      %497 = vmatpush1.msra.mxu0 0.0
      %498 = vmatprep.subr.mxu0 0.0
      %499 = vmatpush1.msra.mxu0 0.0
      %500 = vmatprep.subr.mxu0 0.0
      %501 = vmatpush1.msra.mxu0 0.0
      %502 = vmatprep.subr.mxu0 0.0
      %503 = vmatpush1.msra.mxu0 0.0
      %504 = vmatprep.subr.mxu0 0.0
      %505 = vmatpush1.msra.mxu0 0.0
      %506 = vmatprep.subr.mxu0 0.0
      %507 = vmatpush1.msra.mxu0 0.0
      %508 = vmatprep.subr.mxu0 0.0
      %509 = vmatpush1.msra.mxu0 0.0
      %510 = vmatprep.subr.mxu0 0.0
      %511 = vmatpush1.msra.mxu0 0.0
      %512 = vmatprep.subr.mxu0 0.0
      %513 = vmatpush1.msra.mxu0 0.0
      %514 = vmatprep.subr.mxu0 0.0
      %515 = vmatpush1.msra.mxu0 0.0
      %516 = vmatprep.subr.mxu0 0.0
      %517 = vmatpush1.msra.mxu0 0.0
      %518 = vmatprep.subr.mxu0 0.0
      %519 = vmatpush1.msra.mxu0 0.0
      %520 = vmatprep.mubr.f32.mxu0 0.0
      %521 = vmatmul.mubr.f32.gmra.mrb[0].mxu0 %v444
      %v522 = vpop.f32.mrb[0].mxu0
      %v523 = vadd.f32 0.0, %v522
      %v524 = vpop.f32.mrb[0].mxu0
      %525 = vmatprep.mubr.f32.mxu0 0.0
      %526 = vmatmul.mubr.f32.gmra.mrb[0].mxu0 %v447
      %v527 = vpop.f32.mrb[0].mxu0
      %v528 = vadd.f32 0.0, %v527
      %v529 = vpop.f32.mrb[0].mxu0
      %530 = vmatprep.mubr.f32.mxu0 0.0
      %531 = vmatmul.mubr.f32.gmra.mrb[0].mxu0 %v450
      %v532 = vpop.f32.mrb[0].mxu0
      %v533 = vadd.f32 0.0, %v532
      %v534 = vpop.f32.mrb[0].mxu0
      %535 = vdwg.mxu0
      %v536 = vld [vmem:[%s2] sm:$0xff]
      %v537 = vld [vmem:[%s2 + $0x8] sm:$0xff]
      %v538 = vld [vmem:[%s2 + $0x10] sm:$0xf]
      %540 = vset.pattern.permute.xlu0 0
      %541 = vperm.xlu0 %540, %v536
      %v542 = vpop.permute.xlu0 %541
      %545 = vset.pattern.permute.xlu0 0
      %546 = vperm.xlu0 %545, %v537
      %v547 = vpop.permute.xlu0 %546
      %550 = vset.pattern.permute.xlu0 0
      %551 = vperm.xlu0 %550, %v538
      %v552 = vpop.permute.xlu0 %551
      %v554 = vmul.f32 %v523, %v542
      %v555 = vmul.f32 %v528, %v547
      %v556 = vmul.f32 %v533, %v552
      %v557 = vld [vmem:[%s3] sm:$0xff]
      %v558 = vld [vmem:[%s3 + $0x8] sm:$0xff]
      %v559 = vld [vmem:[%s3 + $0x10] sm:$0xf]
      %561 = vset.pattern.permute.xlu0 0
      %562 = vperm.xlu0 %561, %v557
      %v563 = vpop.permute.xlu0 %562
      %566 = vset.pattern.permute.xlu0 0
      %567 = vperm.xlu0 %566, %v558
      %v568 = vpop.permute.xlu0 %567
      %571 = vset.pattern.permute.xlu0 0
      %572 = vperm.xlu0 %571, %v559
      %v573 = vpop.permute.xlu0 %572
      %v575 = vadd.f32 %v554, %v563
      %v576 = vadd.f32 %v555, %v568
      %v577 = vadd.f32 %v556, %v573
      %v578 = vmax.f32 %v575, 0.0
      %v579 = vmax.f32 %v576, 0.0
      %v580 = vmax.f32 %v577, 0.0
      %v581 = vld [vmem:[%s4] sm:$0xff]
      %v582 = vld [vmem:[%s4 + $0x8] sm:$0xff]
      %v583 = vld [vmem:[%s4 + $0x10] sm:$0xff]
      %v584 = vld [vmem:[%s4 + $0x18] sm:$0xff]
      %v585 = vld [vmem:[%s4 + $0x20] sm:$0xff]
      %v586 = vld [vmem:[%s4 + $0x28] sm:$0x1f]
      %vm587 = vcmask 162816
      %v589 = vsel %vm587, %v581, 0
      %v592 = vsel %vm587, %v582, 0
      %v595 = vsel %vm587, %v583, 0
      %v598 = vsel %vm587, %v584, 0
      %v601 = vsel %vm587, %v585, 0
      %v604 = vsel %vm587, %v586, 0
      %vm606 = vcmask 1043456
      %v608 = vsel %vm606, %v580, 0
      %610 = vmatprep.subr.mxu0 0.0
      %611 = vmatpush1.msra.mxu0 %v578
      %612 = vmatprep.subr.mxu0 0.0
      %613 = vmatpush1.msra.mxu0 %v579
      %614 = vmatprep.subr.mxu0 0.0
      %615 = vmatpush1.msra.mxu0 %v608
      %616 = vmatprep.subr.mxu0 0.0
      %617 = vmatpush1.msra.mxu0 0.0
      %618 = vmatprep.subr.mxu0 0.0
      %619 = vmatpush1.msra.mxu0 0.0
      %620 = vmatprep.subr.mxu0 0.0
      %621 = vmatpush1.msra.mxu0 0.0
      %622 = vmatprep.subr.mxu0 0.0
      %623 = vmatpush1.msra.mxu0 0.0
      %624 = vmatprep.subr.mxu0 0.0
      %625 = vmatpush1.msra.mxu0 0.0
      %626 = vmatprep.subr.mxu0 0.0
      %627 = vmatpush1.msra.mxu0 0.0
      %628 = vmatprep.subr.mxu0 0.0
      %629 = vmatpush1.msra.mxu0 0.0
      %630 = vmatprep.subr.mxu0 0.0
      %631 = vmatpush1.msra.mxu0 0.0
      %632 = vmatprep.subr.mxu0 0.0
      %633 = vmatpush1.msra.mxu0 0.0
      %634 = vmatprep.subr.mxu0 0.0
      %635 = vmatpush1.msra.mxu0 0.0
      %636 = vmatprep.subr.mxu0 0.0
      %637 = vmatpush1.msra.mxu0 0.0
      %638 = vmatprep.subr.mxu0 0.0
      %639 = vmatpush1.msra.mxu0 0.0
      %640 = vmatprep.subr.mxu0 0.0
      %641 = vmatpush1.msra.mxu0 0.0
      %642 = vmatprep.subr.mxu0 0.0
      %643 = vmatpush1.msra.mxu0 0.0
      %644 = vmatprep.subr.mxu0 0.0
      %645 = vmatpush1.msra.mxu0 0.0
      %646 = vmatprep.subr.mxu0 0.0
      %647 = vmatpush1.msra.mxu0 0.0
      %648 = vmatprep.subr.mxu0 0.0
      %649 = vmatpush1.msra.mxu0 0.0
      %650 = vmatprep.subr.mxu0 0.0
      %651 = vmatpush1.msra.mxu0 0.0
      %652 = vmatprep.subr.mxu0 0.0
      %653 = vmatpush1.msra.mxu0 0.0
      %654 = vmatprep.subr.mxu0 0.0
      %655 = vmatpush1.msra.mxu0 0.0
      %656 = vmatprep.subr.mxu0 0.0
      %657 = vmatpush1.msra.mxu0 0.0
      %658 = vmatprep.subr.mxu0 0.0
      %659 = vmatpush1.msra.mxu0 0.0
      %660 = vmatprep.subr.mxu0 0.0
      %661 = vmatpush1.msra.mxu0 0.0
      %662 = vmatprep.subr.mxu0 0.0
      %663 = vmatpush1.msra.mxu0 0.0
      %664 = vmatprep.subr.mxu0 0.0
      %665 = vmatpush1.msra.mxu0 0.0
      %666 = vmatprep.subr.mxu0 0.0
      %667 = vmatpush1.msra.mxu0 0.0
      %668 = vmatprep.subr.mxu0 0.0
      %669 = vmatpush1.msra.mxu0 0.0
      %670 = vmatprep.subr.mxu0 0.0
      %671 = vmatpush1.msra.mxu0 0.0
      %672 = vmatprep.subr.mxu0 0.0
      %673 = vmatpush1.msra.mxu0 0.0
      %674 = vmatprep.mubr.f32.mxu0 0.0
      %675 = vmatmul.mubr.f32.gmra.mrb[0].mxu0 %v589
      %v676 = vpop.f32.mrb[0].mxu0
      %v677 = vadd.f32 0.0, %v676
      %v678 = vpop.f32.mrb[0].mxu0
      %679 = vmatprep.mubr.f32.mxu0 0.0
      %680 = vmatmul.mubr.f32.gmra.mrb[0].mxu0 %v592
      %v681 = vpop.f32.mrb[0].mxu0
      %v682 = vadd.f32 0.0, %v681
      %v683 = vpop.f32.mrb[0].mxu0
      %684 = vmatprep.mubr.f32.mxu0 0.0
      %685 = vmatmul.mubr.f32.gmra.mrb[0].mxu0 %v595
      %v686 = vpop.f32.mrb[0].mxu0
      %v687 = vadd.f32 0.0, %v686
      %v688 = vpop.f32.mrb[0].mxu0
      %689 = vmatprep.mubr.f32.mxu0 0.0
      %690 = vmatmul.mubr.f32.gmra.mrb[0].mxu0 %v598
      %v691 = vpop.f32.mrb[0].mxu0
      %v692 = vadd.f32 0.0, %v691
      %v693 = vpop.f32.mrb[0].mxu0
      %694 = vmatprep.mubr.f32.mxu0 0.0
      %695 = vmatmul.mubr.f32.gmra.mrb[0].mxu0 %v601
      %v696 = vpop.f32.mrb[0].mxu0
      %v697 = vpop.f32.mrb[0].mxu0
      %698 = vmatprep.mubr.f32.mxu0 0.0
      %699 = vmatmul.mubr.f32.gmra.mrb[0].mxu0 %v604
      %v700 = vpop.f32.mrb[0].mxu0
      %v701 = vadd.f32 0.0, %v700
      %v702 = vpop.f32.mrb[0].mxu0
      %703 = vdwg.mxu0
      %v704 = vld [vmem:[%s5] sm:$0xff]
      %v705 = vld [vmem:[%s5 + $0x8] sm:$0xff]
      %v706 = vld [vmem:[%s5 + $0x10] sm:$0xff]
      %v707 = vld [vmem:[%s5 + $0x18] sm:$0xff]
      %v708 = vld [vmem:[%s5 + $0x28] sm:$0x1f]
      %v709 = vmul.f32 %v677, %v704
      %v710 = vmul.f32 %v682, %v705
      %v711 = vmul.f32 %v687, %v706
      %v712 = vmul.f32 %v692, %v707
      %v713 = vmul.f32 %v701, %v708
      %v714 = vld [vmem:[%s6] sm:$0xff]
      %v715 = vld [vmem:[%s6 + $0x8] sm:$0xff]
      %v716 = vld [vmem:[%s6 + $0x10] sm:$0xf]
      %v718 = vsel %vm442, %v714, 0
      %v721 = vsel %vm442, %v715, 0
      %v724 = vsel %vm442, %v716, 0
      %726 = vmatprep.subr.mxu0 0.0
      %727 = vmatpush1.msra.mxu0 %v454
      %728 = vmatprep.subr.mxu0 0.0
      %729 = vmatpush1.msra.mxu0 0.0
      %730 = vmatprep.subr.mxu0 0.0
      %731 = vmatpush1.msra.mxu0 0.0
      %732 = vmatprep.subr.mxu0 0.0
      %733 = vmatpush1.msra.mxu0 0.0
      %734 = vmatprep.subr.mxu0 0.0
      %735 = vmatpush1.msra.mxu0 0.0
      %736 = vmatprep.subr.mxu0 0.0
      %737 = vmatpush1.msra.mxu0 0.0
      %738 = vmatprep.subr.mxu0 0.0
      %739 = vmatpush1.msra.mxu0 0.0
      %740 = vmatprep.subr.mxu0 0.0
      %741 = vmatpush1.msra.mxu0 0.0
      %742 = vmatprep.subr.mxu0 0.0
      %743 = vmatpush1.msra.mxu0 0.0
      %744 = vmatprep.subr.mxu0 0.0
      %745 = vmatpush1.msra.mxu0 0.0
      %746 = vmatprep.subr.mxu0 0.0
      %747 = vmatpush1.msra.mxu0 0.0
      %748 = vmatprep.subr.mxu0 0.0
      %749 = vmatpush1.msra.mxu0 0.0
      %750 = vmatprep.subr.mxu0 0.0
      %751 = vmatpush1.msra.mxu0 0.0
      %752 = vmatprep.subr.mxu0 0.0
      %753 = vmatpush1.msra.mxu0 0.0
      %754 = vmatprep.subr.mxu0 0.0
      %755 = vmatpush1.msra.mxu0 0.0
      %756 = vmatprep.subr.mxu0 0.0
      %757 = vmatpush1.msra.mxu0 0.0
      %758 = vmatprep.subr.mxu0 0.0
      %759 = vmatpush1.msra.mxu0 0.0
      %760 = vmatprep.subr.mxu0 0.0
      %761 = vmatpush1.msra.mxu0 0.0
      %762 = vmatprep.subr.mxu0 0.0
      %763 = vmatpush1.msra.mxu0 0.0
      %764 = vmatprep.subr.mxu0 0.0
      %765 = vmatpush1.msra.mxu0 0.0
      %766 = vmatprep.subr.mxu0 0.0
      %767 = vmatpush1.msra.mxu0 0.0
      %768 = vmatprep.subr.mxu0 0.0
      %769 = vmatpush1.msra.mxu0 0.0
      %770 = vmatprep.subr.mxu0 0.0
      %771 = vmatpush1.msra.mxu0 0.0
      %772 = vmatprep.subr.mxu0 0.0
      %773 = vmatpush1.msra.mxu0 0.0
      %774 = vmatprep.subr.mxu0 0.0
      %775 = vmatpush1.msra.mxu0 0.0
      %776 = vmatprep.subr.mxu0 0.0
      %777 = vmatpush1.msra.mxu0 0.0
      %778 = vmatprep.subr.mxu0 0.0
      %779 = vmatpush1.msra.mxu0 0.0
      %780 = vmatprep.subr.mxu0 0.0
      %781 = vmatpush1.msra.mxu0 0.0
      %782 = vmatprep.subr.mxu0 0.0
      %783 = vmatpush1.msra.mxu0 0.0
      %784 = vmatprep.subr.mxu0 0.0
      %785 = vmatpush1.msra.mxu0 0.0
      %786 = vmatprep.subr.mxu0 0.0
      %787 = vmatpush1.msra.mxu0 0.0
      %788 = vmatprep.subr.mxu0 0.0
      %789 = vmatpush1.msra.mxu0 0.0
      %790 = vmatprep.mubr.f32.mxu0 0.0
      %791 = vmatmul.mubr.f32.gmra.mrb[0].mxu0 %v718
      %v792 = vpop.f32.mrb[0].mxu0
      %v793 = vadd.f32 0.0, %v792
      %v794 = vpop.f32.mrb[0].mxu0
      %795 = vmatprep.mubr.f32.mxu0 0.0
      %796 = vmatmul.mubr.f32.gmra.mrb[0].mxu0 %v721
      %v797 = vpop.f32.mrb[0].mxu0
      %v798 = vadd.f32 0.0, %v797
      %v799 = vpop.f32.mrb[0].mxu0
      %800 = vmatprep.mubr.f32.mxu0 0.0
      %801 = vmatmul.mubr.f32.gmra.mrb[0].mxu0 %v724
      %v802 = vpop.f32.mrb[0].mxu0
      %v803 = vadd.f32 0.0, %v802
      %v804 = vpop.f32.mrb[0].mxu0
      %805 = vdwg.mxu0
      %vm806 = vcmask 64516
      %vm807 = vmor %vm806, %vm606
      %808 = vst.msk [vmem:[#allocation2] sm:$0xff] %vm807, 0.0
      %810 = vrot.lane.b32.xlu0 %v793, 36
      %v811 = vpop.permute.xlu0 %810
      %vm813 = vcmask 814368
      %814 = vst.msk [vmem:[#allocation2] sm:$0xf] %vm813, %v811
      %v815 = vld [vmem:[#allocation2] sm:$0xff]
      %v816 = vlaneseq
      %v817 = vshrl.u32 %v816, 7
      %v818 = vsub.s32 0, %v817
      %v819 = vrot.slane %v709, %v818
      %821 = vrot.lane.b32.xlu0 %v815, 101
      %v822 = vpop.permute.xlu0 %821
      %v824 = vmul.f32 %v819, %v822
      %v825 = vadd.f32 %v824, 0.0
      %v826 = vlaneseq
      %v827 = vshrl.u32 %v826, 7
      %v828 = vsub.s32 1, %v827
      %v829 = vrot.slane %v709, %v828
      %830 = vrot.lane.b32.xlu0 %v815, 100
      %v831 = vpop.permute.xlu0 %830
      %v833 = vmul.f32 %v829, %v831
      %v834 = vadd.f32 %v825, %v833
      %v835 = vlaneseq
      %v836 = vshrl.u32 %v835, 7
      %v837 = vsub.s32 2, %v836
      %v838 = vrot.slane %v709, %v837
      %839 = vrot.lane.b32.xlu0 %v815, 99
      %v840 = vpop.permute.xlu0 %839
      %v842 = vmul.f32 %v838, %v840
      %v843 = vadd.f32 %v834, %v842
      %v844 = vlaneseq
      %v845 = vshrl.u32 %v844, 7
      %v846 = vsub.s32 3, %v845
      %v847 = vrot.slane %v709, %v846
      %848 = vrot.lane.b32.xlu0 %v815, 93
      %v849 = vpop.permute.xlu0 %848
      %v851 = vmul.f32 %v847, %v849
      %v852 = vadd.f32 %v843, %v851
      %v853 = vlaneseq
      %v854 = vshrl.u32 %v853, 7
      %v855 = vsub.s32 4, %v854
      %v856 = vrot.slane %v709, %v855
      %857 = vrot.lane.b32.xlu0 %v815, 92
      %v858 = vpop.permute.xlu0 %857
      %v860 = vmul.f32 %v856, %v858
      %v861 = vadd.f32 %v852, %v860
      %v862 = vlaneseq
      %v863 = vshrl.u32 %v862, 7
      %v864 = vsub.s32 5, %v863
      %v865 = vrot.slane %v709, %v864
      %866 = vrot.lane.b32.xlu0 %v815, 91
      %v867 = vpop.permute.xlu0 %866
      %v869 = vmul.f32 %v865, %v867
      %v870 = vadd.f32 %v861, %v869
      %v871 = vlaneseq
      %v872 = vshrl.u32 %v871, 7
      %v873 = vsub.s32 6, %v872
      %v874 = vrot.slane %v709, %v873
      %875 = vrot.lane.b32.xlu0 %v815, 85
      %v876 = vpop.permute.xlu0 %875
      %v878 = vmul.f32 %v874, %v876
      %v879 = vadd.f32 %v870, %v878
      %v880 = vlaneseq
      %v881 = vshrl.u32 %v880, 7
      %v882 = vsub.s32 7, %v881
      %v883 = vrot.slane %v709, %v882
      %884 = vrot.lane.b32.xlu0 %v815, 84
      %v885 = vpop.permute.xlu0 %884
      %v887 = vmul.f32 %v883, %v885
      %v888 = vadd.f32 %v879, %v887
      %v889 = vlaneseq
      %v890 = vshrl.u32 %v889, 7
      %v891 = vsub.s32 0, %v890
      %v892 = vrot.slane %v710, %v891
      %893 = vrot.lane.b32.xlu0 %v815, 83
      %v894 = vpop.permute.xlu0 %893
      %v896 = vmul.f32 %v892, %v894
      %v897 = vadd.f32 %v888, %v896
      %v898 = vld [vmem:[%s7] sm:$0xf]
      %900 = vset.pattern.permute.xlu0 0
      %901 = vperm.xlu0 %900, %v898
      %v902 = vpop.permute.xlu0 %901
      %v904 = vmul.f32 %v897, %v902
      %v905 = vld [vmem:[%s8] sm:$0xf]
      %907 = vset.pattern.permute.xlu0 0
      %908 = vperm.xlu0 %907, %v905
      %v909 = vpop.permute.xlu0 %908
      %v911 = vadd.f32 %v904, %v909
      %vm912 = vcmp.gt.f32.partialorder %v911, 0.0
      %v913 = vld [vmem:[%s9] sm:$0xf]
      %915 = vset.pattern.permute.xlu0 0
      %916 = vperm.xlu0 %915, %v913
      %v917 = vpop.permute.xlu0 %916
      %v919 = vmul.f32 %v917, %v911
      %v920 = vsel %vm912, %v911, %v919
      %v921 = vld [vmem:[%s10] sm:$0xf]
      %923 = vset.pattern.permute.xlu0 0
      %924 = vperm.xlu0 %923, %v921
      %v925 = vpop.permute.xlu0 %924
      %v927 = vmul.f32 %v920, %v925
      %v928 = vld [vmem:[%s11] sm:$0xf]
      %930 = vset.pattern.permute.xlu0 0
      %931 = vperm.xlu0 %930, %v928
      %v932 = vpop.permute.xlu0 %931
      %v934 = vadd.f32 %v927, %v932
      %vm935 = vcmp.gt.f32.partialorder %v934, 0.0
      %v936 = vld [vmem:[%s12] sm:$0xf]
      %938 = vset.pattern.permute.xlu0 0
      %939 = vperm.xlu0 %938, %v936
      %v940 = vpop.permute.xlu0 %939
      %v942 = vmul.f32 %v940, %v934
      %v943 = vsel %vm935, %v934, %v942
      %vm944 = vcmask 519168
      %945 = vst.msk [vmem:[%s437] sm:$0xf] %vm944, %v943
      %v946 = vcombine.high %v793, %v793
      %947 = vrot.lane.b32.xlu0 %v946, 36
      %v948 = vpop.permute.xlu0 %947
      %950 = vst.msk [vmem:[#allocation2] sm:$0xf] %vm813, %v948
      %v951 = vld [vmem:[#allocation2] sm:$0xff]
      %v952 = vlaneseq
      %v953 = vshrl.u32 %v952, 7
      %v954 = vsub.s32 1, %v953
      %v955 = vrot.slane %v710, %v954
      %957 = vrot.lane.b32.xlu0 %v951, 110
      %v958 = vpop.permute.xlu0 %957
      %v960 = vmul.f32 %v955, %v958
      %v961 = vadd.f32 %v960, 0.0
      %v962 = vlaneseq
      %v963 = vshrl.u32 %v962, 7
      %v964 = vsub.s32 2, %v963
      %v965 = vrot.slane %v710, %v964
      %966 = vrot.lane.b32.xlu0 %v951, 108
      %v967 = vpop.permute.xlu0 %966
      %v969 = vmul.f32 %v965, %v967
      %v970 = vadd.f32 %v961, %v969
      %v971 = vlaneseq
      %v972 = vshrl.u32 %v971, 7
      %v973 = vsub.s32 3, %v972
      %v974 = vrot.slane %v710, %v973
      %975 = vrot.lane.b32.xlu0 %v951, 106
      %v976 = vpop.permute.xlu0 %975
      %v978 = vmul.f32 %v974, %v976
      %v979 = vadd.f32 %v970, %v978
      %v980 = vlaneseq
      %v981 = vshrl.u32 %v980, 7
      %v982 = vsub.s32 4, %v981
      %v983 = vrot.slane %v710, %v982
      %984 = vrot.lane.b32.xlu0 %v951, 94
      %v985 = vpop.permute.xlu0 %984
      %v987 = vmul.f32 %v983, %v985
      %v988 = vadd.f32 %v979, %v987
      %v989 = vlaneseq
      %v990 = vshrl.u32 %v989, 7
      %v991 = vsub.s32 5, %v990
      %v992 = vrot.slane %v710, %v991
      %993 = vrot.lane.b32.xlu0 %v951, 92
      %v994 = vpop.permute.xlu0 %993
      %v996 = vmul.f32 %v992, %v994
      %v997 = vadd.f32 %v988, %v996
      %v998 = vlaneseq
      %v999 = vshrl.u32 %v998, 7
      %v1000 = vsub.s32 6, %v999
      %v1001 = vrot.slane %v710, %v1000
      %1002 = vrot.lane.b32.xlu0 %v951, 90
      %v1003 = vpop.permute.xlu0 %1002
      %v1005 = vmul.f32 %v1001, %v1003
      %v1006 = vadd.f32 %v997, %v1005
      %v1007 = vlaneseq
      %v1008 = vshrl.u32 %v1007, 7
      %v1009 = vsub.s32 7, %v1008
      %v1010 = vrot.slane %v710, %v1009
      %1011 = vrot.lane.b32.xlu0 %v951, 78
      %v1012 = vpop.permute.xlu0 %1011
      %v1014 = vmul.f32 %v1010, %v1012
      %v1015 = vadd.f32 %v1006, %v1014
      %v1016 = vlaneseq
      %v1017 = vshrl.u32 %v1016, 7
      %v1018 = vsub.s32 0, %v1017
      %v1019 = vrot.slane %v711, %v1018
      %1020 = vrot.lane.b32.xlu0 %v951, 76
      %v1021 = vpop.permute.xlu0 %1020
      %v1023 = vmul.f32 %v1019, %v1021
      %v1024 = vadd.f32 %v1015, %v1023
      %v1025 = vlaneseq
      %v1026 = vshrl.u32 %v1025, 7
      %v1027 = vsub.s32 1, %v1026
      %v1028 = vrot.slane %v711, %v1027
      %1029 = vrot.lane.b32.xlu0 %v951, 74
      %v1030 = vpop.permute.xlu0 %1029
      %v1032 = vmul.f32 %v1028, %v1030
      %v1033 = vadd.f32 %v1024, %v1032
      %v1034 = vld [vmem:[%s7 + $0x4] sm:$0x3]
      %1036 = vset.pattern.permute.xlu0 0
      %1037 = vperm.xlu0 %1036, %v1034
      %v1038 = vpop.permute.xlu0 %1037
      %v1040 = vmul.f32 %v1033, %v1038
      %v1041 = vld [vmem:[%s8 + $0x4] sm:$0x3]
      %1043 = vset.pattern.permute.xlu0 0
      %1044 = vperm.xlu0 %1043, %v1041
      %v1045 = vpop.permute.xlu0 %1044
      %v1047 = vadd.f32 %v1040, %v1045
      %vm1048 = vcmp.gt.f32.partialorder %v1047, 0.0
      %v1049 = vld [vmem:[%s9 + $0x4] sm:$0x3]
      %1051 = vset.pattern.permute.xlu0 0
      %1052 = vperm.xlu0 %1051, %v1049
      %v1053 = vpop.permute.xlu0 %1052
      %v1055 = vmul.f32 %v1053, %v1047
      %v1056 = vsel %vm1048, %v1047, %v1055
      %v1057 = vld [vmem:[%s10 + $0x4] sm:$0x3]
      %1059 = vset.pattern.permute.xlu0 0
      %1060 = vperm.xlu0 %1059, %v1057
      %v1061 = vpop.permute.xlu0 %1060
      %v1063 = vmul.f32 %v1056, %v1061
      %v1064 = vld [vmem:[%s11 + $0x4] sm:$0x3]
      %1066 = vset.pattern.permute.xlu0 0
      %1067 = vperm.xlu0 %1066, %v1064
      %v1068 = vpop.permute.xlu0 %1067
      %v1070 = vadd.f32 %v1063, %v1068
      %vm1071 = vcmp.gt.f32.partialorder %v1070, 0.0
      %v1072 = vld [vmem:[%s12 + $0x4] sm:$0x3]
      %1074 = vset.pattern.permute.xlu0 0
      %1075 = vperm.xlu0 %1074, %v1072
      %v1076 = vpop.permute.xlu0 %1075
      %v1078 = vmul.f32 %v1076, %v1070
      %v1079 = vsel %vm1071, %v1070, %v1078
      %vm1080 = vcmask 517120
      %1081 = vst.msk [vmem:[%s437 + $0x4] sm:$0x3] %vm1080, %v1079
      %1083 = vrot.lane.b32.xlu0 %v798, 36
      %v1084 = vpop.permute.xlu0 %1083
      %1086 = vst.msk [vmem:[#allocation2] sm:$0xf] %vm813, %v1084
      %v1087 = vld [vmem:[#allocation2] sm:$0xff]
      %v1088 = vlaneseq
      %v1089 = vshrl.u32 %v1088, 7
      %v1090 = vsub.s32 2, %v1089
      %v1091 = vrot.slane %v711, %v1090
      %v1092 = vmul.f32 %v1091, %v1087
      %v1093 = vadd.f32 %v1092, 0.0
      %v1094 = vlaneseq
      %v1095 = vshrl.u32 %v1094, 7
      %v1096 = vsub.s32 3, %v1095
      %v1097 = vrot.slane %v711, %v1096
      %1099 = vrot.lane.b32.xlu0 %v1087, 124
      %v1100 = vpop.permute.xlu0 %1099
      %v1102 = vmul.f32 %v1097, %v1100
      %v1103 = vadd.f32 %v1093, %v1102
      %v1104 = vlaneseq
      %v1105 = vshrl.u32 %v1104, 7
      %v1106 = vsub.s32 4, %v1105
      %v1107 = vrot.slane %v711, %v1106
      %1108 = vrot.lane.b32.xlu0 %v1087, 120
      %v1109 = vpop.permute.xlu0 %1108
      %v1111 = vmul.f32 %v1107, %v1109
      %v1112 = vadd.f32 %v1103, %v1111
      %v1113 = vlaneseq
      %v1114 = vshrl.u32 %v1113, 7
      %v1115 = vsub.s32 5, %v1114
      %v1116 = vrot.slane %v711, %v1115
      %1117 = vrot.lane.b32.xlu0 %v1087, 96
      %v1118 = vpop.permute.xlu0 %1117
      %v1120 = vmul.f32 %v1116, %v1118
      %v1121 = vadd.f32 %v1112, %v1120
      %v1122 = vlaneseq
      %v1123 = vshrl.u32 %v1122, 7
      %v1124 = vsub.s32 6, %v1123
      %v1125 = vrot.slane %v711, %v1124
      %1126 = vrot.lane.b32.xlu0 %v1087, 92
      %v1127 = vpop.permute.xlu0 %1126
      %v1129 = vmul.f32 %v1125, %v1127
      %v1130 = vadd.f32 %v1121, %v1129
      %v1131 = vlaneseq
      %v1132 = vshrl.u32 %v1131, 7
      %v1133 = vsub.s32 7, %v1132
      %v1134 = vrot.slane %v711, %v1133
      %1135 = vrot.lane.b32.xlu0 %v1087, 88
      %v1136 = vpop.permute.xlu0 %1135
      %v1138 = vmul.f32 %v1134, %v1136
      %v1139 = vadd.f32 %v1130, %v1138
      %v1140 = vlaneseq
      %v1141 = vshrl.u32 %v1140, 7
      %v1142 = vsub.s32 0, %v1141
      %v1143 = vrot.slane %v712, %v1142
      %1144 = vrot.lane.b32.xlu0 %v1087, 64
      %v1145 = vpop.permute.xlu0 %1144
      %v1147 = vmul.f32 %v1143, %v1145
      %v1148 = vadd.f32 %v1139, %v1147
      %v1149 = vlaneseq
      %v1150 = vshrl.u32 %v1149, 7
      %v1151 = vsub.s32 1, %v1150
      %v1152 = vrot.slane %v712, %v1151
      %v1153 = vcombine.high %v1087, %v1087
      %1154 = vrot.lane.b32.xlu0 %v1087, 60
      %v1155 = vpop.permute.xlu0 %1154
      %1156 = vrot.lane.b32.xlu0 %v1153, 60
      %v1157 = vpop.permute.xlu0 %1156
      %vm1158 = vcmask 490496
      %v1159 = vsel %vm1158, %v1155, %v1157
      %v1161 = vmul.f32 %v1152, %v1159
      %v1162 = vadd.f32 %v1148, %v1161
      %v1163 = vlaneseq
      %v1164 = vshrl.u32 %v1163, 7
      %v1165 = vsub.s32 2, %v1164
      %v1166 = vrot.slane %v712, %v1165
      %1167 = vrot.lane.b32.xlu0 %v1087, 56
      %v1168 = vpop.permute.xlu0 %1167
      %1169 = vrot.lane.b32.xlu0 %v1153, 56
      %v1170 = vpop.permute.xlu0 %1169
      %vm1171 = vcmask 457728
      %v1172 = vsel %vm1171, %v1168, %v1170
      %v1174 = vmul.f32 %v1166, %v1172
      %v1175 = vadd.f32 %v1162, %v1174
      %v1176 = vld [vmem:[%s7 + $0x6] sm:$0x3]
      %1178 = vset.pattern.permute.xlu0 0
      %1179 = vperm.xlu0 %1178, %v1176
      %v1180 = vpop.permute.xlu0 %1179
      %v1182 = vmul.f32 %v1175, %v1180
      %v1183 = vld [vmem:[%s8 + $0x6] sm:$0x3]
      %1185 = vset.pattern.permute.xlu0 0
      %1186 = vperm.xlu0 %1185, %v1183
      %v1187 = vpop.permute.xlu0 %1186
      %v1189 = vadd.f32 %v1182, %v1187
      %vm1190 = vcmp.gt.f32.partialorder %v1189, 0.0
      %v1191 = vld [vmem:[%s9 + $0x6] sm:$0x3]
      %1193 = vset.pattern.permute.xlu0 0
      %1194 = vperm.xlu0 %1193, %v1191
      %v1195 = vpop.permute.xlu0 %1194
      %v1197 = vmul.f32 %v1195, %v1189
      %v1198 = vsel %vm1190, %v1189, %v1197
      %v1199 = vld [vmem:[%s10 + $0x6] sm:$0x3]
      %1201 = vset.pattern.permute.xlu0 0
      %1202 = vperm.xlu0 %1201, %v1199
      %v1203 = vpop.permute.xlu0 %1202
      %v1205 = vmul.f32 %v1198, %v1203
      %v1206 = vld [vmem:[%s11 + $0x6] sm:$0x3]
      %1208 = vset.pattern.permute.xlu0 0
      %1209 = vperm.xlu0 %1208, %v1206
      %v1210 = vpop.permute.xlu0 %1209
      %v1212 = vadd.f32 %v1205, %v1210
      %vm1213 = vcmp.gt.f32.partialorder %v1212, 0.0
      %v1214 = vld [vmem:[%s12 + $0x6] sm:$0x3]
      %1216 = vset.pattern.permute.xlu0 0
      %1217 = vperm.xlu0 %1216, %v1214
      %v1218 = vpop.permute.xlu0 %1217
      %v1220 = vmul.f32 %v1218, %v1212
      %v1221 = vsel %vm1213, %v1212, %v1220
      %1222 = vst.msk [vmem:[%s437 + $0x6] sm:$0x3] %vm1080, %v1221
      %v1223 = vcombine.high %v798, %v798
      %1224 = vrot.lane.b32.xlu0 %v1223, 36
      %v1225 = vpop.permute.xlu0 %1224
      %1227 = vst.msk [vmem:[#allocation2] sm:$0xf] %vm813, %v1225
      %v1228 = vld [vmem:[#allocation2] sm:$0xff]
      %v1229 = vlaneseq
      %v1230 = vshrl.u32 %v1229, 7
      %v1231 = vsub.s32 7, %v1230
      %v1232 = vrot.slane %v712, %v1231
      %1234 = vrot.lane.b32.xlu0 %v1228, 92
      %v1235 = vpop.permute.xlu0 %1234
      %v1237 = vmul.f32 %v1232, %v1235
      %v1238 = vadd.f32 %v1237, 0.0
      %v1239 = vld [vmem:[%s7 + $0x8] sm:$0x3]
      %1241 = vset.pattern.permute.xlu0 0
      %1242 = vperm.xlu0 %1241, %v1239
      %v1243 = vpop.permute.xlu0 %1242
      %v1245 = vmul.f32 %v1238, %v1243
      %v1246 = vld [vmem:[%s8 + $0x8] sm:$0x3]
      %1248 = vset.pattern.permute.xlu0 0
      %1249 = vperm.xlu0 %1248, %v1246
      %v1250 = vpop.permute.xlu0 %1249
      %v1252 = vadd.f32 %v1245, %v1250
      %vm1253 = vcmp.gt.f32.partialorder %v1252, 0.0
      %v1254 = vld [vmem:[%s9 + $0x8] sm:$0x3]
      %1256 = vset.pattern.permute.xlu0 0
      %1257 = vperm.xlu0 %1256, %v1254
      %v1258 = vpop.permute.xlu0 %1257
      %v1260 = vmul.f32 %v1258, %v1252
      %v1261 = vsel %vm1253, %v1252, %v1260
      %v1262 = vld [vmem:[%s10 + $0x8] sm:$0x3]
      %1264 = vset.pattern.permute.xlu0 0
      %1265 = vperm.xlu0 %1264, %v1262
      %v1266 = vpop.permute.xlu0 %1265
      %v1268 = vmul.f32 %v1261, %v1266
      %v1269 = vld [vmem:[%s11 + $0x8] sm:$0x3]
      %1271 = vset.pattern.permute.xlu0 0
      %1272 = vperm.xlu0 %1271, %v1269
      %v1273 = vpop.permute.xlu0 %1272
      %v1275 = vadd.f32 %v1268, %v1273
      %vm1276 = vcmp.gt.f32.partialorder %v1275, 0.0
      %v1277 = vld [vmem:[%s12 + $0x8] sm:$0x3]
      %1279 = vset.pattern.permute.xlu0 0
      %1280 = vperm.xlu0 %1279, %v1277
      %v1281 = vpop.permute.xlu0 %1280
      %v1283 = vmul.f32 %v1281, %v1275
      %v1284 = vsel %vm1276, %v1275, %v1283
      %1285 = vst.msk [vmem:[%s437 + $0x8] sm:$0x3] %vm1080, %v1284
      %1287 = vrot.lane.b32.xlu0 %v803, 36
      %v1288 = vpop.permute.xlu0 %1287
      %1290 = vst.msk [vmem:[#allocation2] sm:$0xf] %vm813, %v1288
      %v1291 = vld [vmem:[#allocation2] sm:$0xff]
      %v1292 = vlaneseq
      %v1293 = vshrl.u32 %v1292, 7
      %v1294 = vsub.s32 0, %v1293
      %v1295 = vrot.slane %v713, %v1294
      %1297 = vrot.lane.b32.xlu0 %v1291, 92
      %v1298 = vpop.permute.xlu0 %1297
      %v1300 = vmul.f32 %v1295, %v1298
      %v1301 = vadd.f32 %v1300, 0.0
      %v1302 = vld [vmem:[%s7 + $0xa] sm:$0x3]
      %1304 = vset.pattern.permute.xlu0 0
      %1305 = vperm.xlu0 %1304, %v1302
      %v1306 = vpop.permute.xlu0 %1305
      %v1308 = vmul.f32 %v1301, %v1306
      %v1309 = vld [vmem:[%s8 + $0xa] sm:$0x3]
      %1311 = vset.pattern.permute.xlu0 0
      %1312 = vperm.xlu0 %1311, %v1309
      %v1313 = vpop.permute.xlu0 %1312
      %v1315 = vadd.f32 %v1308, %v1313
      %vm1316 = vcmp.gt.f32.partialorder %v1315, 0.0
      %v1317 = vld [vmem:[%s9 + $0xa] sm:$0x3]
      %1319 = vset.pattern.permute.xlu0 0
      %1320 = vperm.xlu0 %1319, %v1317
      %v1321 = vpop.permute.xlu0 %1320
      %v1323 = vmul.f32 %v1321, %v1315
      %v1324 = vsel %vm1316, %v1315, %v1323
      %v1325 = vld [vmem:[%s10 + $0xa] sm:$0x3]
      %1327 = vset.pattern.permute.xlu0 0
      %1328 = vperm.xlu0 %1327, %v1325
      %v1329 = vpop.permute.xlu0 %1328
      %v1331 = vmul.f32 %v1324, %v1329
      %v1332 = vld [vmem:[%s11 + $0xa] sm:$0x3]
      %1334 = vset.pattern.permute.xlu0 0
      %1335 = vperm.xlu0 %1334, %v1332
      %v1336 = vpop.permute.xlu0 %1335
      %v1338 = vadd.f32 %v1331, %v1336
      %vm1339 = vcmp.gt.f32.partialorder %v1338, 0.0
      %v1340 = vld [vmem:[%s12 + $0xa] sm:$0x3]
      %1342 = vset.pattern.permute.xlu0 0
      %1343 = vperm.xlu0 %1342, %v1340
      %v1344 = vpop.permute.xlu0 %1343
      %v1346 = vmul.f32 %v1344, %v1338
      %v1347 = vsel %vm1339, %v1338, %v1346
      %1348 = vst.msk [vmem:[%s437 + $0xa] sm:$0x3] %vm1080, %v1347
      %p1349 = scmp.lt.s32.totalorder %s24, 1
      %s1350 = scalar_select %p1349, %s24, 1
      %s1351 = smul.addr %s1350, 2
      %s1352 = smul.addr %s1351, 8
      %s1353 = scalar_lea.vmem %s13, %s1352
      // Predicated region
      $region73: #{dinp_block_forward.3} parent=71 // pred_check
        %p1354 = pneg %p320
      $region74: #{dinp_block_forward.3} parent=71 // pred_check_branch
        %1356 = sbr.rel (%p1354) target = $region76
      $region75: #{dinp_block_forward.3} parent=71 // pred_region
        _
      $region76: #{dinp_block_forward.3} parent=71 // pred_fallthru
        _
    $region72: #{dinp_block_forward.3} parent=5 // pred_fallthru
      _
    %p1357 = scmp.le.s32.totalorder 2, %s19
    // Predicated region
    $region77: #{dinp_block_forward.3} parent=5 // pred_check
      %p1358 = pneg %p1357
    $region78: #{dinp_block_forward.3} parent=5 // pred_check_branch
      %1360 = sbr.rel (%p1358) target = $region80
    $region79: #{dinp_block_forward.3} parent=5 // pred_region
      %s1361 = ssub.s32 %s19, 2
      // Predicated region
      $region81: #{dinp_block_forward.3} parent=79 // pred_check
        %p1362 = pneg %p326
      $region82: #{dinp_block_forward.3} parent=79 // pred_check_branch
        %1364 = sbr.rel (%p1362) target = $region84
      $region83: #{dinp_block_forward.3} parent=79 // pred_region
        %p1365 = scmp.lt.s32.totalorder %s25, 1
        %s1366 = scalar_select %p1365, %s25, 1
        %s1367 = smul.addr %s1366, 2
        %s1368 = smul.addr %s1367, 8
        %s1369 = scalar_lea.vmem %s13, %s1368
      $region84: #{dinp_block_forward.3} parent=79 // pred_fallthru
        _
    $region80: #{dinp_block_forward.3} parent=5 // pred_fallthru
      _
  $region6: #{dinp_block_forward.3} parent=0 // loop_footer
    %s23 = sadd.s32 1, %s19
  $region7: #{dinp_block_forward.3} parent=0 // loop_footer_branch
    %18 = sbr.rel target = $region3
  $region8: #{dinp_block_forward.3} parent=0 // loop_exit
    _

</llo_original>
